<compile_context>
chip_gen: v7x
topology: tpu7x:2x2x1
jax: 0.10.0
libtpu: 0.0.40
codegen_flags: <defaults>
</compile_context>

<pallas_src>
import functools
import math

import jax
import jax.numpy as jnp
from jax.experimental import pallas as pl
from jax.experimental.pallas import tpu as pltpu


NUM_HEADS = 4
LN_EPS = 1e-5  # PyTorch nn.LayerNorm default


def _pick_vmem_limit():
    cap = None
    try:
        cap = pltpu.get_tpu_info().vmem_capacity_bytes
    except Exception:
        cap = None
    if not cap:
        cap = 64 * 1024 * 1024  # conservative (v7x-sized) fallback
    # leave ~25% headroom below physical VMEM (matters on v7x's 64 MiB);
    # on v5e/v6e (128 MiB) this raises the 32 MiB scoped default to ~96 MiB.
    return min((cap * 3) // 4, 96 * 1024 * 1024)


VMEM_LIMIT = _pick_vmem_limit()
_BIG_VMEM = VMEM_LIMIT >= 80 * 1024 * 1024
_DEF_TM = 512 if _BIG_VMEM else 256     # multiples of 8
_DEF_TN = 1024 if _BIG_VMEM else 512    # multiples of 128


# ------------------------------------------------------------------
# small in-kernel helpers
# ------------------------------------------------------------------
def _layernorm(x, gamma, beta, eps):
    mu = jnp.mean(x, axis=-1, keepdims=True)
    var = jnp.mean((x - mu) * (x - mu), axis=-1, keepdims=True)
    return ((x - mu) * jax.lax.rsqrt(var + eps)) * gamma + beta


def _softmax_rows(s):
    s = s - jnp.max(s, axis=-1, keepdims=True)
    p = jnp.exp(s)
    return p * pl.reciprocal(jnp.sum(p, axis=-1, keepdims=True), approx=True)


def _heads_attention(q, k, v, bias, num_heads):
    """q [S,H], k/v [T,H] (f32); bias [S,T] additive or None -> [S,H] f32."""
    S, H = q.shape
    T = k.shape[0]
    d = H // num_heads
    qh = q.reshape(S, num_heads, d).swapaxes(0, 1).astype(jnp.bfloat16)  # [nh,S,d]
    kh = k.reshape(T, num_heads, d).swapaxes(0, 1).astype(jnp.bfloat16)  # [nh,T,d]
    vh = v.reshape(T, num_heads, d).swapaxes(0, 1).astype(jnp.bfloat16)  # [nh,T,d]
    s = jnp.einsum('nqd,nkd->nqk', qh, kh,
                   preferred_element_type=jnp.float32)                   # [nh,S,T]
    if bias is not None:
        s = s + bias[None]
    p = _softmax_rows(s)
    a = jnp.einsum('nqk,nkd->nqd', p.astype(jnp.bfloat16), vh,
                   preferred_element_type=jnp.float32)                   # [nh,S,d]
    return a.swapaxes(0, 1).reshape(S, H)                                # [S,H]


# ------------------------------------------------------------------
# tiled linear (resize / output_fc)
# ------------------------------------------------------------------
def _linear_kernel(x_ref, w_ref, b_ref, o_ref, *, activation):
    # x [tm, K] (f32 or bf16), w [K, tn] bf16, b [1, tn] f32 -> o [tm, tn]
    y = jnp.dot(
        x_ref[...].astype(jnp.bfloat16), w_ref[...], preferred_element_type=jnp.float32
    ) + b_ref[...]
    if activation == "gelu":
        y = jax.nn.gelu(y)
    o_ref[...] = y.astype(o_ref.dtype)


def _fit_tile(dim, want):
    # one full-extent block if the dim fits, else an aligned tile + cdiv grid
    return dim if want >= dim else want


def linear(x2d, w_bf16, b_f32, activation=None, out_dtype=jnp.float32, tm=None, tn=None):
    """Tiled [M,K]x[K,N] matmul + bias (+opt GELU).

    Grid is (col tiles, row tiles) with rows innermost so the (large) weight
    slab stays resident in VMEM across all row tiles and streams from HBM once.
    Partial last tiles are handled by the cdiv grid (padded blocks)."""
    M, K = x2d.shape
    N = w_bf16.shape[1]
    tm = _fit_tile(M, tm if tm is not None else _DEF_TM)
    tn = _fit_tile(N, tn if tn is not None else _DEF_TN)
    grid = (pl.cdiv(N, tn), pl.cdiv(M, tm))  # (outer: cols, inner: rows)
    return pl.pallas_call(
        functools.partial(_linear_kernel, activation=activation),
        out_shape=jax.ShapeDtypeStruct((M, N), out_dtype),
        grid=grid,
        in_specs=[
            pl.BlockSpec((tm, K), lambda j, i: (i, 0)),
            pl.BlockSpec((K, tn), lambda j, i: (0, j)),   # constant over inner axis
            pl.BlockSpec((1, tn), lambda j, i: (0, j)),
        ],
        out_specs=pl.BlockSpec((tm, tn), lambda j, i: (i, j)),
        compiler_params=pltpu.CompilerParams(
            dimension_semantics=("parallel", "parallel"),
            vmem_limit_bytes=VMEM_LIMIT,
        ),
    )(x2d, w_bf16, b_f32.reshape(1, N))


# ------------------------------------------------------------------
# fused decoder blocks (grid over batch blocks)
# ------------------------------------------------------------------
def _embed_ln_kernel(tok_ref, pos_ref, g_ref, b_ref, o_ref, *, eps):
    x = tok_ref[...] + pos_ref[...]            # [Bblk,S,H] + [S,H]
    o_ref[...] = _layernorm(x, g_ref[...], b_ref[...], eps).astype(o_ref.dtype)


def embed_layernorm(tok, pos, gamma, beta, bblk):
    B, S, H = tok.shape
    return pl.pallas_call(
        functools.partial(_embed_ln_kernel, eps=LN_EPS),
        out_shape=jax.ShapeDtypeStruct((B, S, H), jnp.bfloat16),
        grid=(B // bblk,),
        in_specs=[
            pl.BlockSpec((bblk, S, H), lambda b: (b, 0, 0)),
            pl.BlockSpec((S, H), lambda b: (0, 0)),
            pl.BlockSpec((1, H), lambda b: (0, 0)),
            pl.BlockSpec((1, H), lambda b: (0, 0)),
        ],
        out_specs=pl.BlockSpec((bblk, S, H), lambda b: (b, 0, 0)),
        compiler_params=pltpu.CompilerParams(
            dimension_semantics=("parallel",), vmem_limit_bytes=VMEM_LIMIT
        ),
    )(tok, pos, gamma.reshape(1, H), beta.reshape(1, H))


def _self_attn_block_kernel(
    mask_ref, h_ref, wqkv_ref, bqkv_ref, wo_ref, bo_ref, g_ref, beta_ref, o_ref,
    *, num_heads, eps,
):
    # Fused: packed QKV matmul -> causal+pad masked multi-head attention
    #        -> out proj -> residual -> LayerNorm, for Bblk sequences.
    Bblk, S, H = h_ref.shape
    h_bf = h_ref[...]                                   # bf16 [Bblk,S,H]
    h2_bf = h_bf.reshape(Bblk * S, H)
    h2_f32 = h2_bf.astype(jnp.float32)
    masks = mask_ref[...]                               # [Bblk,1,S] f32

    qkv = jnp.dot(h2_bf, wqkv_ref[...],
                  preferred_element_type=jnp.float32) + bqkv_ref[...]

    row = jax.lax.broadcasted_iota(jnp.int32, (S, S), 0)
    col = jax.lax.broadcasted_iota(jnp.int32, (S, S), 1)
    causal = col <= row

    attn_rows = []
    for b in range(Bblk):
        sl = slice(b * S, (b + 1) * S)
        q = qkv[sl, :H]                 # 1/sqrt(d) folded into wq/bq at init
        k = qkv[sl, H:2 * H]
        v = qkv[sl, 2 * H:]
        allowed = jnp.logical_and(causal, masks[b] > 0.5)   # [S,S] & [1,S]
        bias = jnp.where(allowed, 0.0, -1e9)
        attn_rows.append(_heads_attention(q, k, v, bias, num_heads))
    attn = jnp.concatenate(attn_rows, axis=0).astype(jnp.bfloat16)  # [Bblk*S,H]

    proj = jnp.dot(attn, wo_ref[...],
                   preferred_element_type=jnp.float32) + bo_ref[...]
    out = _layernorm(h2_f32 + proj, g_ref[...], beta_ref[...], eps)
    o_ref[...] = out.reshape(Bblk, S, H).astype(o_ref.dtype)


def self_attn_block(h, mask_f, p, bblk):
    B, S, H = h.shape
    return pl.pallas_call(
        functools.partial(_self_attn_block_kernel, num_heads=NUM_HEADS, eps=LN_EPS),
        out_shape=jax.ShapeDtypeStruct((B, S, H), jnp.bfloat16),
        grid=(B // bblk,),
        in_specs=[
            pl.BlockSpec((bblk, 1, S), lambda b: (b, 0, 0)),
            pl.BlockSpec((bblk, S, H), lambda b: (b, 0, 0)),
            pl.BlockSpec((H, 3 * H), lambda b: (0, 0)),
            pl.BlockSpec((1, 3 * H), lambda b: (0, 0)),
            pl.BlockSpec((H, H), lambda b: (0, 0)),
            pl.BlockSpec((1, H), lambda b: (0, 0)),
            pl.BlockSpec((1, H), lambda b: (0, 0)),
            pl.BlockSpec((1, H), lambda b: (0, 0)),
        ],
        out_specs=pl.BlockSpec((bblk, S, H), lambda b: (b, 0, 0)),
        compiler_params=pltpu.CompilerParams(
            dimension_semantics=("parallel",), vmem_limit_bytes=VMEM_LIMIT
        ),
    )(
        mask_f, h, p["wqkv"], p["bqkv"].reshape(1, 3 * H), p["wo"],
        p["bo"].reshape(1, H), p["ln_g"].reshape(1, H), p["ln_b"].reshape(1, H),
    )


def _cross_attn_block_kernel(
    h_ref, img_ref, wq_ref, bq_ref, wkv_ref, bkv_ref, wo_ref, bo_ref,
    g_ref, beta_ref, o_ref, *, num_heads, eps,
):
    # Fused: Q / packed-KV matmuls -> unmasked attention over image memory
    #        -> out proj -> residual -> LayerNorm, for Bblk sequences.
    Bblk, S, H = h_ref.shape
    T = img_ref.shape[1]
    h2_bf = h_ref[...].reshape(Bblk * S, H)
    h2_f32 = h2_bf.astype(jnp.float32)
    img2_bf = img_ref[...].reshape(Bblk * T, H)

    q_all = jnp.dot(h2_bf, wq_ref[...],
                    preferred_element_type=jnp.float32) + bq_ref[...]
    kv_all = jnp.dot(img2_bf, wkv_ref[...],
                     preferred_element_type=jnp.float32) + bkv_ref[...]

    attn_rows = []
    for b in range(Bblk):
        q = q_all[b * S:(b + 1) * S]
        kv = kv_all[b * T:(b + 1) * T]
        k = kv[:, :H]
        v = kv[:, H:]
        attn_rows.append(_heads_attention(q, k, v, None, num_heads))
    attn = jnp.concatenate(attn_rows, axis=0).astype(jnp.bfloat16)

    proj = jnp.dot(attn, wo_ref[...],
                   preferred_element_type=jnp.float32) + bo_ref[...]
    out = _layernorm(h2_f32 + proj, g_ref[...], beta_ref[...], eps)
    o_ref[...] = out.reshape(Bblk, S, H).astype(o_ref.dtype)


def cross_attn_block(h, image, p, bblk):
    B, S, H = h.shape
    Nimg = image.shape[1]
    return pl.pallas_call(
        functools.partial(_cross_attn_block_kernel, num_heads=NUM_HEADS, eps=LN_EPS),
        out_shape=jax.ShapeDtypeStruct((B, S, H), jnp.bfloat16),
        grid=(B // bblk,),
        in_specs=[
            pl.BlockSpec((bblk, S, H), lambda b: (b, 0, 0)),
            pl.BlockSpec((bblk, Nimg, H), lambda b: (b, 0, 0)),
            pl.BlockSpec((H, H), lambda b: (0, 0)),
            pl.BlockSpec((1, H), lambda b: (0, 0)),
            pl.BlockSpec((H, 2 * H), lambda b: (0, 0)),
            pl.BlockSpec((1, 2 * H), lambda b: (0, 0)),
            pl.BlockSpec((H, H), lambda b: (0, 0)),
            pl.BlockSpec((1, H), lambda b: (0, 0)),
            pl.BlockSpec((1, H), lambda b: (0, 0)),
            pl.BlockSpec((1, H), lambda b: (0, 0)),
        ],
        out_specs=pl.BlockSpec((bblk, S, H), lambda b: (b, 0, 0)),
        compiler_params=pltpu.CompilerParams(
            dimension_semantics=("parallel",), vmem_limit_bytes=VMEM_LIMIT
        ),
    )(
        h, image, p["wq"], p["bq"].reshape(1, H), p["wkv"], p["bkv"].reshape(1, 2 * H),
        p["wo"], p["bo"].reshape(1, H), p["ln_g"].reshape(1, H), p["ln_b"].reshape(1, H),
    )


def _ffn_block_kernel(h_ref, w1_ref, b1_ref, w2_ref, b2_ref, g_ref, beta_ref, o_ref, *, eps):
    # Fused: W1 + bias + GELU + W2 + bias + residual + LayerNorm.
    Bblk, S, H = h_ref.shape
    h2_bf = h_ref[...].reshape(Bblk * S, H)
    h2_f32 = h2_bf.astype(jnp.float32)
    y = jnp.dot(h2_bf, w1_ref[...],
                preferred_element_type=jnp.float32) + b1_ref[...]
    y = jax.nn.gelu(y)  # TODO(synk): tanh approx; PyTorch default is exact erf
    z = jnp.dot(y.astype(jnp.bfloat16), w2_ref[...],
                preferred_element_type=jnp.float32) + b2_ref[...]
    out = _layernorm(h2_f32 + z, g_ref[...], beta_ref[...], eps)
    o_ref[...] = out.reshape(Bblk, S, H).astype(o_ref.dtype)


def ffn_block(h, p, bblk):
    B, S, H = h.shape
    I = p["w1"].shape[1]
    return pl.pallas_call(
        functools.partial(_ffn_block_kernel, eps=LN_EPS),
        out_shape=jax.ShapeDtypeStruct((B, S, H), jnp.bfloat16),
        grid=(B // bblk,),
        in_specs=[
            pl.BlockSpec((bblk, S, H), lambda b: (b, 0, 0)),
            pl.BlockSpec((H, I), lambda b: (0, 0)),
            pl.BlockSpec((1, I), lambda b: (0, 0)),
            pl.BlockSpec((I, H), lambda b: (0, 0)),
            pl.BlockSpec((1, H), lambda b: (0, 0)),
            pl.BlockSpec((1, H), lambda b: (0, 0)),
            pl.BlockSpec((1, H), lambda b: (0, 0)),
        ],
        out_specs=pl.BlockSpec((bblk, S, H), lambda b: (b, 0, 0)),
        compiler_params=pltpu.CompilerParams(
            dimension_semantics=("parallel",), vmem_limit_bytes=VMEM_LIMIT
        ),
    )(
        h, p["w1"], p["b1"].reshape(1, I), p["w2"], p["b2"].reshape(1, H),
        p["ln_g"].reshape(1, H), p["ln_b"].reshape(1, H),
    )


# ------------------------------------------------------------------
# Model glue (embedding gather / reshapes are plain JAX)
# ------------------------------------------------------------------
def _batch_block(B, S, target_rows=256):
    bblk = max(1, min(B, target_rows // max(S, 1)))
    while bblk > 1 and B % bblk:
        bblk -= 1
    return bblk


def caption_generator_forward(params, image_feature, input_ids, attention_mask, cfg):
    B, S = input_ids.shape
    H = cfg["hidden_size"]
    V = cfg["vocab_size"]
    Nimg, F = image_feature.shape[1], image_feature.shape[2]
    dec = params["decoder"]
    bblk = _batch_block(B, S)

    # self.resize : Linear(image_feature_size -> hidden_size); memory stored bf16
    image = linear(
        image_feature.reshape(B * Nimg, F), params["resize"]["w"], params["resize"]["b"],
        out_dtype=jnp.bfloat16,
    ).reshape(B, Nimg, H)

    # embeddings (gather is glue) + fused add + LayerNorm -> bf16 residual stream
    tok = dec["tok_emb"][input_ids]          # [B, S, H]
    pos = dec["pos_emb"][:S]                 # [S, H]
    h = embed_layernorm(tok, pos, dec["emb_ln_g"], dec["emb_ln_b"], bblk)

    # padding mask as a tiny [B, 1, S] f32 input; causal mask built in-kernel
    mask_f = attention_mask.astype(jnp.float32).reshape(B, 1, S)

    for layer in dec["layers"]:
        h = self_attn_block(h, mask_f, layer["self"], bblk)
        h = cross_attn_block(h, image, layer["cross"], bblk)
        h = ffn_block(h, layer["ffn"], bblk)

    # self.output_fc : Linear(hidden_size -> vocab_size), weight streamed once
    logits = linear(
        h.reshape(B * S, H), params["output_fc"]["w"], params["output_fc"]["b"],
        out_dtype=jnp.float32,
    ).reshape(B, S, V)
    return logits


# ------------------------------------------------------------------
# Deterministic parameter init (matmul weights stored bf16, 1/sqrt(d) folded
# into the Q projections; biases / LN params / embeddings in f32)
# ------------------------------------------------------------------
def _dense(key, fan_in, fan_out, scale=0.02):
    w = jax.random.normal(key, (fan_in, fan_out), jnp.float32) * scale
    b = jnp.zeros((fan_out,), jnp.float32)
    return w, b


def init_params(key, cfg):
    H, I, V = cfg["hidden_size"], cfg["intermediate_size"], cfg["vocab_size"]
    F, P, L = cfg["image_feature_size"], cfg["max_position_embeddings"], cfg["num_layers"]
    d = H // NUM_HEADS
    qscale = 1.0 / math.sqrt(d)
    keys = iter(jax.random.split(key, 4 + 10 * L))
    ones_h = jnp.ones((H,), jnp.float32)
    zeros_h = jnp.zeros((H,), jnp.float32)

    layers = []
    for _ in range(L):
        wq, bq = _dense(next(keys), H, H)
        wk, bk = _dense(next(keys), H, H)
        wv, bv = _dense(next(keys), H, H)
        wo, bo = _dense(next(keys), H, H)
        self_p = {
            "wqkv": jnp.concatenate([wq * qscale, wk, wv], axis=1).astype(jnp.bfloat16),
            "bqkv": jnp.concatenate([bq * qscale, bk, bv], axis=0),
            "wo": wo.astype(jnp.bfloat16), "bo": bo,
            "ln_g": ones_h, "ln_b": zeros_h,
        }
        cwq, cbq = _dense(next(keys), H, H)
        cwk, cbk = _dense(next(keys), H, H)
        cwv, cbv = _dense(next(keys), H, H)
        cwo, cbo = _dense(next(keys), H, H)
        cross_p = {
            "wq": (cwq * qscale).astype(jnp.bfloat16), "bq": cbq * qscale,
            "wkv": jnp.concatenate([cwk, cwv], axis=1).astype(jnp.bfloat16),
            "bkv": jnp.concatenate([cbk, cbv], axis=0),
            "wo": cwo.astype(jnp.bfloat16), "bo": cbo,
            "ln_g": ones_h, "ln_b": zeros_h,
        }
        w1, b1 = _dense(next(keys), H, I)
        w2, b2 = _dense(next(keys), I, H)
        ffn_p = {
            "w1": w1.astype(jnp.bfloat16), "b1": b1,
            "w2": w2.astype(jnp.bfloat16), "b2": b2,
            "ln_g": ones_h, "ln_b": zeros_h,
        }
        layers.append({"self": self_p, "cross": cross_p, "ffn": ffn_p})

    rw, rb = _dense(next(keys), F, H)
    ow, ob = _dense(next(keys), H, V)
    return {
        "resize": {"w": rw.astype(jnp.bfloat16), "b": rb},
        "output_fc": {"w": ow.astype(jnp.bfloat16), "b": ob},
        "decoder": {
            "tok_emb": jax.random.normal(next(keys), (V, H), jnp.float32) * 0.02,
            "pos_emb": jax.random.normal(next(keys), (P, H), jnp.float32) * 0.02,
            "emb_ln_g": ones_h,
            "emb_ln_b": zeros_h,
            "layers": layers,
        },
    }


# ------------------------------------------------------------------
if __name__ == "__main__":
    cfg = dict(
        max_position_embeddings=16,
        vocab_size=50,
        num_layers=2,
        hidden_size=32,
        intermediate_size=64,
        image_feature_size=48,
    )
    B, S, N_IMG = 2, 8, 4

    key = jax.random.PRNGKey(0)
    k_param, k_img, k_ids = jax.random.split(key, 3)

    params = init_params(k_param, cfg)
    image_feature = jax.random.normal(k_img, (B, N_IMG, cfg["image_feature_size"]), jnp.float32)
    input_ids = jax.random.randint(k_ids, (B, S), 0, cfg["vocab_size"], jnp.int32)
    attention_mask = jnp.array([[1, 1, 1, 1, 1, 1, 0, 0],
                                [1, 1, 1, 1, 1, 1, 1, 1]], jnp.int32)

    fwd = jax.jit(lambda p, img, ids, m: caption_generator_forward(p, img, ids, m, cfg))
    logits = fwd(params, image_feature, input_ids, attention_mask)
    jax.block_until_ready(logits)

    assert logits.shape == (B, S, cfg["vocab_size"]), logits.shape
    assert jnp.all(jnp.isfinite(logits))
    print("KERNEL_OK")
</pallas_src>

<mosaic_0001>
module attributes {stable_mosaic.version = 11 : i64} {
  func.func @_embed_ln_kernel(%arg0: i32, %arg1: memref<2x8x32xf32, #tpu.memory_space<vmem>>, %arg2: memref<8x32xf32, #tpu.memory_space<vmem>>, %arg3: memref<1x32xf32, #tpu.memory_space<vmem>>, %arg4: memref<1x32xf32, #tpu.memory_space<vmem>>, %arg5: memref<2x8x32xbf16, #tpu.memory_space<vmem>>) attributes {dimension_semantics = [#tpu.dimension_semantics<parallel>], iteration_bounds = array<i64: 1>, scalar_prefetch = 0 : i64, scratch_operands = 0 : i64, tpu.core_type = #tpu.core_type<tc>, window_params = [{transform_indices = @transform_0, window_bounds = array<i64: 2, 8, 32>}, {pipeline_mode = #tpu.pipeline_mode<synchronous>, transform_indices = @transform_1, window_bounds = array<i64: 8, 32>}, {pipeline_mode = #tpu.pipeline_mode<synchronous>, transform_indices = @transform_2, window_bounds = array<i64: 1, 32>}, {pipeline_mode = #tpu.pipeline_mode<synchronous>, transform_indices = @transform_3, window_bounds = array<i64: 1, 32>}, {transform_indices = @transform_4, window_bounds = array<i64: 2, 8, 32>}]} {
    %c0 = arith.constant 0 : index
    %c0_0 = arith.constant 0 : index
    %c0_1 = arith.constant 0 : index
    %0 = vector.load %arg1[%c0, %c0_0, %c0_1] : memref<2x8x32xf32, #tpu.memory_space<vmem>>, vector<2x8x32xf32>
    %c0_2 = arith.constant 0 : index
    %c0_3 = arith.constant 0 : index
    %1 = vector.load %arg2[%c0_2, %c0_3] : memref<8x32xf32, #tpu.memory_space<vmem>>, vector<8x32xf32>
    %2 = vector.shape_cast %1 : vector<8x32xf32> to vector<1x8x32xf32>
    %3 = vector.broadcast %2 : vector<1x8x32xf32> to vector<2x8x32xf32>
    %4 = arith.addf %0, %3 : vector<2x8x32xf32>
    %c0_4 = arith.constant 0 : index
    %c0_5 = arith.constant 0 : index
    %5 = vector.load %arg3[%c0_4, %c0_5] : memref<1x32xf32, #tpu.memory_space<vmem>>, vector<1x32xf32>
    %c0_6 = arith.constant 0 : index
    %c0_7 = arith.constant 0 : index
    %6 = vector.load %arg4[%c0_6, %c0_7] : memref<1x32xf32, #tpu.memory_space<vmem>>, vector<1x32xf32>
    %cst = arith.constant dense<0.000000e+00> : vector<2x8xf32>
    %7 = vector.multi_reduction <add>, %4, %cst [2] : vector<2x8x32xf32> to vector<2x8xf32>
    %8 = vector.shape_cast %7 : vector<2x8xf32> to vector<2x8x1xf32>
    %cst_8 = arith.constant 3.200000e+01 : f32
    %9 = vector.broadcast %cst_8 : f32 to vector<2x8x1xf32>
    %10 = arith.divf %8, %9 : vector<2x8x1xf32>
    %11 = vector.broadcast %10 : vector<2x8x1xf32> to vector<2x8x32xf32>
    %12 = arith.subf %4, %11 : vector<2x8x32xf32>
    %13 = vector.broadcast %10 : vector<2x8x1xf32> to vector<2x8x32xf32>
    %14 = arith.subf %4, %13 : vector<2x8x32xf32>
    %15 = arith.mulf %12, %14 : vector<2x8x32xf32>
    %cst_9 = arith.constant dense<0.000000e+00> : vector<2x8xf32>
    %16 = vector.multi_reduction <add>, %15, %cst_9 [2] : vector<2x8x32xf32> to vector<2x8xf32>
    %17 = vector.shape_cast %16 : vector<2x8xf32> to vector<2x8x1xf32>
    %cst_10 = arith.constant 3.200000e+01 : f32
    %18 = vector.broadcast %cst_10 : f32 to vector<2x8x1xf32>
    %19 = arith.divf %17, %18 : vector<2x8x1xf32>
    %20 = vector.broadcast %10 : vector<2x8x1xf32> to vector<2x8x32xf32>
    %21 = arith.subf %4, %20 : vector<2x8x32xf32>
    %cst_11 = arith.constant 9.99999974E-6 : f32
    %22 = vector.broadcast %cst_11 : f32 to vector<2x8x1xf32>
    %23 = arith.addf %19, %22 : vector<2x8x1xf32>
    %24 = math.rsqrt %23 : vector<2x8x1xf32>
    %25 = vector.broadcast %24 : vector<2x8x1xf32> to vector<2x8x32xf32>
    %26 = arith.mulf %21, %25 : vector<2x8x32xf32>
    %27 = vector.shape_cast %5 : vector<1x32xf32> to vector<1x1x32xf32>
    %28 = vector.broadcast %27 : vector<1x1x32xf32> to vector<2x8x32xf32>
    %29 = arith.mulf %26, %28 : vector<2x8x32xf32>
    %30 = vector.shape_cast %6 : vector<1x32xf32> to vector<1x1x32xf32>
    %31 = vector.broadcast %30 : vector<1x1x32xf32> to vector<2x8x32xf32>
    %32 = arith.addf %29, %31 : vector<2x8x32xf32>
    %33 = arith.truncf %32 : vector<2x8x32xf32> to vector<2x8x32xbf16>
    %c0_12 = arith.constant 0 : index
    %c0_13 = arith.constant 0 : index
    %c0_14 = arith.constant 0 : index
    %34 = vector.load %arg5[%c0_12, %c0_13, %c0_14] : memref<2x8x32xbf16, #tpu.memory_space<vmem>>, vector<2x8x32xbf16>
    tpu.vector_store %arg5[%c0_12, %c0_13, %c0_14], %33 {strides = array<i32>} : memref<2x8x32xbf16, #tpu.memory_space<vmem>>, vector<2x8x32xbf16>,
    return
  }
  func.func @transform_0(%arg0: i32) -> (i32, i32, i32) {
    %c0_i32 = arith.constant 0 : i32
    %c0_i32_0 = arith.constant 0 : i32
    %c0_i32_1 = arith.constant 0 : i32
    return %arg0, %c0_i32, %c0_i32_0 : i32, i32, i32
  }
  func.func @transform_1(%arg0: i32) -> (i32, i32) {
    %c0_i32 = arith.constant 0 : i32
    %c0_i32_0 = arith.constant 0 : i32
    %c0_i32_1 = arith.constant 0 : i32
    return %c0_i32, %c0_i32_0 : i32, i32
  }
  func.func @transform_2(%arg0: i32) -> (i32, i32) {
    %c0_i32 = arith.constant 0 : i32
    %c0_i32_0 = arith.constant 0 : i32
    %c0_i32_1 = arith.constant 0 : i32
    return %c0_i32, %c0_i32_0 : i32, i32
  }
  func.func @transform_3(%arg0: i32) -> (i32, i32) {
    %c0_i32 = arith.constant 0 : i32
    %c0_i32_0 = arith.constant 0 : i32
    %c0_i32_1 = arith.constant 0 : i32
    return %c0_i32, %c0_i32_0 : i32, i32
  }
  func.func @transform_4(%arg0: i32) -> (i32, i32, i32) {
    %c0_i32 = arith.constant 0 : i32
    %c0_i32_0 = arith.constant 0 : i32
    %c0_i32_1 = arith.constant 0 : i32
    return %arg0, %c0_i32, %c0_i32_0 : i32, i32, i32
  }
}

module attributes {stable_mosaic.version = 11 : i64} {
  func.func @_self_attn_block_kernel(%arg0: i32, %arg1: memref<2x1x8xf32, #tpu.memory_space<vmem>>, %arg2: memref<2x8x32xbf16, #tpu.memory_space<vmem>>, %arg3: memref<32x96xbf16, #tpu.memory_space<vmem>>, %arg4: memref<1x96xf32, #tpu.memory_space<vmem>>, %arg5: memref<32x32xbf16, #tpu.memory_space<vmem>>, %arg6: memref<1x32xf32, #tpu.memory_space<vmem>>, %arg7: memref<1x32xf32, #tpu.memory_space<vmem>>, %arg8: memref<1x32xf32, #tpu.memory_space<vmem>>, %arg9: memref<2x8x32xbf16, #tpu.memory_space<vmem>>) attributes {dimension_semantics = [#tpu.dimension_semantics<parallel>], iteration_bounds = array<i64: 1>, scalar_prefetch = 0 : i64, scratch_operands = 0 : i64, tpu.core_type = #tpu.core_type<tc>, window_params = [{transform_indices = @transform_0, window_bounds = array<i64: 2, 1, 8>}, {transform_indices = @transform_1, window_bounds = array<i64: 2, 8, 32>}, {pipeline_mode = #tpu.pipeline_mode<synchronous>, transform_indices = @transform_2, window_bounds = array<i64: 32, 96>}, {pipeline_mode = #tpu.pipeline_mode<synchronous>, transform_indices = @transform_3, window_bounds = array<i64: 1, 96>}, {pipeline_mode = #tpu.pipeline_mode<synchronous>, transform_indices = @transform_4, window_bounds = array<i64: 32, 32>}, {pipeline_mode = #tpu.pipeline_mode<synchronous>, transform_indices = @transform_5, window_bounds = array<i64: 1, 32>}, {pipeline_mode = #tpu.pipeline_mode<synchronous>, transform_indices = @transform_6, window_bounds = array<i64: 1, 32>}, {pipeline_mode = #tpu.pipeline_mode<synchronous>, transform_indices = @transform_7, window_bounds = array<i64: 1, 32>}, {transform_indices = @transform_8, window_bounds = array<i64: 2, 8, 32>}]} {
    %c0 = arith.constant 0 : index
    %c0_0 = arith.constant 0 : index
    %c0_1 = arith.constant 0 : index
    %0 = vector.load %arg2[%c0, %c0_0, %c0_1] : memref<2x8x32xbf16, #tpu.memory_space<vmem>>, vector<2x8x32xbf16>
    %1 = vector.shape_cast %0 : vector<2x8x32xbf16> to vector<16x32xbf16>
    %2 = arith.extf %1 : vector<16x32xbf16> to vector<16x32xf32>
    %c0_2 = arith.constant 0 : index
    %c0_3 = arith.constant 0 : index
    %c0_4 = arith.constant 0 : index
    %3 = vector.load %arg1[%c0_2, %c0_3, %c0_4] : memref<2x1x8xf32, #tpu.memory_space<vmem>>, vector<2x1x8xf32>
    %c0_5 = arith.constant 0 : index
    %c0_6 = arith.constant 0 : index
    %4 = vector.load %arg3[%c0_5, %c0_6] : memref<32x96xbf16, #tpu.memory_space<vmem>>, vector<32x96xbf16>
    %cst = arith.constant dense<0.000000e+00> : vector<16x96xf32>
    %5 = tpu.matmul %1, %4, %cst {dimension_numbers = #tpu.dot_dimension_numbers<[1], [0], [0], [1], [0, 0, 1, 1], [], []>} : vector<16x32xbf16>, vector<32x96xbf16>, vector<16x96xf32> -> vector<16x96xf32>
    %c0_7 = arith.constant 0 : index
    %c0_8 = arith.constant 0 : index
    %6 = vector.load %arg4[%c0_7, %c0_8] : memref<1x96xf32, #tpu.memory_space<vmem>>, vector<1x96xf32>
    %7 = vector.broadcast %6 : vector<1x96xf32> to vector<16x96xf32>
    %8 = arith.addf %5, %7 : vector<16x96xf32>
    %9 = tpu.iota {dimensions = array<i32: 0>} : vector<8x8xi32>
    %10 = tpu.iota {dimensions = array<i32: 1>} : vector<8x8xi32>
    %11 = arith.cmpi sle, %10, %9 : vector<8x8xi32>
    %12 = vector.extract_strided_slice %8 {offsets = [0, 0], sizes = [8, 32], strides = [1, 1]} : vector<16x96xf32> to vector<8x32xf32>
    %13 = vector.extract_strided_slice %8 {offsets = [0, 32], sizes = [8, 32], strides = [1, 1]} : vector<16x96xf32> to vector<8x32xf32>
    %14 = vector.extract_strided_slice %8 {offsets = [0, 64], sizes = [8, 32], strides = [1, 1]} : vector<16x96xf32> to vector<8x32xf32>
    %15 = vector.extract_strided_slice %3 {offsets = [0, 0, 0], sizes = [1, 1, 8], strides = [1, 1, 1]} : vector<2x1x8xf32> to vector<1x1x8xf32>
    %16 = vector.shape_cast %15 : vector<1x1x8xf32> to vector<1x8xf32>
    %cst_9 = arith.constant 5.000000e-01 : f32
    %17 = vector.broadcast %cst_9 : f32 to vector<1x8xf32>
    %18 = arith.cmpf ogt, %16, %17 : vector<1x8xf32>
    %19 = vector.broadcast %18 : vector<1x8xi1> to vector<8x8xi1>
    %20 = arith.andi %11, %19 : vector<8x8xi1>
    %cst_10 = arith.constant 0.000000e+00 : f32
    %cst_11 = arith.constant -1.000000e+09 : f32
    %21 = vector.broadcast %cst_10 : f32 to vector<8x8xf32>
    %22 = vector.broadcast %cst_11 : f32 to vector<8x8xf32>
    %23 = arith.select %20, %21, %22 : vector<8x8xi1>, vector<8x8xf32>
    %24 = vector.shape_cast %12 : vector<8x32xf32> to vector<8x4x8xf32>
    %25 = tpu.transpose %24, [1, 0, 2] : vector<8x4x8xf32> -> vector<4x8x8xf32>
    %26 = arith.truncf %25 : vector<4x8x8xf32> to vector<4x8x8xbf16>
    %27 = vector.shape_cast %13 : vector<8x32xf32> to vector<8x4x8xf32>
    %28 = tpu.transpose %27, [1, 0, 2] : vector<8x4x8xf32> -> vector<4x8x8xf32>
    %29 = arith.truncf %28 : vector<4x8x8xf32> to vector<4x8x8xbf16>
    %30 = vector.shape_cast %14 : vector<8x32xf32> to vector<8x4x8xf32>
    %31 = tpu.transpose %30, [1, 0, 2] : vector<8x4x8xf32> -> vector<4x8x8xf32>
    %32 = arith.truncf %31 : vector<4x8x8xf32> to vector<4x8x8xbf16>
    "tpu.trace_start"() <{level = 10 : i32, message = "nqd,nkd->nqk"}> : () -> ()
    %cst_12 = arith.constant dense<0.000000e+00> : vector<4x8x8xf32>
    %33 = tpu.matmul %26, %29, %cst_12 {dimension_numbers = #tpu.dot_dimension_numbers<[2], [2], [1], [1], [0, 0, 0, 1, 1, 1], [0], [0]>} : vector<4x8x8xbf16>, vector<4x8x8xbf16>, vector<4x8x8xf32> -> vector<4x8x8xf32>
    "tpu.trace_stop"() : () -> ()
    %34 = vector.shape_cast %23 : vector<8x8xf32> to vector<1x8x8xf32>
    %35 = vector.broadcast %34 : vector<1x8x8xf32> to vector<4x8x8xf32>
    %36 = arith.addf %33, %35 : vector<4x8x8xf32>
    %cst_13 = arith.constant dense<0xFF800000> : vector<4x8xf32>
    %37 = vector.multi_reduction <maximumf>, %36, %cst_13 [2] : vector<4x8x8xf32> to vector<4x8xf32>
    %38 = vector.shape_cast %37 : vector<4x8xf32> to vector<4x8x1xf32>
    %39 = vector.broadcast %38 : vector<4x8x1xf32> to vector<4x8x8xf32>
    %40 = arith.subf %36, %39 : vector<4x8x8xf32>
    %41 = math.exp %40 : vector<4x8x8xf32>
    %cst_14 = arith.constant dense<0.000000e+00> : vector<4x8xf32>
    %42 = vector.multi_reduction <add>, %41, %cst_14 [2] : vector<4x8x8xf32> to vector<4x8xf32>
    %43 = vector.shape_cast %42 : vector<4x8xf32> to vector<4x8x1xf32>
    %44 = tpu.reciprocal %43 {approx = true} : vector<4x8x1xf32> -> vector<4x8x1xf32>
    %45 = vector.broadcast %44 : vector<4x8x1xf32> to vector<4x8x8xf32>
    %46 = arith.mulf %41, %45 : vector<4x8x8xf32>
    %47 = arith.truncf %46 : vector<4x8x8xf32> to vector<4x8x8xbf16>
    "tpu.trace_start"() <{level = 10 : i32, message = "nqk,nkd->nqd"}> : () -> ()
    %cst_15 = arith.constant dense<0.000000e+00> : vector<4x8x8xf32>
    %48 = tpu.matmul %47, %32, %cst_15 {dimension_numbers = #tpu.dot_dimension_numbers<[2], [1], [1], [2], [0, 0, 0, 1, 1, 2], [0], [0]>} : vector<4x8x8xbf16>, vector<4x8x8xbf16>, vector<4x8x8xf32> -> vector<4x8x8xf32>
    "tpu.trace_stop"() : () -> ()
    %49 = tpu.transpose %48, [1, 0, 2] : vector<4x8x8xf32> -> vector<8x4x8xf32>
    %50 = vector.shape_cast %49 : vector<8x4x8xf32> to vector<8x32xf32>
    %51 = vector.extract_strided_slice %8 {offsets = [8, 0], sizes = [8, 32], strides = [1, 1]} : vector<16x96xf32> to vector<8x32xf32>
    %52 = vector.extract_strided_slice %8 {offsets = [8, 32], sizes = [8, 32], strides = [1, 1]} : vector<16x96xf32> to vector<8x32xf32>
    %53 = vector.extract_strided_slice %8 {offsets = [8, 64], sizes = [8, 32], strides = [1, 1]} : vector<16x96xf32> to vector<8x32xf32>
    %54 = vector.extract_strided_slice %3 {offsets = [1, 0, 0], sizes = [1, 1, 8], strides = [1, 1, 1]} : vector<2x1x8xf32> to vector<1x1x8xf32>
    %55 = vector.shape_cast %54 : vector<1x1x8xf32> to vector<1x8xf32>
    %cst_16 = arith.constant 5.000000e-01 : f32
    %56 = vector.broadcast %cst_16 : f32 to vector<1x8xf32>
    %57 = arith.cmpf ogt, %55, %56 : vector<1x8xf32>
    %58 = vector.broadcast %57 : vector<1x8xi1> to vector<8x8xi1>
    %59 = arith.andi %11, %58 : vector<8x8xi1>
    %cst_17 = arith.constant 0.000000e+00 : f32
    %cst_18 = arith.constant -1.000000e+09 : f32
    %60 = vector.broadcast %cst_17 : f32 to vector<8x8xf32>
    %61 = vector.broadcast %cst_18 : f32 to vector<8x8xf32>
    %62 = arith.select %59, %60, %61 : vector<8x8xi1>, vector<8x8xf32>
    %63 = vector.shape_cast %51 : vector<8x32xf32> to vector<8x4x8xf32>
    %64 = tpu.transpose %63, [1, 0, 2] : vector<8x4x8xf32> -> vector<4x8x8xf32>
    %65 = arith.truncf %64 : vector<4x8x8xf32> to vector<4x8x8xbf16>
    %66 = vector.shape_cast %52 : vector<8x32xf32> to vector<8x4x8xf32>
    %67 = tpu.transpose %66, [1, 0, 2] : vector<8x4x8xf32> -> vector<4x8x8xf32>
    %68 = arith.truncf %67 : vector<4x8x8xf32> to vector<4x8x8xbf16>
    %69 = vector.shape_cast %53 : vector<8x32xf32> to vector<8x4x8xf32>
    %70 = tpu.transpose %69, [1, 0, 2] : vector<8x4x8xf32> -> vector<4x8x8xf32>
    %71 = arith.truncf %70 : vector<4x8x8xf32> to vector<4x8x8xbf16>
    "tpu.trace_start"() <{level = 10 : i32, message = "nqd,nkd->nqk"}> : () -> ()
    %cst_19 = arith.constant dense<0.000000e+00> : vector<4x8x8xf32>
    %72 = tpu.matmul %65, %68, %cst_19 {dimension_numbers = #tpu.dot_dimension_numbers<[2], [2], [1], [1], [0, 0, 0, 1, 1, 1], [0], [0]>} : vector<4x8x8xbf16>, vector<4x8x8xbf16>, vector<4x8x8xf32> -> vector<4x8x8xf32>
    "tpu.trace_stop"() : () -> ()
    %73 = vector.shape_cast %62 : vector<8x8xf32> to vector<1x8x8xf32>
    %74 = vector.broadcast %73 : vector<1x8x8xf32> to vector<4x8x8xf32>
    %75 = arith.addf %72, %74 : vector<4x8x8xf32>
    %cst_20 = arith.constant dense<0xFF800000> : vector<4x8xf32>
    %76 = vector.multi_reduction <maximumf>, %75, %cst_20 [2] : vector<4x8x8xf32> to vector<4x8xf32>
    %77 = vector.shape_cast %76 : vector<4x8xf32> to vector<4x8x1xf32>
    %78 = vector.broadcast %77 : vector<4x8x1xf32> to vector<4x8x8xf32>
    %79 = arith.subf %75, %78 : vector<4x8x8xf32>
    %80 = math.exp %79 : vector<4x8x8xf32>
    %cst_21 = arith.constant dense<0.000000e+00> : vector<4x8xf32>
    %81 = vector.multi_reduction <add>, %80, %cst_21 [2] : vector<4x8x8xf32> to vector<4x8xf32>
    %82 = vector.shape_cast %81 : vector<4x8xf32> to vector<4x8x1xf32>
    %83 = tpu.reciprocal %82 {approx = true} : vector<4x8x1xf32> -> vector<4x8x1xf32>
    %84 = vector.broadcast %83 : vector<4x8x1xf32> to vector<4x8x8xf32>
    %85 = arith.mulf %80, %84 : vector<4x8x8xf32>
    %86 = arith.truncf %85 : vector<4x8x8xf32> to vector<4x8x8xbf16>
    "tpu.trace_start"() <{level = 10 : i32, message = "nqk,nkd->nqd"}> : () -> ()
    %cst_22 = arith.constant dense<0.000000e+00> : vector<4x8x8xf32>
    %87 = tpu.matmul %86, %71, %cst_22 {dimension_numbers = #tpu.dot_dimension_numbers<[2], [1], [1], [2], [0, 0, 0, 1, 1, 2], [0], [0]>} : vector<4x8x8xbf16>, vector<4x8x8xbf16>, vector<4x8x8xf32> -> vector<4x8x8xf32>
    "tpu.trace_stop"() : () -> ()
    %88 = tpu.transpose %87, [1, 0, 2] : vector<4x8x8xf32> -> vector<8x4x8xf32>
    %89 = vector.shape_cast %88 : vector<8x4x8xf32> to vector<8x32xf32>
    %90 = tpu.concatenate %50, %89 in 0 : vector<8x32xf32>, vector<8x32xf32> -> vector<16x32xf32>
    %91 = arith.truncf %90 : vector<16x32xf32> to vector<16x32xbf16>
    %c0_23 = arith.constant 0 : index
    %c0_24 = arith.constant 0 : index
    %92 = vector.load %arg5[%c0_23, %c0_24] : memref<32x32xbf16, #tpu.memory_space<vmem>>, vector<32x32xbf16>
    %cst_25 = arith.constant dense<0.000000e+00> : vector<16x32xf32>
    %93 = tpu.matmul %91, %92, %cst_25 {dimension_numbers = #tpu.dot_dimension_numbers<[1], [0], [0], [1], [0, 0, 1, 1], [], []>} : vector<16x32xbf16>, vector<32x32xbf16>, vector<16x32xf32> -> vector<16x32xf32>
    %c0_26 = arith.constant 0 : index
    %c0_27 = arith.constant 0 : index
    %94 = vector.load %arg6[%c0_26, %c0_27] : memref<1x32xf32, #tpu.memory_space<vmem>>, vector<1x32xf32>
    %95 = vector.broadcast %94 : vector<1x32xf32> to vector<16x32xf32>
    %96 = arith.addf %93, %95 : vector<16x32xf32>
    %97 = arith.addf %2, %96 : vector<16x32xf32>
    %c0_28 = arith.constant 0 : index
    %c0_29 = arith.constant 0 : index
    %98 = vector.load %arg7[%c0_28, %c0_29] : memref<1x32xf32, #tpu.memory_space<vmem>>, vector<1x32xf32>
    %c0_30 = arith.constant 0 : index
    %c0_31 = arith.constant 0 : index
    %99 = vector.load %arg8[%c0_30, %c0_31] : memref<1x32xf32, #tpu.memory_space<vmem>>, vector<1x32xf32>
    %cst_32 = arith.constant dense<0.000000e+00> : vector<16xf32>
    %100 = vector.multi_reduction <add>, %97, %cst_32 [1] : vector<16x32xf32> to vector<16xf32>
    %101 = vector.shape_cast %100 : vector<16xf32> to vector<16x1xf32>
    %cst_33 = arith.constant 3.200000e+01 : f32
    %102 = vector.broadcast %cst_33 : f32 to vector<16x1xf32>
    %103 = arith.divf %101, %102 : vector<16x1xf32>
    %104 = vector.broadcast %103 : vector<16x1xf32> to vector<16x32xf32>
    %105 = arith.subf %97, %104 : vector<16x32xf32>
    %106 = vector.broadcast %103 : vector<16x1xf32> to vector<16x32xf32>
    %107 = arith.subf %97, %106 : vector<16x32xf32>
    %108 = arith.mulf %105, %107 : vector<16x32xf32>
    %cst_34 = arith.constant dense<0.000000e+00> : vector<16xf32>
    %109 = vector.multi_reduction <add>, %108, %cst_34 [1] : vector<16x32xf32> to vector<16xf32>
    %110 = vector.shape_cast %109 : vector<16xf32> to vector<16x1xf32>
    %cst_35 = arith.constant 3.200000e+01 : f32
    %111 = vector.broadcast %cst_35 : f32 to vector<16x1xf32>
    %112 = arith.divf %110, %111 : vector<16x1xf32>
    %113 = vector.broadcast %103 : vector<16x1xf32> to vector<16x32xf32>
    %114 = arith.subf %97, %113 : vector<16x32xf32>
    %cst_36 = arith.constant 9.99999974E-6 : f32
    %115 = vector.broadcast %cst_36 : f32 to vector<16x1xf32>
    %116 = arith.addf %112, %115 : vector<16x1xf32>
    %117 = math.rsqrt %116 : vector<16x1xf32>
    %118 = vector.broadcast %117 : vector<16x1xf32> to vector<16x32xf32>
    %119 = arith.mulf %114, %118 : vector<16x32xf32>
    %120 = vector.broadcast %98 : vector<1x32xf32> to vector<16x32xf32>
    %121 = arith.mulf %119, %120 : vector<16x32xf32>
    %122 = vector.broadcast %99 : vector<1x32xf32> to vector<16x32xf32>
    %123 = arith.addf %121, %122 : vector<16x32xf32>
    %124 = vector.shape_cast %123 : vector<16x32xf32> to vector<2x8x32xf32>
    %125 = arith.truncf %124 : vector<2x8x32xf32> to vector<2x8x32xbf16>
    %c0_37 = arith.constant 0 : index
    %c0_38 = arith.constant 0 : index
    %c0_39 = arith.constant 0 : index
    %126 = vector.load %arg9[%c0_37, %c0_38, %c0_39] : memref<2x8x32xbf16, #tpu.memory_space<vmem>>, vector<2x8x32xbf16>
    tpu.vector_store %arg9[%c0_37, %c0_38, %c0_39], %125 {strides = array<i32>} : memref<2x8x32xbf16, #tpu.memory_space<vmem>>, vector<2x8x32xbf16>,
    return
  }
  func.func @transform_0(%arg0: i32) -> (i32, i32, i32) {
    %c0_i32 = arith.constant 0 : i32
    %c0_i32_0 = arith.constant 0 : i32
    %c0_i32_1 = arith.constant 0 : i32
    return %arg0, %c0_i32, %c0_i32_0 : i32, i32, i32
  }
  func.func @transform_1(%arg0: i32) -> (i32, i32, i32) {
    %c0_i32 = arith.constant 0 : i32
    %c0_i32_0 = arith.constant 0 : i32
    %c0_i32_1 = arith.constant 0 : i32
    return %arg0, %c0_i32, %c0_i32_0 : i32, i32, i32
  }
  func.func @transform_2(%arg0: i32) -> (i32, i32) {
    %c0_i32 = arith.constant 0 : i32
    %c0_i32_0 = arith.constant 0 : i32
    %c0_i32_1 = arith.constant 0 : i32
    return %c0_i32, %c0_i32_0 : i32, i32
  }
  func.func @transform_3(%arg0: i32) -> (i32, i32) {
    %c0_i32 = arith.constant 0 : i32
    %c0_i32_0 = arith.constant 0 : i32
    %c0_i32_1 = arith.constant 0 : i32
    return %c0_i32, %c0_i32_0 : i32, i32
  }
  func.func @transform_4(%arg0: i32) -> (i32, i32) {
    %c0_i32 = arith.constant 0 : i32
    %c0_i32_0 = arith.constant 0 : i32
    %c0_i32_1 = arith.constant 0 : i32
    return %c0_i32, %c0_i32_0 : i32, i32
  }
  func.func @transform_5(%arg0: i32) -> (i32, i32) {
    %c0_i32 = arith.constant 0 : i32
    %c0_i32_0 = arith.constant 0 : i32
    %c0_i32_1 = arith.constant 0 : i32
    return %c0_i32, %c0_i32_0 : i32, i32
  }
  func.func @transform_6(%arg0: i32) -> (i32, i32) {
    %c0_i32 = arith.constant 0 : i32
    %c0_i32_0 = arith.constant 0 : i32
    %c0_i32_1 = arith.constant 0 : i32
    return %c0_i32, %c0_i32_0 : i32, i32
  }
  func.func @transform_7(%arg0: i32) -> (i32, i32) {
    %c0_i32 = arith.constant 0 : i32
    %c0_i32_0 = arith.constant 0 : i32
    %c0_i32_1 = arith.constant 0 : i32
    return %c0_i32, %c0_i32_0 : i32, i32
  }
  func.func @transform_8(%arg0: i32) -> (i32, i32, i32) {
    %c0_i32 = arith.constant 0 : i32
    %c0_i32_0 = arith.constant 0 : i32
    %c0_i32_1 = arith.constant 0 : i32
    return %arg0, %c0_i32, %c0_i32_0 : i32, i32, i32
  }
}

module attributes {stable_mosaic.version = 11 : i64} {
  func.func @_linear_kernel(%arg0: i32, %arg1: i32, %arg2: memref<8x48xf32, #tpu.memory_space<vmem>>, %arg3: memref<48x32xbf16, #tpu.memory_space<vmem>>, %arg4: memref<1x32xf32, #tpu.memory_space<vmem>>, %arg5: memref<8x32xbf16, #tpu.memory_space<vmem>>) attributes {dimension_semantics = [#tpu.dimension_semantics<parallel>, #tpu.dimension_semantics<parallel>], iteration_bounds = array<i64: 1, 1>, scalar_prefetch = 0 : i64, scratch_operands = 0 : i64, tpu.core_type = #tpu.core_type<tc>, window_params = [{transform_indices = @transform_0, window_bounds = array<i64: 8, 48>}, {transform_indices = @transform_1, window_bounds = array<i64: 48, 32>}, {transform_indices = @transform_2, window_bounds = array<i64: 1, 32>}, {transform_indices = @transform_3, window_bounds = array<i64: 8, 32>}]} {
    %c0 = arith.constant 0 : index
    %c0_0 = arith.constant 0 : index
    %0 = vector.load %arg2[%c0, %c0_0] : memref<8x48xf32, #tpu.memory_space<vmem>>, vector<8x48xf32>
    %1 = arith.truncf %0 : vector<8x48xf32> to vector<8x48xbf16>
    %c0_1 = arith.constant 0 : index
    %c0_2 = arith.constant 0 : index
    %2 = vector.load %arg3[%c0_1, %c0_2] : memref<48x32xbf16, #tpu.memory_space<vmem>>, vector<48x32xbf16>
    %cst = arith.constant dense<0.000000e+00> : vector<8x32xf32>
    %3 = tpu.matmul %1, %2, %cst {dimension_numbers = #tpu.dot_dimension_numbers<[1], [0], [0], [1], [0, 0, 1, 1], [], []>} : vector<8x48xbf16>, vector<48x32xbf16>, vector<8x32xf32> -> vector<8x32xf32>
    %c0_3 = arith.constant 0 : index
    %c0_4 = arith.constant 0 : index
    %4 = vector.load %arg4[%c0_3, %c0_4] : memref<1x32xf32, #tpu.memory_space<vmem>>, vector<1x32xf32>
    %5 = vector.broadcast %4 : vector<1x32xf32> to vector<8x32xf32>
    %6 = arith.addf %3, %5 : vector<8x32xf32>
    %7 = arith.truncf %6 : vector<8x32xf32> to vector<8x32xbf16>
    %c0_5 = arith.constant 0 : index
    %c0_6 = arith.constant 0 : index
    %8 = vector.load %arg5[%c0_5, %c0_6] : memref<8x32xbf16, #tpu.memory_space<vmem>>, vector<8x32xbf16>
    tpu.vector_store %arg5[%c0_5, %c0_6], %7 {strides = array<i32>} : memref<8x32xbf16, #tpu.memory_space<vmem>>, vector<8x32xbf16>,
    return
  }
  func.func @transform_0(%arg0: i32, %arg1: i32) -> (i32, i32) {
    %c0_i32 = arith.constant 0 : i32
    %c0_i32_0 = arith.constant 0 : i32
    return %arg1, %c0_i32 : i32, i32
  }
  func.func @transform_1(%arg0: i32, %arg1: i32) -> (i32, i32) {
    %c0_i32 = arith.constant 0 : i32
    %c0_i32_0 = arith.constant 0 : i32
    return %c0_i32, %arg0 : i32, i32
  }
  func.func @transform_2(%arg0: i32, %arg1: i32) -> (i32, i32) {
    %c0_i32 = arith.constant 0 : i32
    %c0_i32_0 = arith.constant 0 : i32
    return %c0_i32, %arg0 : i32, i32
  }
  func.func @transform_3(%arg0: i32, %arg1: i32) -> (i32, i32) {
    %c0_i32 = arith.constant 0 : i32
    return %arg1, %arg0 : i32, i32
  }
}

module attributes {stable_mosaic.version = 11 : i64} {
  func.func @_cross_attn_block_kernel(%arg0: i32, %arg1: memref<2x8x32xbf16, #tpu.memory_space<vmem>>, %arg2: memref<2x4x32xbf16, #tpu.memory_space<vmem>>, %arg3: memref<32x32xbf16, #tpu.memory_space<vmem>>, %arg4: memref<1x32xf32, #tpu.memory_space<vmem>>, %arg5: memref<32x64xbf16, #tpu.memory_space<vmem>>, %arg6: memref<1x64xf32, #tpu.memory_space<vmem>>, %arg7: memref<32x32xbf16, #tpu.memory_space<vmem>>, %arg8: memref<1x32xf32, #tpu.memory_space<vmem>>, %arg9: memref<1x32xf32, #tpu.memory_space<vmem>>, %arg10: memref<1x32xf32, #tpu.memory_space<vmem>>, %arg11: memref<2x8x32xbf16, #tpu.memory_space<vmem>>) attributes {dimension_semantics = [#tpu.dimension_semantics<parallel>], iteration_bounds = array<i64: 1>, scalar_prefetch = 0 : i64, scratch_operands = 0 : i64, tpu.core_type = #tpu.core_type<tc>, window_params = [{transform_indices = @transform_0, window_bounds = array<i64: 2, 8, 32>}, {transform_indices = @transform_1, window_bounds = array<i64: 2, 4, 32>}, {pipeline_mode = #tpu.pipeline_mode<synchronous>, transform_indices = @transform_2, window_bounds = array<i64: 32, 32>}, {pipeline_mode = #tpu.pipeline_mode<synchronous>, transform_indices = @transform_3, window_bounds = array<i64: 1, 32>}, {pipeline_mode = #tpu.pipeline_mode<synchronous>, transform_indices = @transform_4, window_bounds = array<i64: 32, 64>}, {pipeline_mode = #tpu.pipeline_mode<synchronous>, transform_indices = @transform_5, window_bounds = array<i64: 1, 64>}, {pipeline_mode = #tpu.pipeline_mode<synchronous>, transform_indices = @transform_6, window_bounds = array<i64: 32, 32>}, {pipeline_mode = #tpu.pipeline_mode<synchronous>, transform_indices = @transform_7, window_bounds = array<i64: 1, 32>}, {pipeline_mode = #tpu.pipeline_mode<synchronous>, transform_indices = @transform_8, window_bounds = array<i64: 1, 32>}, {pipeline_mode = #tpu.pipeline_mode<synchronous>, transform_indices = @transform_9, window_bounds = array<i64: 1, 32>}, {transform_indices = @transform_10, window_bounds = array<i64: 2, 8, 32>}]} {
    %c0 = arith.constant 0 : index
    %c0_0 = arith.constant 0 : index
    %c0_1 = arith.constant 0 : index
    %0 = vector.load %arg1[%c0, %c0_0, %c0_1] : memref<2x8x32xbf16, #tpu.memory_space<vmem>>, vector<2x8x32xbf16>
    %1 = vector.shape_cast %0 : vector<2x8x32xbf16> to vector<16x32xbf16>
    %2 = arith.extf %1 : vector<16x32xbf16> to vector<16x32xf32>
    %c0_2 = arith.constant 0 : index
    %c0_3 = arith.constant 0 : index
    %c0_4 = arith.constant 0 : index
    %3 = vector.load %arg2[%c0_2, %c0_3, %c0_4] : memref<2x4x32xbf16, #tpu.memory_space<vmem>>, vector<2x4x32xbf16>
    %4 = vector.shape_cast %3 : vector<2x4x32xbf16> to vector<8x32xbf16>
    %c0_5 = arith.constant 0 : index
    %c0_6 = arith.constant 0 : index
    %5 = vector.load %arg3[%c0_5, %c0_6] : memref<32x32xbf16, #tpu.memory_space<vmem>>, vector<32x32xbf16>
    %cst = arith.constant dense<0.000000e+00> : vector<16x32xf32>
    %6 = tpu.matmul %1, %5, %cst {dimension_numbers = #tpu.dot_dimension_numbers<[1], [0], [0], [1], [0, 0, 1, 1], [], []>} : vector<16x32xbf16>, vector<32x32xbf16>, vector<16x32xf32> -> vector<16x32xf32>
    %c0_7 = arith.constant 0 : index
    %c0_8 = arith.constant 0 : index
    %7 = vector.load %arg4[%c0_7, %c0_8] : memref<1x32xf32, #tpu.memory_space<vmem>>, vector<1x32xf32>
    %8 = vector.broadcast %7 : vector<1x32xf32> to vector<16x32xf32>
    %9 = arith.addf %6, %8 : vector<16x32xf32>
    %c0_9 = arith.constant 0 : index
    %c0_10 = arith.constant 0 : index
    %10 = vector.load %arg5[%c0_9, %c0_10] : memref<32x64xbf16, #tpu.memory_space<vmem>>, vector<32x64xbf16>
    %cst_11 = arith.constant dense<0.000000e+00> : vector<8x64xf32>
    %11 = tpu.matmul %4, %10, %cst_11 {dimension_numbers = #tpu.dot_dimension_numbers<[1], [0], [0], [1], [0, 0, 1, 1], [], []>} : vector<8x32xbf16>, vector<32x64xbf16>, vector<8x64xf32> -> vector<8x64xf32>
    %c0_12 = arith.constant 0 : index
    %c0_13 = arith.constant 0 : index
    %12 = vector.load %arg6[%c0_12, %c0_13] : memref<1x64xf32, #tpu.memory_space<vmem>>, vector<1x64xf32>
    %13 = vector.broadcast %12 : vector<1x64xf32> to vector<8x64xf32>
    %14 = arith.addf %11, %13 : vector<8x64xf32>
    %15 = vector.extract_strided_slice %9 {offsets = [0, 0], sizes = [8, 32], strides = [1, 1]} : vector<16x32xf32> to vector<8x32xf32>
    %16 = vector.extract_strided_slice %14 {offsets = [0, 0], sizes = [4, 64], strides = [1, 1]} : vector<8x64xf32> to vector<4x64xf32>
    %17 = vector.extract_strided_slice %16 {offsets = [0, 0], sizes = [4, 32], strides = [1, 1]} : vector<4x64xf32> to vector<4x32xf32>
    %18 = vector.extract_strided_slice %16 {offsets = [0, 32], sizes = [4, 32], strides = [1, 1]} : vector<4x64xf32> to vector<4x32xf32>
    %19 = vector.shape_cast %15 : vector<8x32xf32> to vector<8x4x8xf32>
    %20 = tpu.transpose %19, [1, 0, 2] : vector<8x4x8xf32> -> vector<4x8x8xf32>
    %21 = arith.truncf %20 : vector<4x8x8xf32> to vector<4x8x8xbf16>
    %22 = vector.shape_cast %17 : vector<4x32xf32> to vector<4x4x8xf32>
    %23 = tpu.transpose %22, [1, 0, 2] : vector<4x4x8xf32> -> vector<4x4x8xf32>
    %24 = arith.truncf %23 : vector<4x4x8xf32> to vector<4x4x8xbf16>
    %25 = vector.shape_cast %18 : vector<4x32xf32> to vector<4x4x8xf32>
    %26 = tpu.transpose %25, [1, 0, 2] : vector<4x4x8xf32> -> vector<4x4x8xf32>
    %27 = arith.truncf %26 : vector<4x4x8xf32> to vector<4x4x8xbf16>
    "tpu.trace_start"() <{level = 10 : i32, message = "nqd,nkd->nqk"}> : () -> ()
    %cst_14 = arith.constant dense<0.000000e+00> : vector<4x8x4xf32>
    %28 = tpu.matmul %21, %24, %cst_14 {dimension_numbers = #tpu.dot_dimension_numbers<[2], [2], [1], [1], [0, 0, 0, 1, 1, 1], [0], [0]>} : vector<4x8x8xbf16>, vector<4x4x8xbf16>, vector<4x8x4xf32> -> vector<4x8x4xf32>
    "tpu.trace_stop"() : () -> ()
    %cst_15 = arith.constant dense<0xFF800000> : vector<4x8xf32>
    %29 = vector.multi_reduction <maximumf>, %28, %cst_15 [2] : vector<4x8x4xf32> to vector<4x8xf32>
    %30 = vector.shape_cast %29 : vector<4x8xf32> to vector<4x8x1xf32>
    %31 = vector.broadcast %30 : vector<4x8x1xf32> to vector<4x8x4xf32>
    %32 = arith.subf %28, %31 : vector<4x8x4xf32>
    %33 = math.exp %32 : vector<4x8x4xf32>
    %cst_16 = arith.constant dense<0.000000e+00> : vector<4x8xf32>
    %34 = vector.multi_reduction <add>, %33, %cst_16 [2] : vector<4x8x4xf32> to vector<4x8xf32>
    %35 = vector.shape_cast %34 : vector<4x8xf32> to vector<4x8x1xf32>
    %36 = tpu.reciprocal %35 {approx = true} : vector<4x8x1xf32> -> vector<4x8x1xf32>
    %37 = vector.broadcast %36 : vector<4x8x1xf32> to vector<4x8x4xf32>
    %38 = arith.mulf %33, %37 : vector<4x8x4xf32>
    %39 = arith.truncf %38 : vector<4x8x4xf32> to vector<4x8x4xbf16>
    "tpu.trace_start"() <{level = 10 : i32, message = "nqk,nkd->nqd"}> : () -> ()
    %cst_17 = arith.constant dense<0.000000e+00> : vector<4x8x8xf32>
    %40 = tpu.matmul %39, %27, %cst_17 {dimension_numbers = #tpu.dot_dimension_numbers<[2], [1], [1], [2], [0, 0, 0, 1, 1, 2], [0], [0]>} : vector<4x8x4xbf16>, vector<4x4x8xbf16>, vector<4x8x8xf32> -> vector<4x8x8xf32>
    "tpu.trace_stop"() : () -> ()
    %41 = tpu.transpose %40, [1, 0, 2] : vector<4x8x8xf32> -> vector<8x4x8xf32>
    %42 = vector.shape_cast %41 : vector<8x4x8xf32> to vector<8x32xf32>
    %43 = vector.extract_strided_slice %9 {offsets = [8, 0], sizes = [8, 32], strides = [1, 1]} : vector<16x32xf32> to vector<8x32xf32>
    %44 = vector.extract_strided_slice %14 {offsets = [4, 0], sizes = [4, 64], strides = [1, 1]} : vector<8x64xf32> to vector<4x64xf32>
    %45 = vector.extract_strided_slice %44 {offsets = [0, 0], sizes = [4, 32], strides = [1, 1]} : vector<4x64xf32> to vector<4x32xf32>
    %46 = vector.extract_strided_slice %44 {offsets = [0, 32], sizes = [4, 32], strides = [1, 1]} : vector<4x64xf32> to vector<4x32xf32>
    %47 = vector.shape_cast %43 : vector<8x32xf32> to vector<8x4x8xf32>
    %48 = tpu.transpose %47, [1, 0, 2] : vector<8x4x8xf32> -> vector<4x8x8xf32>
    %49 = arith.truncf %48 : vector<4x8x8xf32> to vector<4x8x8xbf16>
    %50 = vector.shape_cast %45 : vector<4x32xf32> to vector<4x4x8xf32>
    %51 = tpu.transpose %50, [1, 0, 2] : vector<4x4x8xf32> -> vector<4x4x8xf32>
    %52 = arith.truncf %51 : vector<4x4x8xf32> to vector<4x4x8xbf16>
    %53 = vector.shape_cast %46 : vector<4x32xf32> to vector<4x4x8xf32>
    %54 = tpu.transpose %53, [1, 0, 2] : vector<4x4x8xf32> -> vector<4x4x8xf32>
    %55 = arith.truncf %54 : vector<4x4x8xf32> to vector<4x4x8xbf16>
    "tpu.trace_start"() <{level = 10 : i32, message = "nqd,nkd->nqk"}> : () -> ()
    %cst_18 = arith.constant dense<0.000000e+00> : vector<4x8x4xf32>
    %56 = tpu.matmul %49, %52, %cst_18 {dimension_numbers = #tpu.dot_dimension_numbers<[2], [2], [1], [1], [0, 0, 0, 1, 1, 1], [0], [0]>} : vector<4x8x8xbf16>, vector<4x4x8xbf16>, vector<4x8x4xf32> -> vector<4x8x4xf32>
    "tpu.trace_stop"() : () -> ()
    %cst_19 = arith.constant dense<0xFF800000> : vector<4x8xf32>
    %57 = vector.multi_reduction <maximumf>, %56, %cst_19 [2] : vector<4x8x4xf32> to vector<4x8xf32>
    %58 = vector.shape_cast %57 : vector<4x8xf32> to vector<4x8x1xf32>
    %59 = vector.broadcast %58 : vector<4x8x1xf32> to vector<4x8x4xf32>
    %60 = arith.subf %56, %59 : vector<4x8x4xf32>
    %61 = math.exp %60 : vector<4x8x4xf32>
    %cst_20 = arith.constant dense<0.000000e+00> : vector<4x8xf32>
    %62 = vector.multi_reduction <add>, %61, %cst_20 [2] : vector<4x8x4xf32> to vector<4x8xf32>
    %63 = vector.shape_cast %62 : vector<4x8xf32> to vector<4x8x1xf32>
    %64 = tpu.reciprocal %63 {approx = true} : vector<4x8x1xf32> -> vector<4x8x1xf32>
    %65 = vector.broadcast %64 : vector<4x8x1xf32> to vector<4x8x4xf32>
    %66 = arith.mulf %61, %65 : vector<4x8x4xf32>
    %67 = arith.truncf %66 : vector<4x8x4xf32> to vector<4x8x4xbf16>
    "tpu.trace_start"() <{level = 10 : i32, message = "nqk,nkd->nqd"}> : () -> ()
    %cst_21 = arith.constant dense<0.000000e+00> : vector<4x8x8xf32>
    %68 = tpu.matmul %67, %55, %cst_21 {dimension_numbers = #tpu.dot_dimension_numbers<[2], [1], [1], [2], [0, 0, 0, 1, 1, 2], [0], [0]>} : vector<4x8x4xbf16>, vector<4x4x8xbf16>, vector<4x8x8xf32> -> vector<4x8x8xf32>
    "tpu.trace_stop"() : () -> ()
    %69 = tpu.transpose %68, [1, 0, 2] : vector<4x8x8xf32> -> vector<8x4x8xf32>
    %70 = vector.shape_cast %69 : vector<8x4x8xf32> to vector<8x32xf32>
    %71 = tpu.concatenate %42, %70 in 0 : vector<8x32xf32>, vector<8x32xf32> -> vector<16x32xf32>
    %72 = arith.truncf %71 : vector<16x32xf32> to vector<16x32xbf16>
    %c0_22 = arith.constant 0 : index
    %c0_23 = arith.constant 0 : index
    %73 = vector.load %arg7[%c0_22, %c0_23] : memref<32x32xbf16, #tpu.memory_space<vmem>>, vector<32x32xbf16>
    %cst_24 = arith.constant dense<0.000000e+00> : vector<16x32xf32>
    %74 = tpu.matmul %72, %73, %cst_24 {dimension_numbers = #tpu.dot_dimension_numbers<[1], [0], [0], [1], [0, 0, 1, 1], [], []>} : vector<16x32xbf16>, vector<32x32xbf16>, vector<16x32xf32> -> vector<16x32xf32>
    %c0_25 = arith.constant 0 : index
    %c0_26 = arith.constant 0 : index
    %75 = vector.load %arg8[%c0_25, %c0_26] : memref<1x32xf32, #tpu.memory_space<vmem>>, vector<1x32xf32>
    %76 = vector.broadcast %75 : vector<1x32xf32> to vector<16x32xf32>
    %77 = arith.addf %74, %76 : vector<16x32xf32>
    %78 = arith.addf %2, %77 : vector<16x32xf32>
    %c0_27 = arith.constant 0 : index
    %c0_28 = arith.constant 0 : index
    %79 = vector.load %arg9[%c0_27, %c0_28] : memref<1x32xf32, #tpu.memory_space<vmem>>, vector<1x32xf32>
    %c0_29 = arith.constant 0 : index
    %c0_30 = arith.constant 0 : index
    %80 = vector.load %arg10[%c0_29, %c0_30] : memref<1x32xf32, #tpu.memory_space<vmem>>, vector<1x32xf32>
    %cst_31 = arith.constant dense<0.000000e+00> : vector<16xf32>
    %81 = vector.multi_reduction <add>, %78, %cst_31 [1] : vector<16x32xf32> to vector<16xf32>
    %82 = vector.shape_cast %81 : vector<16xf32> to vector<16x1xf32>
    %cst_32 = arith.constant 3.200000e+01 : f32
    %83 = vector.broadcast %cst_32 : f32 to vector<16x1xf32>
    %84 = arith.divf %82, %83 : vector<16x1xf32>
    %85 = vector.broadcast %84 : vector<16x1xf32> to vector<16x32xf32>
    %86 = arith.subf %78, %85 : vector<16x32xf32>
    %87 = vector.broadcast %84 : vector<16x1xf32> to vector<16x32xf32>
    %88 = arith.subf %78, %87 : vector<16x32xf32>
    %89 = arith.mulf %86, %88 : vector<16x32xf32>
    %cst_33 = arith.constant dense<0.000000e+00> : vector<16xf32>
    %90 = vector.multi_reduction <add>, %89, %cst_33 [1] : vector<16x32xf32> to vector<16xf32>
    %91 = vector.shape_cast %90 : vector<16xf32> to vector<16x1xf32>
    %cst_34 = arith.constant 3.200000e+01 : f32
    %92 = vector.broadcast %cst_34 : f32 to vector<16x1xf32>
    %93 = arith.divf %91, %92 : vector<16x1xf32>
    %94 = vector.broadcast %84 : vector<16x1xf32> to vector<16x32xf32>
    %95 = arith.subf %78, %94 : vector<16x32xf32>
    %cst_35 = arith.constant 9.99999974E-6 : f32
    %96 = vector.broadcast %cst_35 : f32 to vector<16x1xf32>
    %97 = arith.addf %93, %96 : vector<16x1xf32>
    %98 = math.rsqrt %97 : vector<16x1xf32>
    %99 = vector.broadcast %98 : vector<16x1xf32> to vector<16x32xf32>
    %100 = arith.mulf %95, %99 : vector<16x32xf32>
    %101 = vector.broadcast %79 : vector<1x32xf32> to vector<16x32xf32>
    %102 = arith.mulf %100, %101 : vector<16x32xf32>
    %103 = vector.broadcast %80 : vector<1x32xf32> to vector<16x32xf32>
    %104 = arith.addf %102, %103 : vector<16x32xf32>
    %105 = vector.shape_cast %104 : vector<16x32xf32> to vector<2x8x32xf32>
    %106 = arith.truncf %105 : vector<2x8x32xf32> to vector<2x8x32xbf16>
    %c0_36 = arith.constant 0 : index
    %c0_37 = arith.constant 0 : index
    %c0_38 = arith.constant 0 : index
    %107 = vector.load %arg11[%c0_36, %c0_37, %c0_38] : memref<2x8x32xbf16, #tpu.memory_space<vmem>>, vector<2x8x32xbf16>
    tpu.vector_store %arg11[%c0_36, %c0_37, %c0_38], %106 {strides = array<i32>} : memref<2x8x32xbf16, #tpu.memory_space<vmem>>, vector<2x8x32xbf16>,
    return
  }
  func.func @transform_0(%arg0: i32) -> (i32, i32, i32) {
    %c0_i32 = arith.constant 0 : i32
    %c0_i32_0 = arith.constant 0 : i32
    %c0_i32_1 = arith.constant 0 : i32
    return %arg0, %c0_i32, %c0_i32_0 : i32, i32, i32
  }
  func.func @transform_1(%arg0: i32) -> (i32, i32, i32) {
    %c0_i32 = arith.constant 0 : i32
    %c0_i32_0 = arith.constant 0 : i32
    %c0_i32_1 = arith.constant 0 : i32
    return %arg0, %c0_i32, %c0_i32_0 : i32, i32, i32
  }
  func.func @transform_2(%arg0: i32) -> (i32, i32) {
    %c0_i32 = arith.constant 0 : i32
    %c0_i32_0 = arith.constant 0 : i32
    %c0_i32_1 = arith.constant 0 : i32
    return %c0_i32, %c0_i32_0 : i32, i32
  }
  func.func @transform_3(%arg0: i32) -> (i32, i32) {
    %c0_i32 = arith.constant 0 : i32
    %c0_i32_0 = arith.constant 0 : i32
    %c0_i32_1 = arith.constant 0 : i32
    return %c0_i32, %c0_i32_0 : i32, i32
  }
  func.func @transform_4(%arg0: i32) -> (i32, i32) {
    %c0_i32 = arith.constant 0 : i32
    %c0_i32_0 = arith.constant 0 : i32
    %c0_i32_1 = arith.constant 0 : i32
    return %c0_i32, %c0_i32_0 : i32, i32
  }
  func.func @transform_5(%arg0: i32) -> (i32, i32) {
    %c0_i32 = arith.constant 0 : i32
    %c0_i32_0 = arith.constant 0 : i32
    %c0_i32_1 = arith.constant 0 : i32
    return %c0_i32, %c0_i32_0 : i32, i32
  }
  func.func @transform_6(%arg0: i32) -> (i32, i32) {
    %c0_i32 = arith.constant 0 : i32
    %c0_i32_0 = arith.constant 0 : i32
    %c0_i32_1 = arith.constant 0 : i32
    return %c0_i32, %c0_i32_0 : i32, i32
  }
  func.func @transform_7(%arg0: i32) -> (i32, i32) {
    %c0_i32 = arith.constant 0 : i32
    %c0_i32_0 = arith.constant 0 : i32
    %c0_i32_1 = arith.constant 0 : i32
    return %c0_i32, %c0_i32_0 : i32, i32
  }
  func.func @transform_8(%arg0: i32) -> (i32, i32) {
    %c0_i32 = arith.constant 0 : i32
    %c0_i32_0 = arith.constant 0 : i32
    %c0_i32_1 = arith.constant 0 : i32
    return %c0_i32, %c0_i32_0 : i32, i32
  }
  func.func @transform_9(%arg0: i32) -> (i32, i32) {
    %c0_i32 = arith.constant 0 : i32
    %c0_i32_0 = arith.constant 0 : i32
    %c0_i32_1 = arith.constant 0 : i32
    return %c0_i32, %c0_i32_0 : i32, i32
  }
  func.func @transform_10(%arg0: i32) -> (i32, i32, i32) {
    %c0_i32 = arith.constant 0 : i32
    %c0_i32_0 = arith.constant 0 : i32
    %c0_i32_1 = arith.constant 0 : i32
    return %arg0, %c0_i32, %c0_i32_0 : i32, i32, i32
  }
}

module attributes {stable_mosaic.version = 11 : i64} {
  func.func @_ffn_block_kernel(%arg0: i32, %arg1: memref<2x8x32xbf16, #tpu.memory_space<vmem>>, %arg2: memref<32x64xbf16, #tpu.memory_space<vmem>>, %arg3: memref<1x64xf32, #tpu.memory_space<vmem>>, %arg4: memref<64x32xbf16, #tpu.memory_space<vmem>>, %arg5: memref<1x32xf32, #tpu.memory_space<vmem>>, %arg6: memref<1x32xf32, #tpu.memory_space<vmem>>, %arg7: memref<1x32xf32, #tpu.memory_space<vmem>>, %arg8: memref<2x8x32xbf16, #tpu.memory_space<vmem>>) attributes {dimension_semantics = [#tpu.dimension_semantics<parallel>], iteration_bounds = array<i64: 1>, scalar_prefetch = 0 : i64, scratch_operands = 0 : i64, tpu.core_type = #tpu.core_type<tc>, window_params = [{transform_indices = @transform_0, window_bounds = array<i64: 2, 8, 32>}, {pipeline_mode = #tpu.pipeline_mode<synchronous>, transform_indices = @transform_1, window_bounds = array<i64: 32, 64>}, {pipeline_mode = #tpu.pipeline_mode<synchronous>, transform_indices = @transform_2, window_bounds = array<i64: 1, 64>}, {pipeline_mode = #tpu.pipeline_mode<synchronous>, transform_indices = @transform_3, window_bounds = array<i64: 64, 32>}, {pipeline_mode = #tpu.pipeline_mode<synchronous>, transform_indices = @transform_4, window_bounds = array<i64: 1, 32>}, {pipeline_mode = #tpu.pipeline_mode<synchronous>, transform_indices = @transform_5, window_bounds = array<i64: 1, 32>}, {pipeline_mode = #tpu.pipeline_mode<synchronous>, transform_indices = @transform_6, window_bounds = array<i64: 1, 32>}, {transform_indices = @transform_7, window_bounds = array<i64: 2, 8, 32>}]} {
    %c0 = arith.constant 0 : index
    %c0_0 = arith.constant 0 : index
    %c0_1 = arith.constant 0 : index
    %0 = vector.load %arg1[%c0, %c0_0, %c0_1] : memref<2x8x32xbf16, #tpu.memory_space<vmem>>, vector<2x8x32xbf16>
    %1 = vector.shape_cast %0 : vector<2x8x32xbf16> to vector<16x32xbf16>
    %2 = arith.extf %1 : vector<16x32xbf16> to vector<16x32xf32>
    %c0_2 = arith.constant 0 : index
    %c0_3 = arith.constant 0 : index
    %3 = vector.load %arg2[%c0_2, %c0_3] : memref<32x64xbf16, #tpu.memory_space<vmem>>, vector<32x64xbf16>
    %cst = arith.constant dense<0.000000e+00> : vector<16x64xf32>
    %4 = tpu.matmul %1, %3, %cst {dimension_numbers = #tpu.dot_dimension_numbers<[1], [0], [0], [1], [0, 0, 1, 1], [], []>} : vector<16x32xbf16>, vector<32x64xbf16>, vector<16x64xf32> -> vector<16x64xf32>
    %c0_4 = arith.constant 0 : index
    %c0_5 = arith.constant 0 : index
    %5 = vector.load %arg3[%c0_4, %c0_5] : memref<1x64xf32, #tpu.memory_space<vmem>>, vector<1x64xf32>
    %6 = vector.broadcast %5 : vector<1x64xf32> to vector<16x64xf32>
    %7 = arith.addf %4, %6 : vector<16x64xf32>
    %8 = arith.mulf %7, %7 : vector<16x64xf32>
    %9 = arith.mulf %7, %8 : vector<16x64xf32>
    %cst_6 = arith.constant 4.471500e-02 : f32
    %10 = vector.broadcast %cst_6 : f32 to vector<16x64xf32>
    %11 = arith.mulf %10, %9 : vector<16x64xf32>
    %12 = arith.addf %7, %11 : vector<16x64xf32>
    %cst_7 = arith.constant 0.797884583 : f32
    %13 = vector.broadcast %cst_7 : f32 to vector<16x64xf32>
    %14 = arith.mulf %13, %12 : vector<16x64xf32>
    %15 = math.tanh %14 : vector<16x64xf32>
    %cst_8 = arith.constant 1.000000e+00 : f32
    %16 = vector.broadcast %cst_8 : f32 to vector<16x64xf32>
    %17 = arith.addf %16, %15 : vector<16x64xf32>
    %cst_9 = arith.constant 5.000000e-01 : f32
    %18 = vector.broadcast %cst_9 : f32 to vector<16x64xf32>
    %19 = arith.mulf %18, %17 : vector<16x64xf32>
    %20 = arith.mulf %7, %19 : vector<16x64xf32>
    %21 = arith.truncf %20 : vector<16x64xf32> to vector<16x64xbf16>
    %c0_10 = arith.constant 0 : index
    %c0_11 = arith.constant 0 : index
    %22 = vector.load %arg4[%c0_10, %c0_11] : memref<64x32xbf16, #tpu.memory_space<vmem>>, vector<64x32xbf16>
    %cst_12 = arith.constant dense<0.000000e+00> : vector<16x32xf32>
    %23 = tpu.matmul %21, %22, %cst_12 {dimension_numbers = #tpu.dot_dimension_numbers<[1], [0], [0], [1], [0, 0, 1, 1], [], []>} : vector<16x64xbf16>, vector<64x32xbf16>, vector<16x32xf32> -> vector<16x32xf32>
    %c0_13 = arith.constant 0 : index
    %c0_14 = arith.constant 0 : index
    %24 = vector.load %arg5[%c0_13, %c0_14] : memref<1x32xf32, #tpu.memory_space<vmem>>, vector<1x32xf32>
    %25 = vector.broadcast %24 : vector<1x32xf32> to vector<16x32xf32>
    %26 = arith.addf %23, %25 : vector<16x32xf32>
    %27 = arith.addf %2, %26 : vector<16x32xf32>
    %c0_15 = arith.constant 0 : index
    %c0_16 = arith.constant 0 : index
    %28 = vector.load %arg6[%c0_15, %c0_16] : memref<1x32xf32, #tpu.memory_space<vmem>>, vector<1x32xf32>
    %c0_17 = arith.constant 0 : index
    %c0_18 = arith.constant 0 : index
    %29 = vector.load %arg7[%c0_17, %c0_18] : memref<1x32xf32, #tpu.memory_space<vmem>>, vector<1x32xf32>
    %cst_19 = arith.constant dense<0.000000e+00> : vector<16xf32>
    %30 = vector.multi_reduction <add>, %27, %cst_19 [1] : vector<16x32xf32> to vector<16xf32>
    %31 = vector.shape_cast %30 : vector<16xf32> to vector<16x1xf32>
    %cst_20 = arith.constant 3.200000e+01 : f32
    %32 = vector.broadcast %cst_20 : f32 to vector<16x1xf32>
    %33 = arith.divf %31, %32 : vector<16x1xf32>
    %34 = vector.broadcast %33 : vector<16x1xf32> to vector<16x32xf32>
    %35 = arith.subf %27, %34 : vector<16x32xf32>
    %36 = vector.broadcast %33 : vector<16x1xf32> to vector<16x32xf32>
    %37 = arith.subf %27, %36 : vector<16x32xf32>
    %38 = arith.mulf %35, %37 : vector<16x32xf32>
    %cst_21 = arith.constant dense<0.000000e+00> : vector<16xf32>
    %39 = vector.multi_reduction <add>, %38, %cst_21 [1] : vector<16x32xf32> to vector<16xf32>
    %40 = vector.shape_cast %39 : vector<16xf32> to vector<16x1xf32>
    %cst_22 = arith.constant 3.200000e+01 : f32
    %41 = vector.broadcast %cst_22 : f32 to vector<16x1xf32>
    %42 = arith.divf %40, %41 : vector<16x1xf32>
    %43 = vector.broadcast %33 : vector<16x1xf32> to vector<16x32xf32>
    %44 = arith.subf %27, %43 : vector<16x32xf32>
    %cst_23 = arith.constant 9.99999974E-6 : f32
    %45 = vector.broadcast %cst_23 : f32 to vector<16x1xf32>
    %46 = arith.addf %42, %45 : vector<16x1xf32>
    %47 = math.rsqrt %46 : vector<16x1xf32>
    %48 = vector.broadcast %47 : vector<16x1xf32> to vector<16x32xf32>
    %49 = arith.mulf %44, %48 : vector<16x32xf32>
    %50 = vector.broadcast %28 : vector<1x32xf32> to vector<16x32xf32>
    %51 = arith.mulf %49, %50 : vector<16x32xf32>
    %52 = vector.broadcast %29 : vector<1x32xf32> to vector<16x32xf32>
    %53 = arith.addf %51, %52 : vector<16x32xf32>
    %54 = vector.shape_cast %53 : vector<16x32xf32> to vector<2x8x32xf32>
    %55 = arith.truncf %54 : vector<2x8x32xf32> to vector<2x8x32xbf16>
    %c0_24 = arith.constant 0 : index
    %c0_25 = arith.constant 0 : index
    %c0_26 = arith.constant 0 : index
    %56 = vector.load %arg8[%c0_24, %c0_25, %c0_26] : memref<2x8x32xbf16, #tpu.memory_space<vmem>>, vector<2x8x32xbf16>
    tpu.vector_store %arg8[%c0_24, %c0_25, %c0_26], %55 {strides = array<i32>} : memref<2x8x32xbf16, #tpu.memory_space<vmem>>, vector<2x8x32xbf16>,
    return
  }
  func.func @transform_0(%arg0: i32) -> (i32, i32, i32) {
    %c0_i32 = arith.constant 0 : i32
    %c0_i32_0 = arith.constant 0 : i32
    %c0_i32_1 = arith.constant 0 : i32
    return %arg0, %c0_i32, %c0_i32_0 : i32, i32, i32
  }
  func.func @transform_1(%arg0: i32) -> (i32, i32) {
    %c0_i32 = arith.constant 0 : i32
    %c0_i32_0 = arith.constant 0 : i32
    %c0_i32_1 = arith.constant 0 : i32
    return %c0_i32, %c0_i32_0 : i32, i32
  }
  func.func @transform_2(%arg0: i32) -> (i32, i32) {
    %c0_i32 = arith.constant 0 : i32
    %c0_i32_0 = arith.constant 0 : i32
    %c0_i32_1 = arith.constant 0 : i32
    return %c0_i32, %c0_i32_0 : i32, i32
  }
  func.func @transform_3(%arg0: i32) -> (i32, i32) {
    %c0_i32 = arith.constant 0 : i32
    %c0_i32_0 = arith.constant 0 : i32
    %c0_i32_1 = arith.constant 0 : i32
    return %c0_i32, %c0_i32_0 : i32, i32
  }
  func.func @transform_4(%arg0: i32) -> (i32, i32) {
    %c0_i32 = arith.constant 0 : i32
    %c0_i32_0 = arith.constant 0 : i32
    %c0_i32_1 = arith.constant 0 : i32
    return %c0_i32, %c0_i32_0 : i32, i32
  }
  func.func @transform_5(%arg0: i32) -> (i32, i32) {
    %c0_i32 = arith.constant 0 : i32
    %c0_i32_0 = arith.constant 0 : i32
    %c0_i32_1 = arith.constant 0 : i32
    return %c0_i32, %c0_i32_0 : i32, i32
  }
  func.func @transform_6(%arg0: i32) -> (i32, i32) {
    %c0_i32 = arith.constant 0 : i32
    %c0_i32_0 = arith.constant 0 : i32
    %c0_i32_1 = arith.constant 0 : i32
    return %c0_i32, %c0_i32_0 : i32, i32
  }
  func.func @transform_7(%arg0: i32) -> (i32, i32, i32) {
    %c0_i32 = arith.constant 0 : i32
    %c0_i32_0 = arith.constant 0 : i32
    %c0_i32_1 = arith.constant 0 : i32
    return %arg0, %c0_i32, %c0_i32_0 : i32, i32, i32
  }
}

module attributes {stable_mosaic.version = 11 : i64} {
  func.func @_linear_kernel(%arg0: i32, %arg1: i32, %arg2: memref<16x32xbf16, #tpu.memory_space<vmem>>, %arg3: memref<32x50xbf16, #tpu.memory_space<vmem>>, %arg4: memref<1x50xf32, #tpu.memory_space<vmem>>, %arg5: memref<16x50xf32, #tpu.memory_space<vmem>>) attributes {dimension_semantics = [#tpu.dimension_semantics<parallel>, #tpu.dimension_semantics<parallel>], iteration_bounds = array<i64: 1, 1>, scalar_prefetch = 0 : i64, scratch_operands = 0 : i64, tpu.core_type = #tpu.core_type<tc>, window_params = [{transform_indices = @transform_0, window_bounds = array<i64: 16, 32>}, {transform_indices = @transform_1, window_bounds = array<i64: 32, 50>}, {transform_indices = @transform_2, window_bounds = array<i64: 1, 50>}, {transform_indices = @transform_3, window_bounds = array<i64: 16, 50>}]} {
    %c0 = arith.constant 0 : index
    %c0_0 = arith.constant 0 : index
    %0 = vector.load %arg2[%c0, %c0_0] : memref<16x32xbf16, #tpu.memory_space<vmem>>, vector<16x32xbf16>
    %c0_1 = arith.constant 0 : index
    %c0_2 = arith.constant 0 : index
    %1 = vector.load %arg3[%c0_1, %c0_2] : memref<32x50xbf16, #tpu.memory_space<vmem>>, vector<32x50xbf16>
    %cst = arith.constant dense<0.000000e+00> : vector<16x50xf32>
    %2 = tpu.matmul %0, %1, %cst {dimension_numbers = #tpu.dot_dimension_numbers<[1], [0], [0], [1], [0, 0, 1, 1], [], []>} : vector<16x32xbf16>, vector<32x50xbf16>, vector<16x50xf32> -> vector<16x50xf32>
    %c0_3 = arith.constant 0 : index
    %c0_4 = arith.constant 0 : index
    %3 = vector.load %arg4[%c0_3, %c0_4] : memref<1x50xf32, #tpu.memory_space<vmem>>, vector<1x50xf32>
    %4 = vector.broadcast %3 : vector<1x50xf32> to vector<16x50xf32>
    %5 = arith.addf %2, %4 : vector<16x50xf32>
    %c0_5 = arith.constant 0 : index
    %c0_6 = arith.constant 0 : index
    %6 = vector.load %arg5[%c0_5, %c0_6] : memref<16x50xf32, #tpu.memory_space<vmem>>, vector<16x50xf32>
    tpu.vector_store %arg5[%c0_5, %c0_6], %5 {strides = array<i32>} : memref<16x50xf32, #tpu.memory_space<vmem>>, vector<16x50xf32>,
    return
  }
  func.func @transform_0(%arg0: i32, %arg1: i32) -> (i32, i32) {
    %c0_i32 = arith.constant 0 : i32
    %c0_i32_0 = arith.constant 0 : i32
    return %arg1, %c0_i32 : i32, i32
  }
  func.func @transform_1(%arg0: i32, %arg1: i32) -> (i32, i32) {
    %c0_i32 = arith.constant 0 : i32
    %c0_i32_0 = arith.constant 0 : i32
    return %c0_i32, %arg0 : i32, i32
  }
  func.func @transform_2(%arg0: i32, %arg1: i32) -> (i32, i32) {
    %c0_i32 = arith.constant 0 : i32
    %c0_i32_0 = arith.constant 0 : i32
    return %c0_i32, %arg0 : i32, i32
  }
  func.func @transform_3(%arg0: i32, %arg1: i32) -> (i32, i32) {
    %c0_i32 = arith.constant 0 : i32
    return %arg1, %arg0 : i32, i32
  }
}

</mosaic_0001>

<llo_original>
// kernel: _lambda_.10
$region0: #{_lambda_.10}
  #allocation0 [shape = 'u32[]', space=smem, size = 0x4, offset = 0x4, fixed_abs, tag = 'smem constant byte address 0x4 - core index']
  #allocation1 [shape = 'u32[144,128]{1,0:T(1,128)}', space=vmem, size = 0x12000, scoped, tag = 'internal scratch']
  %s0 = inlined_call_operand.vmem [shape: f32[2,8,32], index: 0, kind: input, shape index: {}]
  %s1 = inlined_call_operand.vmem [shape: f32[8,32], index: 1, kind: input, shape index: {}]
  %s2 = inlined_call_operand.vmem [shape: f32[1,32], index: 2, kind: input, shape index: {}]
  %s3 = inlined_call_operand.vmem [shape: f32[1,32], index: 3, kind: input, shape index: {}]
  %s4 = inlined_call_operand.vmem [shape: bf16[2,8,32], index: 4, kind: output, shape index: {}]
  %s5 = sld [smem:[#allocation0]]
  $region26: #{_lambda_.10} parent=0
    _
  %s7 = ssub.s32 1, %s5
  %s8 = scalar_select 0, %s7, %s5
  // Predicated region
  $region2: #{_lambda_.10} parent=0 // pred_check
    _
  $region3: #{_lambda_.10} parent=0 // pred_check_branch
    %10 = sbr.rel (0) target = $region5
  $region4: #{_lambda_.10} parent=0 // pred_region
    _
  $region5: #{_lambda_.10} parent=0 // pred_fallthru
    _
  // Predicated region
  $region6: #{_lambda_.10} parent=0 // pred_check
    _
  $region7: #{_lambda_.10} parent=0 // pred_check_branch
    %12 = sbr.rel (0) target = $region9
  $region8: #{_lambda_.10} parent=0 // pred_region
    _
  $region9: #{_lambda_.10} parent=0 // pred_fallthru
    _
  // Predicated region
  $region10: #{_lambda_.10} parent=0 // pred_check
    _
  $region11: #{_lambda_.10} parent=0 // pred_check_branch
    %14 = sbr.rel (0) target = $region13
  $region12: #{_lambda_.10} parent=0 // pred_region
    _
  $region13: #{_lambda_.10} parent=0 // pred_fallthru
    _
  // Predicated region
  $region14: #{_lambda_.10} parent=0 // pred_check
    _
  $region15: #{_lambda_.10} parent=0 // pred_check_branch
    %16 = sbr.rel (0) target = $region17
  $region16: #{_lambda_.10} parent=0 // pred_region
    _
  $region17: #{_lambda_.10} parent=0 // pred_fallthru
    _
  %v17 = vld [vmem:[%s0] sm:$0xff]
  %v18 = vld [vmem:[%s0 + $0x8] sm:$0xff]
  %v19 = vld [vmem:[%s1] sm:$0xff]
  %v20 = vadd.f32 %v17, %v19
  %v21 = vadd.f32 %v18, %v19
  %v22 = vld [vmem:[%s2] sm:$0x1]
  %v23 = vld [vmem:[%s3] sm:$0x1]
  %vm24 = vcmask 261120
  %v25 = vsel %vm24, %v20, 0.0
  %26 = vadd.xlane.f32.xlu0 %v25
  %v27 = vpop.xlane.xlu0 %26
  %v28 = vsel %vm24, %v21, 0.0
  %29 = vadd.xlane.f32.xlu0 %v28
  %v30 = vpop.xlane.xlu0 %29
  %v31 = vrcp.pop 32.0
  %v32 = vmul.f32 %v27, %v31
  %v33 = vmul.f32 %v30, %v31
  %v34 = vsub.f32 %v20, %v32
  %v35 = vsub.f32 %v21, %v33
  %v36 = vmul.f32 %v34, %v34
  %v37 = vmul.f32 %v35, %v35
  %v38 = vsel %vm24, %v36, 0.0
  %39 = vadd.xlane.f32.xlu0 %v38
  %v40 = vpop.xlane.xlu0 %39
  %v41 = vsel %vm24, %v37, 0.0
  %42 = vadd.xlane.f32.xlu0 %v41
  %v43 = vpop.xlane.xlu0 %42
  %v44 = vmul.f32 %v40, %v31
  %v45 = vmul.f32 %v43, %v31
  %v46 = vadd.f32 %v44, 1e-05
  %v47 = vadd.f32 %v45, 1e-05
  %v48 = vrsqrt.pop %v46
  %v49 = vrsqrt.pop %v47
  %v50 = vmul.f32 %v34, %v48
  %v51 = vmul.f32 %v35, %v49
  %v53 = vlaneseq
  %v54 = vshrl.u32 %v53, 7
  %v55 = vsub.s32 0, %v54
  %v56 = vrot.slane %v22, %v55
  %v58 = vmul.f32 %v50, %v56
  %v59 = vmul.f32 %v51, %v56
  %v61 = vlaneseq
  %v62 = vshrl.u32 %v61, 7
  %v63 = vsub.s32 0, %v62
  %v64 = vrot.slane %v23, %v63
  %v66 = vadd.f32 %v58, %v64
  %v67 = vadd.f32 %v59, %v64
  %v68 = vpack.c.bf16 %v66, %v66
  %v69 = vpack.c.bf16 %v67, %v67
  %vm70 = vcmask 257024
  %71 = vst.msk [vmem:[%s4] sm:$0xf] %vm70, %v68
  %72 = vst.msk [vmem:[%s4 + $0x4] sm:$0xf] %vm70, %v69
  // Predicated region
  $region18: #{_lambda_.10} parent=0 // pred_check
    _
  $region19: #{_lambda_.10} parent=0 // pred_check_branch
    %74 = sbr.rel (0) target = $region21
  $region20: #{_lambda_.10} parent=0 // pred_region
    _
  $region21: #{_lambda_.10} parent=0 // pred_fallthru
    _
  // Predicated region
  $region22: #{_lambda_.10} parent=0 // pred_check
    _
  $region23: #{_lambda_.10} parent=0 // pred_check_branch
    %76 = sbr.rel (0) target = $region25
  $region24: #{_lambda_.10} parent=0 // pred_region
    _
  $region25: #{_lambda_.10} parent=0 // pred_fallthru
    _

// kernel: _lambda_.9
$region0: #{_lambda_.9}
  #allocation0 [shape = 'u32[]', space=smem, size = 0x4, offset = 0x4, fixed_abs, tag = 'smem constant byte address 0x4 - core index']
  #allocation1 [shape = 'u32[144,128]{1,0:T(1,128)}', space=vmem, size = 0x12000, scoped, tag = 'internal scratch']
  %s0 = inlined_call_operand.vmem [shape: f32[8,48], index: 0, kind: input, shape index: {}]
  %s1 = inlined_call_operand.vmem [shape: bf16[48,32], index: 1, kind: input, shape index: {}]
  %s2 = inlined_call_operand.vmem [shape: f32[1,32], index: 2, kind: input, shape index: {}]
  %s3 = inlined_call_operand.vmem [shape: bf16[8,32], index: 3, kind: output, shape index: {}]
  %s4 = sld [smem:[#allocation0]]
  $region22: #{_lambda_.9} parent=0
    _
  %s6 = ssub.s32 1, %s4
  %s7 = scalar_select 0, %s6, %s4
  // Predicated region
  $region2: #{_lambda_.9} parent=0 // pred_check
    _
  $region3: #{_lambda_.9} parent=0 // pred_check_branch
    %9 = sbr.rel (0) target = $region5
  $region4: #{_lambda_.9} parent=0 // pred_region
    _
  $region5: #{_lambda_.9} parent=0 // pred_fallthru
    _
  // Predicated region
  $region6: #{_lambda_.9} parent=0 // pred_check
    _
  $region7: #{_lambda_.9} parent=0 // pred_check_branch
    %11 = sbr.rel (0) target = $region9
  $region8: #{_lambda_.9} parent=0 // pred_region
    _
  $region9: #{_lambda_.9} parent=0 // pred_fallthru
    _
  // Predicated region
  $region10: #{_lambda_.9} parent=0 // pred_check
    _
  $region11: #{_lambda_.9} parent=0 // pred_check_branch
    %13 = sbr.rel (0) target = $region13
  $region12: #{_lambda_.9} parent=0 // pred_region
    _
  $region13: #{_lambda_.9} parent=0 // pred_fallthru
    _
  %v15 = vld [vmem:[%s0] sm:$0xff]
  %v16 = vpack.c.bf16 %v15, %v15
  %v17 = vld [vmem:[%s1] sm:$0xf]
  %v18 = vld [vmem:[%s1 + $0x4] sm:$0xf]
  %v19 = vld [vmem:[%s1 + $0x8] sm:$0xf]
  %v20 = vld [vmem:[%s1 + $0xc] sm:$0xf]
  %v21 = vld [vmem:[%s1 + $0x10] sm:$0xf]
  %v22 = vld [vmem:[%s1 + $0x14] sm:$0xf]
  %v23 = vld [vmem:[%s2] sm:$0x1]
  %v25 = vlaneseq
  %v26 = vshrl.u32 %v25, 7
  %v27 = vsub.s32 0, %v26
  %v28 = vrot.slane %v23, %v27
  %v36 = vunpack.c.l.b16 %v17
  %v37 = vunpack.c.l.b16 %v18
  %v38 = vunpack.c.l.b16 %v19
  %v39 = vunpack.c.l.b16 %v20
  %v40 = vunpack.c.l.b16 %v21
  %v41 = vunpack.c.l.b16 %v22
  %v42 = vpack.c.b16 %v37, %v36
  %v43 = vpack.c.b16 %v39, %v38
  %v44 = vpack.c.b16 %v41, %v40
  %vm48 = vcmask 392192
  %v50 = vsel %vm48, %v16, 0
  %52 = vmatprep.subr.bf16.mxu0 0
  %53 = vmatpush1.bf16.msra.mxu0 %v42
  %54 = vmatprep.subr.bf16.mxu0 0
  %55 = vmatpush1.bf16.msra.mxu0 %v43
  %56 = vmatprep.subr.bf16.mxu0 0
  %57 = vmatpush1.bf16.msra.mxu0 %v44
  %58 = vmatprep.subr.bf16.mxu0 0
  %59 = vmatpush1.bf16.msra.mxu0 0
  %60 = vmatprep.subr.bf16.mxu0 0
  %61 = vmatpush1.bf16.msra.mxu0 0
  %62 = vmatprep.subr.bf16.mxu0 0
  %63 = vmatpush1.bf16.msra.mxu0 0
  %64 = vmatprep.subr.bf16.mxu0 0
  %65 = vmatpush1.bf16.msra.mxu0 0
  %66 = vmatprep.subr.bf16.mxu0 0
  %67 = vmatpush1.bf16.msra.mxu0 0
  %68 = vmatprep.subr.bf16.mxu0 0
  %69 = vmatpush1.bf16.msra.mxu0 0
  %70 = vmatprep.subr.bf16.mxu0 0
  %71 = vmatpush1.bf16.msra.mxu0 0
  %72 = vmatprep.subr.bf16.mxu0 0
  %73 = vmatpush1.bf16.msra.mxu0 0
  %74 = vmatprep.subr.bf16.mxu0 0
  %75 = vmatpush1.bf16.msra.mxu0 0
  %76 = vmatprep.subr.bf16.mxu0 0
  %77 = vmatpush1.bf16.msra.mxu0 0
  %78 = vmatprep.subr.bf16.mxu0 0
  %79 = vmatpush1.bf16.msra.mxu0 0
  %80 = vmatprep.subr.bf16.mxu0 0
  %81 = vmatpush1.bf16.msra.mxu0 0
  %82 = vmatprep.subr.bf16.mxu0 0
  %83 = vmatpush1.bf16.msra.mxu0 0
  %84 = vmatprep.mubr.bf16.mxu0 0
  %85 = vmatmul.mubr.bf16.gmra.mrb[0].mxu0 %v50
  %v86 = vpop.f32.mrb[0].mxu0
  %v87 = vadd.f32 %v28, %v86
  %v88 = vpop.f32.mrb[0].mxu0
  %v89 = vpop.f32.mrb[0].mxu0
  %v90 = vpop.f32.mrb[0].mxu0
  %91 = vdwg.mxu0
  %v92 = vpack.c.bf16 %v87, %v87
  %vm93 = vcmask 257024
  %94 = vst.msk [vmem:[%s3] sm:$0xf] %vm93, %v92
  // Predicated region
  $region14: #{_lambda_.9} parent=0 // pred_check
    _
  $region15: #{_lambda_.9} parent=0 // pred_check_branch
    %96 = sbr.rel (0) target = $region17
  $region16: #{_lambda_.9} parent=0 // pred_region
    _
  $region17: #{_lambda_.9} parent=0 // pred_fallthru
    _
  // Predicated region
  $region18: #{_lambda_.9} parent=0 // pred_check
    _
  $region19: #{_lambda_.9} parent=0 // pred_check_branch
    %98 = sbr.rel (0) target = $region21
  $region20: #{_lambda_.9} parent=0 // pred_region
    _
  $region21: #{_lambda_.9} parent=0 // pred_fallthru
    _

// kernel: _lambda_.11
$region0: #{_lambda_.11}
  #allocation0 [shape = 'u32[]', space=smem, size = 0x4, offset = 0x4, fixed_abs, tag = 'smem constant byte address 0x4 - core index']
  #allocation1 [shape = 'u32[144,128]{1,0:T(1,128)}', space=vmem, size = 0x12000, scoped, tag = 'internal scratch']
  %s0 = inlined_call_operand.vmem [shape: f32[2,1,8], index: 0, kind: input, shape index: {}]
  %s1 = inlined_call_operand.vmem [shape: bf16[2,8,32], index: 1, kind: input, shape index: {}]
  %s2 = inlined_call_operand.vmem [shape: bf16[32,96], index: 2, kind: input, shape index: {}]
  %s3 = inlined_call_operand.vmem [shape: f32[1,96], index: 3, kind: input, shape index: {}]
  %s4 = inlined_call_operand.vmem [shape: bf16[32,32], index: 4, kind: input, shape index: {}]
  %s5 = inlined_call_operand.vmem [shape: f32[1,32], index: 5, kind: input, shape index: {}]
  %s6 = inlined_call_operand.vmem [shape: f32[1,32], index: 6, kind: input, shape index: {}]
  %s7 = inlined_call_operand.vmem [shape: f32[1,32], index: 7, kind: input, shape index: {}]
  %s8 = inlined_call_operand.vmem [shape: bf16[2,8,32], index: 8, kind: output, shape index: {}]
  %s9 = sld [smem:[#allocation0]]
  $region42: #{_lambda_.11} parent=0
    _
  %s11 = ssub.s32 1, %s9
  %s12 = scalar_select 0, %s11, %s9
  // Predicated region
  $region2: #{_lambda_.11} parent=0 // pred_check
    _
  $region3: #{_lambda_.11} parent=0 // pred_check_branch
    %14 = sbr.rel (0) target = $region5
  $region4: #{_lambda_.11} parent=0 // pred_region
    _
  $region5: #{_lambda_.11} parent=0 // pred_fallthru
    _
  // Predicated region
  $region6: #{_lambda_.11} parent=0 // pred_check
    _
  $region7: #{_lambda_.11} parent=0 // pred_check_branch
    %16 = sbr.rel (0) target = $region9
  $region8: #{_lambda_.11} parent=0 // pred_region
    _
  $region9: #{_lambda_.11} parent=0 // pred_fallthru
    _
  // Predicated region
  $region10: #{_lambda_.11} parent=0 // pred_check
    _
  $region11: #{_lambda_.11} parent=0 // pred_check_branch
    %18 = sbr.rel (0) target = $region13
  $region12: #{_lambda_.11} parent=0 // pred_region
    _
  $region13: #{_lambda_.11} parent=0 // pred_fallthru
    _
  // Predicated region
  $region14: #{_lambda_.11} parent=0 // pred_check
    _
  $region15: #{_lambda_.11} parent=0 // pred_check_branch
    %20 = sbr.rel (0) target = $region17
  $region16: #{_lambda_.11} parent=0 // pred_region
    _
  $region17: #{_lambda_.11} parent=0 // pred_fallthru
    _
  // Predicated region
  $region18: #{_lambda_.11} parent=0 // pred_check
    _
  $region19: #{_lambda_.11} parent=0 // pred_check_branch
    %22 = sbr.rel (0) target = $region21
  $region20: #{_lambda_.11} parent=0 // pred_region
    _
  $region21: #{_lambda_.11} parent=0 // pred_fallthru
    _
  // Predicated region
  $region22: #{_lambda_.11} parent=0 // pred_check
    _
  $region23: #{_lambda_.11} parent=0 // pred_check_branch
    %24 = sbr.rel (0) target = $region25
  $region24: #{_lambda_.11} parent=0 // pred_region
    _
  $region25: #{_lambda_.11} parent=0 // pred_fallthru
    _
  // Predicated region
  $region26: #{_lambda_.11} parent=0 // pred_check
    _
  $region27: #{_lambda_.11} parent=0 // pred_check_branch
    %26 = sbr.rel (0) target = $region29
  $region28: #{_lambda_.11} parent=0 // pred_region
    _
  $region29: #{_lambda_.11} parent=0 // pred_fallthru
    _
  // Predicated region
  $region30: #{_lambda_.11} parent=0 // pred_check
    _
  $region31: #{_lambda_.11} parent=0 // pred_check_branch
    %28 = sbr.rel (0) target = $region33
  $region32: #{_lambda_.11} parent=0 // pred_region
    _
  $region33: #{_lambda_.11} parent=0 // pred_fallthru
    _
  %v30 = vld [vmem:[%s1] sm:$0xf]
  %v31 = vld [vmem:[%s1 + $0x4] sm:$0xf]
  %v32 = vunpack.c.l.bf16 %v30
  %v33 = vunpack.c.l.bf16 %v31
  %v34 = vld [vmem:[%s0] sm:$0x1]
  %v35 = vld [vmem:[%s0 + $0x1] sm:$0x1]
  %v36 = vld [vmem:[%s2] sm:$0xf]
  %v37 = vld [vmem:[%s2 + $0x4] sm:$0xf]
  %v38 = vld [vmem:[%s2 + $0x8] sm:$0xf]
  %v39 = vld [vmem:[%s2 + $0xc] sm:$0xf]
  %v40 = vld [vmem:[%s3] sm:$0x1]
  %v42 = vlaneseq
  %v43 = vshrl.u32 %v42, 7
  %v44 = vsub.s32 0, %v43
  %v45 = vrot.slane %v40, %v44
  %v49 = vunpack.c.l.b16 %v30
  %v50 = vunpack.c.l.b16 %v31
  %v51 = vpack.c.b16 %v50, %v49
  %v56 = vunpack.c.l.b16 %v36
  %v57 = vunpack.c.l.b16 %v37
  %v58 = vunpack.c.l.b16 %v38
  %v59 = vunpack.c.l.b16 %v39
  %v60 = vpack.c.b16 %v57, %v56
  %v61 = vpack.c.b16 %v59, %v58
  %vm64 = vcmask 261120
  %v66 = vsel %vm64, %v51, 0
  %68 = vmatprep.subr.bf16.mxu0 0
  %69 = vmatpush1.bf16.msra.mxu0 %v60
  %70 = vmatprep.subr.bf16.mxu0 0
  %71 = vmatpush1.bf16.msra.mxu0 %v61
  %72 = vmatprep.subr.bf16.mxu0 0
  %73 = vmatpush1.bf16.msra.mxu0 0
  %74 = vmatprep.subr.bf16.mxu0 0
  %75 = vmatpush1.bf16.msra.mxu0 0
  %76 = vmatprep.subr.bf16.mxu0 0
  %77 = vmatpush1.bf16.msra.mxu0 0
  %78 = vmatprep.subr.bf16.mxu0 0
  %79 = vmatpush1.bf16.msra.mxu0 0
  %80 = vmatprep.subr.bf16.mxu0 0
  %81 = vmatpush1.bf16.msra.mxu0 0
  %82 = vmatprep.subr.bf16.mxu0 0
  %83 = vmatpush1.bf16.msra.mxu0 0
  %84 = vmatprep.subr.bf16.mxu0 0
  %85 = vmatpush1.bf16.msra.mxu0 0
  %86 = vmatprep.subr.bf16.mxu0 0
  %87 = vmatpush1.bf16.msra.mxu0 0
  %88 = vmatprep.subr.bf16.mxu0 0
  %89 = vmatpush1.bf16.msra.mxu0 0
  %90 = vmatprep.subr.bf16.mxu0 0
  %91 = vmatpush1.bf16.msra.mxu0 0
  %92 = vmatprep.subr.bf16.mxu0 0
  %93 = vmatpush1.bf16.msra.mxu0 0
  %94 = vmatprep.subr.bf16.mxu0 0
  %95 = vmatpush1.bf16.msra.mxu0 0
  %96 = vmatprep.subr.bf16.mxu0 0
  %97 = vmatpush1.bf16.msra.mxu0 0
  %98 = vmatprep.subr.bf16.mxu0 0
  %99 = vmatpush1.bf16.msra.mxu0 0
  %100 = vmatprep.mubr.bf16.mxu0 0
  %101 = vmatmul.mubr.bf16.gmra.mrb[0].mxu0 %v66
  %v102 = vpop.f32.mrb[0].mxu0
  %v103 = vadd.f32 %v45, %v102
  %v104 = vpop.f32.mrb[0].mxu0
  %v105 = vpop.f32.mrb[0].mxu0
  %v106 = vadd.f32 %v45, %v105
  %v107 = vpop.f32.mrb[0].mxu0
  %108 = vdwg.mxu0
  %v109 = vlaneseq
  %v110 = vshrl.u32 %v109, 7
  %v111 = vlaneseq
  %v112 = vand.u32 %v111, 127
  %vm113 = vcmp.le.s32.totalorder %v112, %v110
  %vm114 = vcmp.gt.f32.partialorder %v34, 0.5
  %v115 = vsel %vm114, 1, 0
  %v116 = vlaneseq
  %v117 = vshrl.u32 %v116, 7
  %v118 = vsub.s32 0, %v117
  %v119 = vrot.slane %v115, %v118
  %vm120 = vcmp.eq.s32.totalorder %v119, 1
  %vm121 = vmand %vm113, %vm120
  %v122 = vsel %vm121, 0.0, -1e+09
  %124 = vrot.lane.b32.xlu0 %v103, 120
  %v125 = vpop.permute.xlu0 %124
  %127 = vrot.lane.b32.xlu0 %v103, 112
  %v128 = vpop.permute.xlu0 %127
  %130 = vrot.lane.b32.xlu0 %v103, 104
  %v131 = vpop.permute.xlu0 %130
  %v133 = vcombine.low %v103, %v128
  %v134 = vcombine.high %v103, %v128
  %v136 = vunpack.c.l.s4 1983009808
  %v137 = vunpack.c.0.s8 %v136
  %v138 = vlaneseq
  %v139 = vshrl.u32 %v138, 7
  %v140 = vsub.s32 %v137, %v139
  %v141 = vrot.slane %v133, %v140
  %v143 = vunpack.c.l.s4 1983009808
  %v144 = vunpack.c.0.s8 %v143
  %v145 = vlaneseq
  %v146 = vshrl.u32 %v145, 7
  %v147 = vsub.s32 %v144, %v146
  %v148 = vrot.slane %v134, %v147
  %v149 = vcombine.low %v125, %v131
  %v150 = vcombine.high %v125, %v131
  %v152 = vunpack.c.l.s4 1983009808
  %v153 = vunpack.c.0.s8 %v152
  %v154 = vlaneseq
  %v155 = vshrl.u32 %v154, 7
  %v156 = vsub.s32 %v153, %v155
  %v157 = vrot.slane %v149, %v156
  %v159 = vunpack.c.l.s4 1983009808
  %v160 = vunpack.c.0.s8 %v159
  %v161 = vlaneseq
  %v162 = vshrl.u32 %v161, 7
  %v163 = vsub.s32 %v160, %v162
  %v164 = vrot.slane %v150, %v163
  %v165 = vcombine.low %v141, %v157
  %v166 = vcombine.high %v141, %v157
  %v168 = vunpack.c.l.s4 1934713408
  %v169 = vunpack.c.0.s8 %v168
  %v170 = vlaneseq
  %v171 = vshrl.u32 %v170, 7
  %v172 = vsub.s32 %v169, %v171
  %v173 = vrot.slane %v165, %v172
  %v175 = vunpack.c.l.s4 1934713408
  %v176 = vunpack.c.0.s8 %v175
  %v177 = vlaneseq
  %v178 = vshrl.u32 %v177, 7
  %v179 = vsub.s32 %v176, %v178
  %v180 = vrot.slane %v166, %v179
  %v181 = vcombine.low %v148, %v164
  %v182 = vcombine.high %v148, %v164
  %v184 = vunpack.c.l.s4 1934713408
  %v185 = vunpack.c.0.s8 %v184
  %v186 = vlaneseq
  %v187 = vshrl.u32 %v186, 7
  %v188 = vsub.s32 %v185, %v187
  %v189 = vrot.slane %v181, %v188
  %v191 = vunpack.c.l.s4 1934713408
  %v192 = vunpack.c.0.s8 %v191
  %v193 = vlaneseq
  %v194 = vshrl.u32 %v193, 7
  %v195 = vsub.s32 %v192, %v194
  %v196 = vrot.slane %v182, %v195
  %v197 = vcombine.high %v173, 0.0
  %v198 = vcombine.high %v180, 0.0
  %v199 = vcombine.high %v189, 0.0
  %v200 = vcombine.high %v196, 0.0
  %v201 = vcombine.low %v173, %v180
  %v203 = vunpack.c.l.s4 1983009808
  %v204 = vunpack.c.0.s8 %v203
  %v205 = vlaneseq
  %v206 = vshrl.u32 %v205, 7
  %v207 = vsub.s32 %v204, %v206
  %v208 = vrot.slane %v201, %v207
  %v209 = vcombine.low %v197, %v198
  %v211 = vunpack.c.l.s4 1983009808
  %v212 = vunpack.c.0.s8 %v211
  %v213 = vlaneseq
  %v214 = vshrl.u32 %v213, 7
  %v215 = vsub.s32 %v212, %v214
  %v216 = vrot.slane %v209, %v215
  %v217 = vcombine.low %v189, %v196
  %v219 = vunpack.c.l.s4 1983009808
  %v220 = vunpack.c.0.s8 %v219
  %v221 = vlaneseq
  %v222 = vshrl.u32 %v221, 7
  %v223 = vsub.s32 %v220, %v222
  %v224 = vrot.slane %v217, %v223
  %v225 = vcombine.low %v199, %v200
  %v227 = vunpack.c.l.s4 1983009808
  %v228 = vunpack.c.0.s8 %v227
  %v229 = vlaneseq
  %v230 = vshrl.u32 %v229, 7
  %v231 = vsub.s32 %v228, %v230
  %v232 = vrot.slane %v225, %v231
  %v233 = vcombine.low %v208, %v216
  %v234 = vcombine.high %v208, %v216
  %v236 = vunpack.c.l.s4 1934713408
  %v237 = vunpack.c.0.s8 %v236
  %v238 = vlaneseq
  %v239 = vshrl.u32 %v238, 7
  %v240 = vsub.s32 %v237, %v239
  %v241 = vrot.slane %v233, %v240
  %v243 = vunpack.c.l.s4 1934713408
  %v244 = vunpack.c.0.s8 %v243
  %v245 = vlaneseq
  %v246 = vshrl.u32 %v245, 7
  %v247 = vsub.s32 %v244, %v246
  %v248 = vrot.slane %v234, %v247
  %v249 = vcombine.low %v224, %v232
  %v250 = vcombine.high %v224, %v232
  %v252 = vunpack.c.l.s4 1934713408
  %v253 = vunpack.c.0.s8 %v252
  %v254 = vlaneseq
  %v255 = vshrl.u32 %v254, 7
  %v256 = vsub.s32 %v253, %v255
  %v257 = vrot.slane %v249, %v256
  %v259 = vunpack.c.l.s4 1934713408
  %v260 = vunpack.c.0.s8 %v259
  %v261 = vlaneseq
  %v262 = vshrl.u32 %v261, 7
  %v263 = vsub.s32 %v260, %v262
  %v264 = vrot.slane %v250, %v263
  %v265 = vcombine.low %v241, %v257
  %v266 = vcombine.high %v241, %v257
  %v267 = vcombine.low %v248, %v264
  %v268 = vcombine.high %v248, %v264
  %v269 = vpack.c.bf16 %v265, %v265
  %v270 = vpack.c.bf16 %v266, %v266
  %v271 = vpack.c.bf16 %v267, %v267
  %v272 = vpack.c.bf16 %v268, %v268
  %273 = vrot.lane.b32.xlu0 %v103, 96
  %v274 = vpop.permute.xlu0 %273
  %275 = vrot.lane.b32.xlu0 %v125, 96
  %v276 = vpop.permute.xlu0 %275
  %277 = vrot.lane.b32.xlu0 %v128, 96
  %v278 = vpop.permute.xlu0 %277
  %279 = vrot.lane.b32.xlu0 %v131, 96
  %v280 = vpop.permute.xlu0 %279
  %v285 = vcombine.low %v274, %v278
  %v286 = vcombine.high %v274, %v278
  %v288 = vunpack.c.l.s4 1983009808
  %v289 = vunpack.c.0.s8 %v288
  %v290 = vlaneseq
  %v291 = vshrl.u32 %v290, 7
  %v292 = vsub.s32 %v289, %v291
  %v293 = vrot.slane %v285, %v292
  %v295 = vunpack.c.l.s4 1983009808
  %v296 = vunpack.c.0.s8 %v295
  %v297 = vlaneseq
  %v298 = vshrl.u32 %v297, 7
  %v299 = vsub.s32 %v296, %v298
  %v300 = vrot.slane %v286, %v299
  %v301 = vcombine.low %v276, %v280
  %v302 = vcombine.high %v276, %v280
  %v304 = vunpack.c.l.s4 1983009808
  %v305 = vunpack.c.0.s8 %v304
  %v306 = vlaneseq
  %v307 = vshrl.u32 %v306, 7
  %v308 = vsub.s32 %v305, %v307
  %v309 = vrot.slane %v301, %v308
  %v311 = vunpack.c.l.s4 1983009808
  %v312 = vunpack.c.0.s8 %v311
  %v313 = vlaneseq
  %v314 = vshrl.u32 %v313, 7
  %v315 = vsub.s32 %v312, %v314
  %v316 = vrot.slane %v302, %v315
  %v317 = vcombine.low %v293, %v309
  %v318 = vcombine.high %v293, %v309
  %v320 = vunpack.c.l.s4 1934713408
  %v321 = vunpack.c.0.s8 %v320
  %v322 = vlaneseq
  %v323 = vshrl.u32 %v322, 7
  %v324 = vsub.s32 %v321, %v323
  %v325 = vrot.slane %v317, %v324
  %v327 = vunpack.c.l.s4 1934713408
  %v328 = vunpack.c.0.s8 %v327
  %v329 = vlaneseq
  %v330 = vshrl.u32 %v329, 7
  %v331 = vsub.s32 %v328, %v330
  %v332 = vrot.slane %v318, %v331
  %v333 = vcombine.low %v300, %v316
  %v334 = vcombine.high %v300, %v316
  %v336 = vunpack.c.l.s4 1934713408
  %v337 = vunpack.c.0.s8 %v336
  %v338 = vlaneseq
  %v339 = vshrl.u32 %v338, 7
  %v340 = vsub.s32 %v337, %v339
  %v341 = vrot.slane %v333, %v340
  %v343 = vunpack.c.l.s4 1934713408
  %v344 = vunpack.c.0.s8 %v343
  %v345 = vlaneseq
  %v346 = vshrl.u32 %v345, 7
  %v347 = vsub.s32 %v344, %v346
  %v348 = vrot.slane %v334, %v347
  %v349 = vcombine.high %v325, 0.0
  %v350 = vcombine.high %v332, 0.0
  %v351 = vcombine.high %v341, 0.0
  %v352 = vcombine.high %v348, 0.0
  %v353 = vcombine.low %v325, %v332
  %v355 = vunpack.c.l.s4 1983009808
  %v356 = vunpack.c.0.s8 %v355
  %v357 = vlaneseq
  %v358 = vshrl.u32 %v357, 7
  %v359 = vsub.s32 %v356, %v358
  %v360 = vrot.slane %v353, %v359
  %v361 = vcombine.low %v349, %v350
  %v363 = vunpack.c.l.s4 1983009808
  %v364 = vunpack.c.0.s8 %v363
  %v365 = vlaneseq
  %v366 = vshrl.u32 %v365, 7
  %v367 = vsub.s32 %v364, %v366
  %v368 = vrot.slane %v361, %v367
  %v369 = vcombine.low %v341, %v348
  %v371 = vunpack.c.l.s4 1983009808
  %v372 = vunpack.c.0.s8 %v371
  %v373 = vlaneseq
  %v374 = vshrl.u32 %v373, 7
  %v375 = vsub.s32 %v372, %v374
  %v376 = vrot.slane %v369, %v375
  %v377 = vcombine.low %v351, %v352
  %v379 = vunpack.c.l.s4 1983009808
  %v380 = vunpack.c.0.s8 %v379
  %v381 = vlaneseq
  %v382 = vshrl.u32 %v381, 7
  %v383 = vsub.s32 %v380, %v382
  %v384 = vrot.slane %v377, %v383
  %v385 = vcombine.low %v360, %v368
  %v386 = vcombine.high %v360, %v368
  %v388 = vunpack.c.l.s4 1934713408
  %v389 = vunpack.c.0.s8 %v388
  %v390 = vlaneseq
  %v391 = vshrl.u32 %v390, 7
  %v392 = vsub.s32 %v389, %v391
  %v393 = vrot.slane %v385, %v392
  %v395 = vunpack.c.l.s4 1934713408
  %v396 = vunpack.c.0.s8 %v395
  %v397 = vlaneseq
  %v398 = vshrl.u32 %v397, 7
  %v399 = vsub.s32 %v396, %v398
  %v400 = vrot.slane %v386, %v399
  %v401 = vcombine.low %v376, %v384
  %v402 = vcombine.high %v376, %v384
  %v404 = vunpack.c.l.s4 1934713408
  %v405 = vunpack.c.0.s8 %v404
  %v406 = vlaneseq
  %v407 = vshrl.u32 %v406, 7
  %v408 = vsub.s32 %v405, %v407
  %v409 = vrot.slane %v401, %v408
  %v411 = vunpack.c.l.s4 1934713408
  %v412 = vunpack.c.0.s8 %v411
  %v413 = vlaneseq
  %v414 = vshrl.u32 %v413, 7
  %v415 = vsub.s32 %v412, %v414
  %v416 = vrot.slane %v402, %v415
  %v417 = vcombine.low %v393, %v409
  %v418 = vcombine.high %v393, %v409
  %v419 = vcombine.low %v400, %v416
  %v420 = vcombine.high %v400, %v416
  %v421 = vpack.c.bf16 %v417, %v417
  %v422 = vpack.c.bf16 %v418, %v418
  %v423 = vpack.c.bf16 %v419, %v419
  %v424 = vpack.c.bf16 %v420, %v420
  %425 = vrot.lane.b32.xlu0 %v103, 64
  %v426 = vpop.permute.xlu0 %425
  %427 = vrot.lane.b32.xlu0 %v125, 64
  %v428 = vpop.permute.xlu0 %427
  %429 = vrot.lane.b32.xlu0 %v128, 64
  %v430 = vpop.permute.xlu0 %429
  %431 = vrot.lane.b32.xlu0 %v131, 64
  %v432 = vpop.permute.xlu0 %431
  %v437 = vcombine.low %v426, %v430
  %v438 = vcombine.high %v426, %v430
  %v440 = vunpack.c.l.s4 1983009808
  %v441 = vunpack.c.0.s8 %v440
  %v442 = vlaneseq
  %v443 = vshrl.u32 %v442, 7
  %v444 = vsub.s32 %v441, %v443
  %v445 = vrot.slane %v437, %v444
  %v447 = vunpack.c.l.s4 1983009808
  %v448 = vunpack.c.0.s8 %v447
  %v449 = vlaneseq
  %v450 = vshrl.u32 %v449, 7
  %v451 = vsub.s32 %v448, %v450
  %v452 = vrot.slane %v438, %v451
  %v453 = vcombine.low %v428, %v432
  %v454 = vcombine.high %v428, %v432
  %v456 = vunpack.c.l.s4 1983009808
  %v457 = vunpack.c.0.s8 %v456
  %v458 = vlaneseq
  %v459 = vshrl.u32 %v458, 7
  %v460 = vsub.s32 %v457, %v459
  %v461 = vrot.slane %v453, %v460
  %v463 = vunpack.c.l.s4 1983009808
  %v464 = vunpack.c.0.s8 %v463
  %v465 = vlaneseq
  %v466 = vshrl.u32 %v465, 7
  %v467 = vsub.s32 %v464, %v466
  %v468 = vrot.slane %v454, %v467
  %v469 = vcombine.low %v445, %v461
  %v470 = vcombine.high %v445, %v461
  %v472 = vunpack.c.l.s4 1934713408
  %v473 = vunpack.c.0.s8 %v472
  %v474 = vlaneseq
  %v475 = vshrl.u32 %v474, 7
  %v476 = vsub.s32 %v473, %v475
  %v477 = vrot.slane %v469, %v476
  %v479 = vunpack.c.l.s4 1934713408
  %v480 = vunpack.c.0.s8 %v479
  %v481 = vlaneseq
  %v482 = vshrl.u32 %v481, 7
  %v483 = vsub.s32 %v480, %v482
  %v484 = vrot.slane %v470, %v483
  %v485 = vcombine.low %v452, %v468
  %v486 = vcombine.high %v452, %v468
  %v488 = vunpack.c.l.s4 1934713408
  %v489 = vunpack.c.0.s8 %v488
  %v490 = vlaneseq
  %v491 = vshrl.u32 %v490, 7
  %v492 = vsub.s32 %v489, %v491
  %v493 = vrot.slane %v485, %v492
  %v495 = vunpack.c.l.s4 1934713408
  %v496 = vunpack.c.0.s8 %v495
  %v497 = vlaneseq
  %v498 = vshrl.u32 %v497, 7
  %v499 = vsub.s32 %v496, %v498
  %v500 = vrot.slane %v486, %v499
  %v501 = vcombine.high %v477, 0.0
  %v502 = vcombine.high %v484, 0.0
  %v503 = vcombine.high %v493, 0.0
  %v504 = vcombine.high %v500, 0.0
  %v505 = vcombine.low %v477, %v484
  %v507 = vunpack.c.l.s4 1983009808
  %v508 = vunpack.c.0.s8 %v507
  %v509 = vlaneseq
  %v510 = vshrl.u32 %v509, 7
  %v511 = vsub.s32 %v508, %v510
  %v512 = vrot.slane %v505, %v511
  %v513 = vcombine.low %v501, %v502
  %v515 = vunpack.c.l.s4 1983009808
  %v516 = vunpack.c.0.s8 %v515
  %v517 = vlaneseq
  %v518 = vshrl.u32 %v517, 7
  %v519 = vsub.s32 %v516, %v518
  %v520 = vrot.slane %v513, %v519
  %v521 = vcombine.low %v493, %v500
  %v523 = vunpack.c.l.s4 1983009808
  %v524 = vunpack.c.0.s8 %v523
  %v525 = vlaneseq
  %v526 = vshrl.u32 %v525, 7
  %v527 = vsub.s32 %v524, %v526
  %v528 = vrot.slane %v521, %v527
  %v529 = vcombine.low %v503, %v504
  %v531 = vunpack.c.l.s4 1983009808
  %v532 = vunpack.c.0.s8 %v531
  %v533 = vlaneseq
  %v534 = vshrl.u32 %v533, 7
  %v535 = vsub.s32 %v532, %v534
  %v536 = vrot.slane %v529, %v535
  %v537 = vcombine.low %v512, %v520
  %v538 = vcombine.high %v512, %v520
  %v540 = vunpack.c.l.s4 1934713408
  %v541 = vunpack.c.0.s8 %v540
  %v542 = vlaneseq
  %v543 = vshrl.u32 %v542, 7
  %v544 = vsub.s32 %v541, %v543
  %v545 = vrot.slane %v537, %v544
  %v547 = vunpack.c.l.s4 1934713408
  %v548 = vunpack.c.0.s8 %v547
  %v549 = vlaneseq
  %v550 = vshrl.u32 %v549, 7
  %v551 = vsub.s32 %v548, %v550
  %v552 = vrot.slane %v538, %v551
  %v553 = vcombine.low %v528, %v536
  %v554 = vcombine.high %v528, %v536
  %v556 = vunpack.c.l.s4 1934713408
  %v557 = vunpack.c.0.s8 %v556
  %v558 = vlaneseq
  %v559 = vshrl.u32 %v558, 7
  %v560 = vsub.s32 %v557, %v559
  %v561 = vrot.slane %v553, %v560
  %v563 = vunpack.c.l.s4 1934713408
  %v564 = vunpack.c.0.s8 %v563
  %v565 = vlaneseq
  %v566 = vshrl.u32 %v565, 7
  %v567 = vsub.s32 %v564, %v566
  %v568 = vrot.slane %v554, %v567
  %v569 = vcombine.low %v545, %v561
  %v570 = vcombine.high %v545, %v561
  %v571 = vcombine.low %v552, %v568
  %v572 = vcombine.high %v552, %v568
  %v573 = vpack.c.bf16 %v569, %v569
  %v574 = vpack.c.bf16 %v570, %v570
  %v575 = vpack.c.bf16 %v571, %v571
  %v576 = vpack.c.bf16 %v572, %v572
  %vm577 = vcmask 64512
  %v579 = vsel %vm577, %v269, 0
  %v582 = vsel %vm577, %v421, 0
  %584 = vmatprep.subr.bf16.mxu0 0
  %585 = vmatpush1.bf16.xpose.msra.mxu0 %v582
  %586 = vmatprep.subr.bf16.mxu0 0
  %587 = vmatpush1.bf16.xpose.msra.mxu0 0
  %588 = vmatprep.subr.bf16.mxu0 0
  %589 = vmatpush1.bf16.xpose.msra.mxu0 0
  %590 = vmatprep.subr.bf16.mxu0 0
  %591 = vmatpush1.bf16.xpose.msra.mxu0 0
  %592 = vmatprep.subr.bf16.mxu0 0
  %593 = vmatpush1.bf16.xpose.msra.mxu0 0
  %594 = vmatprep.subr.bf16.mxu0 0
  %595 = vmatpush1.bf16.xpose.msra.mxu0 0
  %596 = vmatprep.subr.bf16.mxu0 0
  %597 = vmatpush1.bf16.xpose.msra.mxu0 0
  %598 = vmatprep.subr.bf16.mxu0 0
  %599 = vmatpush1.bf16.xpose.msra.mxu0 0
  %600 = vmatprep.subr.bf16.mxu0 0
  %601 = vmatpush1.bf16.xpose.msra.mxu0 0
  %602 = vmatprep.subr.bf16.mxu0 0
  %603 = vmatpush1.bf16.xpose.msra.mxu0 0
  %604 = vmatprep.subr.bf16.mxu0 0
  %605 = vmatpush1.bf16.xpose.msra.mxu0 0
  %606 = vmatprep.subr.bf16.mxu0 0
  %607 = vmatpush1.bf16.xpose.msra.mxu0 0
  %608 = vmatprep.subr.bf16.mxu0 0
  %609 = vmatpush1.bf16.xpose.msra.mxu0 0
  %610 = vmatprep.subr.bf16.mxu0 0
  %611 = vmatpush1.bf16.xpose.msra.mxu0 0
  %612 = vmatprep.subr.bf16.mxu0 0
  %613 = vmatpush1.bf16.xpose.msra.mxu0 0
  %614 = vmatprep.subr.bf16.mxu0 0
  %615 = vmatpush1.bf16.xpose.msra.mxu0 0
  %616 = vmatprep.mubr.bf16.mxu0 0
  %617 = vmatmul.mubr.bf16.gmra.mrb[0].mxu0 %v579
  %v618 = vpop.f32.mrb[0].mxu0
  %v619 = vadd.f32 %v122, %v618
  %v620 = vpop.f32.mrb[0].mxu0
  %v621 = vpop.f32.mrb[0].mxu0
  %v622 = vpop.f32.mrb[0].mxu0
  %623 = vdwg.mxu0
  %v625 = vsel %vm577, %v270, 0
  %v628 = vsel %vm577, %v422, 0
  %630 = vmatprep.subr.bf16.mxu0 0
  %631 = vmatpush1.bf16.xpose.msra.mxu0 %v628
  %632 = vmatprep.subr.bf16.mxu0 0
  %633 = vmatpush1.bf16.xpose.msra.mxu0 0
  %634 = vmatprep.subr.bf16.mxu0 0
  %635 = vmatpush1.bf16.xpose.msra.mxu0 0
  %636 = vmatprep.subr.bf16.mxu0 0
  %637 = vmatpush1.bf16.xpose.msra.mxu0 0
  %638 = vmatprep.subr.bf16.mxu0 0
  %639 = vmatpush1.bf16.xpose.msra.mxu0 0
  %640 = vmatprep.subr.bf16.mxu0 0
  %641 = vmatpush1.bf16.xpose.msra.mxu0 0
  %642 = vmatprep.subr.bf16.mxu0 0
  %643 = vmatpush1.bf16.xpose.msra.mxu0 0
  %644 = vmatprep.subr.bf16.mxu0 0
  %645 = vmatpush1.bf16.xpose.msra.mxu0 0
  %646 = vmatprep.subr.bf16.mxu0 0
  %647 = vmatpush1.bf16.xpose.msra.mxu0 0
  %648 = vmatprep.subr.bf16.mxu0 0
  %649 = vmatpush1.bf16.xpose.msra.mxu0 0
  %650 = vmatprep.subr.bf16.mxu0 0
  %651 = vmatpush1.bf16.xpose.msra.mxu0 0
  %652 = vmatprep.subr.bf16.mxu0 0
  %653 = vmatpush1.bf16.xpose.msra.mxu0 0
  %654 = vmatprep.subr.bf16.mxu0 0
  %655 = vmatpush1.bf16.xpose.msra.mxu0 0
  %656 = vmatprep.subr.bf16.mxu0 0
  %657 = vmatpush1.bf16.xpose.msra.mxu0 0
  %658 = vmatprep.subr.bf16.mxu0 0
  %659 = vmatpush1.bf16.xpose.msra.mxu0 0
  %660 = vmatprep.subr.bf16.mxu0 0
  %661 = vmatpush1.bf16.xpose.msra.mxu0 0
  %662 = vmatprep.mubr.bf16.mxu0 0
  %663 = vmatmul.mubr.bf16.gmra.mrb[0].mxu0 %v625
  %v664 = vpop.f32.mrb[0].mxu0
  %v665 = vadd.f32 %v122, %v664
  %v666 = vpop.f32.mrb[0].mxu0
  %v667 = vpop.f32.mrb[0].mxu0
  %v668 = vpop.f32.mrb[0].mxu0
  %669 = vdwg.mxu0
  %v671 = vsel %vm577, %v271, 0
  %v674 = vsel %vm577, %v423, 0
  %676 = vmatprep.subr.bf16.mxu0 0
  %677 = vmatpush1.bf16.xpose.msra.mxu0 %v674
  %678 = vmatprep.subr.bf16.mxu0 0
  %679 = vmatpush1.bf16.xpose.msra.mxu0 0
  %680 = vmatprep.subr.bf16.mxu0 0
  %681 = vmatpush1.bf16.xpose.msra.mxu0 0
  %682 = vmatprep.subr.bf16.mxu0 0
  %683 = vmatpush1.bf16.xpose.msra.mxu0 0
  %684 = vmatprep.subr.bf16.mxu0 0
  %685 = vmatpush1.bf16.xpose.msra.mxu0 0
  %686 = vmatprep.subr.bf16.mxu0 0
  %687 = vmatpush1.bf16.xpose.msra.mxu0 0
  %688 = vmatprep.subr.bf16.mxu0 0
  %689 = vmatpush1.bf16.xpose.msra.mxu0 0
  %690 = vmatprep.subr.bf16.mxu0 0
  %691 = vmatpush1.bf16.xpose.msra.mxu0 0
  %692 = vmatprep.subr.bf16.mxu0 0
  %693 = vmatpush1.bf16.xpose.msra.mxu0 0
  %694 = vmatprep.subr.bf16.mxu0 0
  %695 = vmatpush1.bf16.xpose.msra.mxu0 0
  %696 = vmatprep.subr.bf16.mxu0 0
  %697 = vmatpush1.bf16.xpose.msra.mxu0 0
  %698 = vmatprep.subr.bf16.mxu0 0
  %699 = vmatpush1.bf16.xpose.msra.mxu0 0
  %700 = vmatprep.subr.bf16.mxu0 0
  %701 = vmatpush1.bf16.xpose.msra.mxu0 0
  %702 = vmatprep.subr.bf16.mxu0 0
  %703 = vmatpush1.bf16.xpose.msra.mxu0 0
  %704 = vmatprep.subr.bf16.mxu0 0
  %705 = vmatpush1.bf16.xpose.msra.mxu0 0
  %706 = vmatprep.subr.bf16.mxu0 0
  %707 = vmatpush1.bf16.xpose.msra.mxu0 0
  %708 = vmatprep.mubr.bf16.mxu0 0
  %709 = vmatmul.mubr.bf16.gmra.mrb[0].mxu0 %v671
  %v710 = vpop.f32.mrb[0].mxu0
  %v711 = vadd.f32 %v122, %v710
  %v712 = vpop.f32.mrb[0].mxu0
  %v713 = vpop.f32.mrb[0].mxu0
  %v714 = vpop.f32.mrb[0].mxu0
  %715 = vdwg.mxu0
  %v717 = vsel %vm577, %v272, 0
  %v720 = vsel %vm577, %v424, 0
  %722 = vmatprep.subr.bf16.mxu0 0
  %723 = vmatpush1.bf16.xpose.msra.mxu0 %v720
  %724 = vmatprep.subr.bf16.mxu0 0
  %725 = vmatpush1.bf16.xpose.msra.mxu0 0
  %726 = vmatprep.subr.bf16.mxu0 0
  %727 = vmatpush1.bf16.xpose.msra.mxu0 0
  %728 = vmatprep.subr.bf16.mxu0 0
  %729 = vmatpush1.bf16.xpose.msra.mxu0 0
  %730 = vmatprep.subr.bf16.mxu0 0
  %731 = vmatpush1.bf16.xpose.msra.mxu0 0
  %732 = vmatprep.subr.bf16.mxu0 0
  %733 = vmatpush1.bf16.xpose.msra.mxu0 0
  %734 = vmatprep.subr.bf16.mxu0 0
  %735 = vmatpush1.bf16.xpose.msra.mxu0 0
  %736 = vmatprep.subr.bf16.mxu0 0
  %737 = vmatpush1.bf16.xpose.msra.mxu0 0
  %738 = vmatprep.subr.bf16.mxu0 0
  %739 = vmatpush1.bf16.xpose.msra.mxu0 0
  %740 = vmatprep.subr.bf16.mxu0 0
  %741 = vmatpush1.bf16.xpose.msra.mxu0 0
  %742 = vmatprep.subr.bf16.mxu0 0
  %743 = vmatpush1.bf16.xpose.msra.mxu0 0
  %744 = vmatprep.subr.bf16.mxu0 0
  %745 = vmatpush1.bf16.xpose.msra.mxu0 0
  %746 = vmatprep.subr.bf16.mxu0 0
  %747 = vmatpush1.bf16.xpose.msra.mxu0 0
  %748 = vmatprep.subr.bf16.mxu0 0
  %749 = vmatpush1.bf16.xpose.msra.mxu0 0
  %750 = vmatprep.subr.bf16.mxu0 0
  %751 = vmatpush1.bf16.xpose.msra.mxu0 0
  %752 = vmatprep.subr.bf16.mxu0 0
  %753 = vmatpush1.bf16.xpose.msra.mxu0 0
  %754 = vmatprep.mubr.bf16.mxu0 0
  %755 = vmatmul.mubr.bf16.gmra.mrb[0].mxu0 %v717
  %v756 = vpop.f32.mrb[0].mxu0
  %v757 = vadd.f32 %v122, %v756
  %v758 = vpop.f32.mrb[0].mxu0
  %v759 = vpop.f32.mrb[0].mxu0
  %v760 = vpop.f32.mrb[0].mxu0
  %761 = vdwg.mxu0
  %v762 = vsel %vm577, %v619, -inf
  %763 = vmax.xlane.f32.xlu0 %v762
  %v764 = vpop.xlane.xlu0 %763
  %v765 = vsel %vm577, %v665, -inf
  %766 = vmax.xlane.f32.xlu0 %v765
  %v767 = vpop.xlane.xlu0 %766
  %v768 = vsel %vm577, %v711, -inf
  %769 = vmax.xlane.f32.xlu0 %v768
  %v770 = vpop.xlane.xlu0 %769
  %v771 = vsel %vm577, %v757, -inf
  %772 = vmax.xlane.f32.xlu0 %v771
  %v773 = vpop.xlane.xlu0 %772
  %v774 = vsub.f32 %v619, %v764
  %v775 = vsub.f32 %v665, %v767
  %v776 = vsub.f32 %v711, %v770
  %v777 = vsub.f32 %v757, %v773
  %v778 = vmul.f32 %v774, 1.442695
  %v779 = vpow.pop %v778
  %v780 = vmul.f32 %v775, 1.442695
  %v781 = vpow.pop %v780
  %v782 = vmul.f32 %v776, 1.442695
  %v783 = vpow.pop %v782
  %v784 = vmul.f32 %v777, 1.442695
  %v785 = vpow.pop %v784
  %v786 = vsel %vm577, %v779, 0.0
  %787 = vadd.xlane.f32.xlu0 %v786
  %v788 = vpop.xlane.xlu0 %787
  %v789 = vsel %vm577, %v781, 0.0
  %790 = vadd.xlane.f32.xlu0 %v789
  %v791 = vpop.xlane.xlu0 %790
  %v792 = vsel %vm577, %v783, 0.0
  %793 = vadd.xlane.f32.xlu0 %v792
  %v794 = vpop.xlane.xlu0 %793
  %v795 = vsel %vm577, %v785, 0.0
  %796 = vadd.xlane.f32.xlu0 %v795
  %v797 = vpop.xlane.xlu0 %796
  %v798 = vrcp.pop %v788
  %v799 = vrcp.pop %v791
  %v800 = vrcp.pop %v794
  %v801 = vrcp.pop %v797
  %v802 = vmul.f32 %v779, %v798
  %v803 = vmul.f32 %v781, %v799
  %v804 = vmul.f32 %v783, %v800
  %v805 = vmul.f32 %v785, %v801
  %v806 = vpack.c.bf16 %v802, %v802
  %v807 = vpack.c.bf16 %v803, %v803
  %v808 = vpack.c.bf16 %v804, %v804
  %v809 = vpack.c.bf16 %v805, %v805
  %v811 = vsel %vm577, %v806, 0
  %vm813 = vcmask 1043456
  %v815 = vsel %vm813, %v573, 0
  %817 = vmatprep.subr.bf16.mxu0 0
  %818 = vmatpush1.bf16.msra.mxu0 %v815
  %819 = vmatprep.subr.bf16.mxu0 0
  %820 = vmatpush1.bf16.msra.mxu0 0
  %821 = vmatprep.subr.bf16.mxu0 0
  %822 = vmatpush1.bf16.msra.mxu0 0
  %823 = vmatprep.subr.bf16.mxu0 0
  %824 = vmatpush1.bf16.msra.mxu0 0
  %825 = vmatprep.subr.bf16.mxu0 0
  %826 = vmatpush1.bf16.msra.mxu0 0
  %827 = vmatprep.subr.bf16.mxu0 0
  %828 = vmatpush1.bf16.msra.mxu0 0
  %829 = vmatprep.subr.bf16.mxu0 0
  %830 = vmatpush1.bf16.msra.mxu0 0
  %831 = vmatprep.subr.bf16.mxu0 0
  %832 = vmatpush1.bf16.msra.mxu0 0
  %833 = vmatprep.subr.bf16.mxu0 0
  %834 = vmatpush1.bf16.msra.mxu0 0
  %835 = vmatprep.subr.bf16.mxu0 0
  %836 = vmatpush1.bf16.msra.mxu0 0
  %837 = vmatprep.subr.bf16.mxu0 0
  %838 = vmatpush1.bf16.msra.mxu0 0
  %839 = vmatprep.subr.bf16.mxu0 0
  %840 = vmatpush1.bf16.msra.mxu0 0
  %841 = vmatprep.subr.bf16.mxu0 0
  %842 = vmatpush1.bf16.msra.mxu0 0
  %843 = vmatprep.subr.bf16.mxu0 0
  %844 = vmatpush1.bf16.msra.mxu0 0
  %845 = vmatprep.subr.bf16.mxu0 0
  %846 = vmatpush1.bf16.msra.mxu0 0
  %847 = vmatprep.subr.bf16.mxu0 0
  %848 = vmatpush1.bf16.msra.mxu0 0
  %849 = vmatprep.mubr.bf16.mxu0 0
  %850 = vmatmul.mubr.bf16.gmra.mrb[0].mxu0 %v811
  %v851 = vpop.f32.mrb[0].mxu0
  %v852 = vadd.f32 0.0, %v851
  %v853 = vpop.f32.mrb[0].mxu0
  %v854 = vpop.f32.mrb[0].mxu0
  %v855 = vpop.f32.mrb[0].mxu0
  %856 = vdwg.mxu0
  %v858 = vsel %vm577, %v807, 0
  %v861 = vsel %vm813, %v574, 0
  %863 = vmatprep.subr.bf16.mxu0 0
  %864 = vmatpush1.bf16.msra.mxu0 %v861
  %865 = vmatprep.subr.bf16.mxu0 0
  %866 = vmatpush1.bf16.msra.mxu0 0
  %867 = vmatprep.subr.bf16.mxu0 0
  %868 = vmatpush1.bf16.msra.mxu0 0
  %869 = vmatprep.subr.bf16.mxu0 0
  %870 = vmatpush1.bf16.msra.mxu0 0
  %871 = vmatprep.subr.bf16.mxu0 0
  %872 = vmatpush1.bf16.msra.mxu0 0
  %873 = vmatprep.subr.bf16.mxu0 0
  %874 = vmatpush1.bf16.msra.mxu0 0
  %875 = vmatprep.subr.bf16.mxu0 0
  %876 = vmatpush1.bf16.msra.mxu0 0
  %877 = vmatprep.subr.bf16.mxu0 0
  %878 = vmatpush1.bf16.msra.mxu0 0
  %879 = vmatprep.subr.bf16.mxu0 0
  %880 = vmatpush1.bf16.msra.mxu0 0
  %881 = vmatprep.subr.bf16.mxu0 0
  %882 = vmatpush1.bf16.msra.mxu0 0
  %883 = vmatprep.subr.bf16.mxu0 0
  %884 = vmatpush1.bf16.msra.mxu0 0
  %885 = vmatprep.subr.bf16.mxu0 0
  %886 = vmatpush1.bf16.msra.mxu0 0
  %887 = vmatprep.subr.bf16.mxu0 0
  %888 = vmatpush1.bf16.msra.mxu0 0
  %889 = vmatprep.subr.bf16.mxu0 0
  %890 = vmatpush1.bf16.msra.mxu0 0
  %891 = vmatprep.subr.bf16.mxu0 0
  %892 = vmatpush1.bf16.msra.mxu0 0
  %893 = vmatprep.subr.bf16.mxu0 0
  %894 = vmatpush1.bf16.msra.mxu0 0
  %895 = vmatprep.mubr.bf16.mxu0 0
  %896 = vmatmul.mubr.bf16.gmra.mrb[0].mxu0 %v858
  %v897 = vpop.f32.mrb[0].mxu0
  %v898 = vadd.f32 0.0, %v897
  %v899 = vpop.f32.mrb[0].mxu0
  %v900 = vpop.f32.mrb[0].mxu0
  %v901 = vpop.f32.mrb[0].mxu0
  %902 = vdwg.mxu0
  %v904 = vsel %vm577, %v808, 0
  %v907 = vsel %vm813, %v575, 0
  %909 = vmatprep.subr.bf16.mxu0 0
  %910 = vmatpush1.bf16.msra.mxu0 %v907
  %911 = vmatprep.subr.bf16.mxu0 0
  %912 = vmatpush1.bf16.msra.mxu0 0
  %913 = vmatprep.subr.bf16.mxu0 0
  %914 = vmatpush1.bf16.msra.mxu0 0
  %915 = vmatprep.subr.bf16.mxu0 0
  %916 = vmatpush1.bf16.msra.mxu0 0
  %917 = vmatprep.subr.bf16.mxu0 0
  %918 = vmatpush1.bf16.msra.mxu0 0
  %919 = vmatprep.subr.bf16.mxu0 0
  %920 = vmatpush1.bf16.msra.mxu0 0
  %921 = vmatprep.subr.bf16.mxu0 0
  %922 = vmatpush1.bf16.msra.mxu0 0
  %923 = vmatprep.subr.bf16.mxu0 0
  %924 = vmatpush1.bf16.msra.mxu0 0
  %925 = vmatprep.subr.bf16.mxu0 0
  %926 = vmatpush1.bf16.msra.mxu0 0
  %927 = vmatprep.subr.bf16.mxu0 0
  %928 = vmatpush1.bf16.msra.mxu0 0
  %929 = vmatprep.subr.bf16.mxu0 0
  %930 = vmatpush1.bf16.msra.mxu0 0
  %931 = vmatprep.subr.bf16.mxu0 0
  %932 = vmatpush1.bf16.msra.mxu0 0
  %933 = vmatprep.subr.bf16.mxu0 0
  %934 = vmatpush1.bf16.msra.mxu0 0
  %935 = vmatprep.subr.bf16.mxu0 0
  %936 = vmatpush1.bf16.msra.mxu0 0
  %937 = vmatprep.subr.bf16.mxu0 0
  %938 = vmatpush1.bf16.msra.mxu0 0
  %939 = vmatprep.subr.bf16.mxu0 0
  %940 = vmatpush1.bf16.msra.mxu0 0
  %941 = vmatprep.mubr.bf16.mxu0 0
  %942 = vmatmul.mubr.bf16.gmra.mrb[0].mxu0 %v904
  %v943 = vpop.f32.mrb[0].mxu0
  %v944 = vadd.f32 0.0, %v943
  %v945 = vpop.f32.mrb[0].mxu0
  %v946 = vpop.f32.mrb[0].mxu0
  %v947 = vpop.f32.mrb[0].mxu0
  %948 = vdwg.mxu0
  %v950 = vsel %vm577, %v809, 0
  %v953 = vsel %vm813, %v576, 0
  %955 = vmatprep.subr.bf16.mxu0 0
  %956 = vmatpush1.bf16.msra.mxu0 %v953
  %957 = vmatprep.subr.bf16.mxu0 0
  %958 = vmatpush1.bf16.msra.mxu0 0
  %959 = vmatprep.subr.bf16.mxu0 0
  %960 = vmatpush1.bf16.msra.mxu0 0
  %961 = vmatprep.subr.bf16.mxu0 0
  %962 = vmatpush1.bf16.msra.mxu0 0
  %963 = vmatprep.subr.bf16.mxu0 0
  %964 = vmatpush1.bf16.msra.mxu0 0
  %965 = vmatprep.subr.bf16.mxu0 0
  %966 = vmatpush1.bf16.msra.mxu0 0
  %967 = vmatprep.subr.bf16.mxu0 0
  %968 = vmatpush1.bf16.msra.mxu0 0
  %969 = vmatprep.subr.bf16.mxu0 0
  %970 = vmatpush1.bf16.msra.mxu0 0
  %971 = vmatprep.subr.bf16.mxu0 0
  %972 = vmatpush1.bf16.msra.mxu0 0
  %973 = vmatprep.subr.bf16.mxu0 0
  %974 = vmatpush1.bf16.msra.mxu0 0
  %975 = vmatprep.subr.bf16.mxu0 0
  %976 = vmatpush1.bf16.msra.mxu0 0
  %977 = vmatprep.subr.bf16.mxu0 0
  %978 = vmatpush1.bf16.msra.mxu0 0
  %979 = vmatprep.subr.bf16.mxu0 0
  %980 = vmatpush1.bf16.msra.mxu0 0
  %981 = vmatprep.subr.bf16.mxu0 0
  %982 = vmatpush1.bf16.msra.mxu0 0
  %983 = vmatprep.subr.bf16.mxu0 0
  %984 = vmatpush1.bf16.msra.mxu0 0
  %985 = vmatprep.subr.bf16.mxu0 0
  %986 = vmatpush1.bf16.msra.mxu0 0
  %987 = vmatprep.mubr.bf16.mxu0 0
  %988 = vmatmul.mubr.bf16.gmra.mrb[0].mxu0 %v950
  %v989 = vpop.f32.mrb[0].mxu0
  %v990 = vadd.f32 0.0, %v989
  %v991 = vpop.f32.mrb[0].mxu0
  %v992 = vpop.f32.mrb[0].mxu0
  %v993 = vpop.f32.mrb[0].mxu0
  %994 = vdwg.mxu0
  %v995 = vcombine.low %v852, %v944
  %v996 = vcombine.high %v852, %v944
  %v998 = vunpack.c.l.s4 1983009808
  %v999 = vunpack.c.0.s8 %v998
  %v1000 = vlaneseq
  %v1001 = vshrl.u32 %v1000, 7
  %v1002 = vsub.s32 %v999, %v1001
  %v1003 = vrot.slane %v995, %v1002
  %v1005 = vunpack.c.l.s4 1983009808
  %v1006 = vunpack.c.0.s8 %v1005
  %v1007 = vlaneseq
  %v1008 = vshrl.u32 %v1007, 7
  %v1009 = vsub.s32 %v1006, %v1008
  %v1010 = vrot.slane %v996, %v1009
  %v1011 = vcombine.low %v898, %v990
  %v1012 = vcombine.high %v898, %v990
  %v1014 = vunpack.c.l.s4 1983009808
  %v1015 = vunpack.c.0.s8 %v1014
  %v1016 = vlaneseq
  %v1017 = vshrl.u32 %v1016, 7
  %v1018 = vsub.s32 %v1015, %v1017
  %v1019 = vrot.slane %v1011, %v1018
  %v1021 = vunpack.c.l.s4 1983009808
  %v1022 = vunpack.c.0.s8 %v1021
  %v1023 = vlaneseq
  %v1024 = vshrl.u32 %v1023, 7
  %v1025 = vsub.s32 %v1022, %v1024
  %v1026 = vrot.slane %v1012, %v1025
  %v1027 = vcombine.low %v1003, %v1019
  %v1028 = vcombine.high %v1003, %v1019
  %v1030 = vunpack.c.l.s4 1934713408
  %v1031 = vunpack.c.0.s8 %v1030
  %v1032 = vlaneseq
  %v1033 = vshrl.u32 %v1032, 7
  %v1034 = vsub.s32 %v1031, %v1033
  %v1035 = vrot.slane %v1027, %v1034
  %v1037 = vunpack.c.l.s4 1934713408
  %v1038 = vunpack.c.0.s8 %v1037
  %v1039 = vlaneseq
  %v1040 = vshrl.u32 %v1039, 7
  %v1041 = vsub.s32 %v1038, %v1040
  %v1042 = vrot.slane %v1028, %v1041
  %v1043 = vcombine.low %v1010, %v1026
  %v1044 = vcombine.high %v1010, %v1026
  %v1046 = vunpack.c.l.s4 1934713408
  %v1047 = vunpack.c.0.s8 %v1046
  %v1048 = vlaneseq
  %v1049 = vshrl.u32 %v1048, 7
  %v1050 = vsub.s32 %v1047, %v1049
  %v1051 = vrot.slane %v1043, %v1050
  %v1053 = vunpack.c.l.s4 1934713408
  %v1054 = vunpack.c.0.s8 %v1053
  %v1055 = vlaneseq
  %v1056 = vshrl.u32 %v1055, 7
  %v1057 = vsub.s32 %v1054, %v1056
  %v1058 = vrot.slane %v1044, %v1057
  %v1059 = vcombine.high %v1035, 0.0
  %v1060 = vcombine.high %v1042, 0.0
  %v1061 = vcombine.high %v1051, 0.0
  %v1062 = vcombine.high %v1058, 0.0
  %v1063 = vcombine.low %v1035, %v1042
  %v1065 = vunpack.c.l.s4 1983009808
  %v1066 = vunpack.c.0.s8 %v1065
  %v1067 = vlaneseq
  %v1068 = vshrl.u32 %v1067, 7
  %v1069 = vsub.s32 %v1066, %v1068
  %v1070 = vrot.slane %v1063, %v1069
  %v1071 = vcombine.low %v1059, %v1060
  %v1073 = vunpack.c.l.s4 1983009808
  %v1074 = vunpack.c.0.s8 %v1073
  %v1075 = vlaneseq
  %v1076 = vshrl.u32 %v1075, 7
  %v1077 = vsub.s32 %v1074, %v1076
  %v1078 = vrot.slane %v1071, %v1077
  %v1079 = vcombine.low %v1051, %v1058
  %v1081 = vunpack.c.l.s4 1983009808
  %v1082 = vunpack.c.0.s8 %v1081
  %v1083 = vlaneseq
  %v1084 = vshrl.u32 %v1083, 7
  %v1085 = vsub.s32 %v1082, %v1084
  %v1086 = vrot.slane %v1079, %v1085
  %v1087 = vcombine.low %v1061, %v1062
  %v1089 = vunpack.c.l.s4 1983009808
  %v1090 = vunpack.c.0.s8 %v1089
  %v1091 = vlaneseq
  %v1092 = vshrl.u32 %v1091, 7
  %v1093 = vsub.s32 %v1090, %v1092
  %v1094 = vrot.slane %v1087, %v1093
  %v1095 = vcombine.low %v1070, %v1078
  %v1096 = vcombine.high %v1070, %v1078
  %v1098 = vunpack.c.l.s4 1934713408
  %v1099 = vunpack.c.0.s8 %v1098
  %v1100 = vlaneseq
  %v1101 = vshrl.u32 %v1100, 7
  %v1102 = vsub.s32 %v1099, %v1101
  %v1103 = vrot.slane %v1095, %v1102
  %v1105 = vunpack.c.l.s4 1934713408
  %v1106 = vunpack.c.0.s8 %v1105
  %v1107 = vlaneseq
  %v1108 = vshrl.u32 %v1107, 7
  %v1109 = vsub.s32 %v1106, %v1108
  %v1110 = vrot.slane %v1096, %v1109
  %v1111 = vcombine.low %v1086, %v1094
  %v1112 = vcombine.high %v1086, %v1094
  %v1114 = vunpack.c.l.s4 1934713408
  %v1115 = vunpack.c.0.s8 %v1114
  %v1116 = vlaneseq
  %v1117 = vshrl.u32 %v1116, 7
  %v1118 = vsub.s32 %v1115, %v1117
  %v1119 = vrot.slane %v1111, %v1118
  %v1121 = vunpack.c.l.s4 1934713408
  %v1122 = vunpack.c.0.s8 %v1121
  %v1123 = vlaneseq
  %v1124 = vshrl.u32 %v1123, 7
  %v1125 = vsub.s32 %v1122, %v1124
  %v1126 = vrot.slane %v1112, %v1125
  %v1127 = vcombine.low %v1103, %v1119
  %v1128 = vcombine.high %v1103, %v1119
  %v1129 = vcombine.low %v1110, %v1126
  %v1130 = vcombine.high %v1110, %v1126
  %1132 = vrot.lane.b32.xlu0 %v1128, 8
  %v1133 = vpop.permute.xlu0 %1132
  %1136 = vrot.lane.b32.xlu0 %v1129, 16
  %v1137 = vpop.permute.xlu0 %1136
  %1140 = vrot.lane.b32.xlu0 %v1130, 24
  %v1141 = vpop.permute.xlu0 %1140
  %v1143 = vsel %vm577, %v1127, %v1133
  %vm1144 = vcmask 130048
  %v1145 = vsel %vm1144, %v1143, %v1137
  %vm1146 = vcmask 195584
  %v1147 = vsel %vm1146, %v1145, %v1141
  %vm1148 = vcmp.gt.f32.partialorder %v35, 0.5
  %v1149 = vsel %vm1148, 1, 0
  %v1150 = vlaneseq
  %v1151 = vshrl.u32 %v1150, 7
  %v1152 = vsub.s32 0, %v1151
  %v1153 = vrot.slane %v1149, %v1152
  %vm1154 = vcmp.eq.s32.totalorder %v1153, 1
  %vm1155 = vmand %vm113, %vm1154
  %v1156 = vsel %vm1155, 0.0, -1e+09
  %1158 = vrot.lane.b32.xlu0 %v106, 120
  %v1159 = vpop.permute.xlu0 %1158
  %1161 = vrot.lane.b32.xlu0 %v106, 112
  %v1162 = vpop.permute.xlu0 %1161
  %1164 = vrot.lane.b32.xlu0 %v106, 104
  %v1165 = vpop.permute.xlu0 %1164
  %v1167 = vcombine.low %v106, %v1162
  %v1168 = vcombine.high %v106, %v1162
  %v1170 = vunpack.c.l.s4 1983009808
  %v1171 = vunpack.c.0.s8 %v1170
  %v1172 = vlaneseq
  %v1173 = vshrl.u32 %v1172, 7
  %v1174 = vsub.s32 %v1171, %v1173
  %v1175 = vrot.slane %v1167, %v1174
  %v1177 = vunpack.c.l.s4 1983009808
  %v1178 = vunpack.c.0.s8 %v1177
  %v1179 = vlaneseq
  %v1180 = vshrl.u32 %v1179, 7
  %v1181 = vsub.s32 %v1178, %v1180
  %v1182 = vrot.slane %v1168, %v1181
  %v1183 = vcombine.low %v1159, %v1165
  %v1184 = vcombine.high %v1159, %v1165
  %v1186 = vunpack.c.l.s4 1983009808
  %v1187 = vunpack.c.0.s8 %v1186
  %v1188 = vlaneseq
  %v1189 = vshrl.u32 %v1188, 7
  %v1190 = vsub.s32 %v1187, %v1189
  %v1191 = vrot.slane %v1183, %v1190
  %v1193 = vunpack.c.l.s4 1983009808
  %v1194 = vunpack.c.0.s8 %v1193
  %v1195 = vlaneseq
  %v1196 = vshrl.u32 %v1195, 7
  %v1197 = vsub.s32 %v1194, %v1196
  %v1198 = vrot.slane %v1184, %v1197
  %v1199 = vcombine.low %v1175, %v1191
  %v1200 = vcombine.high %v1175, %v1191
  %v1202 = vunpack.c.l.s4 1934713408
  %v1203 = vunpack.c.0.s8 %v1202
  %v1204 = vlaneseq
  %v1205 = vshrl.u32 %v1204, 7
  %v1206 = vsub.s32 %v1203, %v1205
  %v1207 = vrot.slane %v1199, %v1206
  %v1209 = vunpack.c.l.s4 1934713408
  %v1210 = vunpack.c.0.s8 %v1209
  %v1211 = vlaneseq
  %v1212 = vshrl.u32 %v1211, 7
  %v1213 = vsub.s32 %v1210, %v1212
  %v1214 = vrot.slane %v1200, %v1213
  %v1215 = vcombine.low %v1182, %v1198
  %v1216 = vcombine.high %v1182, %v1198
  %v1218 = vunpack.c.l.s4 1934713408
  %v1219 = vunpack.c.0.s8 %v1218
  %v1220 = vlaneseq
  %v1221 = vshrl.u32 %v1220, 7
  %v1222 = vsub.s32 %v1219, %v1221
  %v1223 = vrot.slane %v1215, %v1222
  %v1225 = vunpack.c.l.s4 1934713408
  %v1226 = vunpack.c.0.s8 %v1225
  %v1227 = vlaneseq
  %v1228 = vshrl.u32 %v1227, 7
  %v1229 = vsub.s32 %v1226, %v1228
  %v1230 = vrot.slane %v1216, %v1229
  %v1231 = vcombine.high %v1207, 0.0
  %v1232 = vcombine.high %v1214, 0.0
  %v1233 = vcombine.high %v1223, 0.0
  %v1234 = vcombine.high %v1230, 0.0
  %v1235 = vcombine.low %v1207, %v1214
  %v1237 = vunpack.c.l.s4 1983009808
  %v1238 = vunpack.c.0.s8 %v1237
  %v1239 = vlaneseq
  %v1240 = vshrl.u32 %v1239, 7
  %v1241 = vsub.s32 %v1238, %v1240
  %v1242 = vrot.slane %v1235, %v1241
  %v1243 = vcombine.low %v1231, %v1232
  %v1245 = vunpack.c.l.s4 1983009808
  %v1246 = vunpack.c.0.s8 %v1245
  %v1247 = vlaneseq
  %v1248 = vshrl.u32 %v1247, 7
  %v1249 = vsub.s32 %v1246, %v1248
  %v1250 = vrot.slane %v1243, %v1249
  %v1251 = vcombine.low %v1223, %v1230
  %v1253 = vunpack.c.l.s4 1983009808
  %v1254 = vunpack.c.0.s8 %v1253
  %v1255 = vlaneseq
  %v1256 = vshrl.u32 %v1255, 7
  %v1257 = vsub.s32 %v1254, %v1256
  %v1258 = vrot.slane %v1251, %v1257
  %v1259 = vcombine.low %v1233, %v1234
  %v1261 = vunpack.c.l.s4 1983009808
  %v1262 = vunpack.c.0.s8 %v1261
  %v1263 = vlaneseq
  %v1264 = vshrl.u32 %v1263, 7
  %v1265 = vsub.s32 %v1262, %v1264
  %v1266 = vrot.slane %v1259, %v1265
  %v1267 = vcombine.low %v1242, %v1250
  %v1268 = vcombine.high %v1242, %v1250
  %v1270 = vunpack.c.l.s4 1934713408
  %v1271 = vunpack.c.0.s8 %v1270
  %v1272 = vlaneseq
  %v1273 = vshrl.u32 %v1272, 7
  %v1274 = vsub.s32 %v1271, %v1273
  %v1275 = vrot.slane %v1267, %v1274
  %v1277 = vunpack.c.l.s4 1934713408
  %v1278 = vunpack.c.0.s8 %v1277
  %v1279 = vlaneseq
  %v1280 = vshrl.u32 %v1279, 7
  %v1281 = vsub.s32 %v1278, %v1280
  %v1282 = vrot.slane %v1268, %v1281
  %v1283 = vcombine.low %v1258, %v1266
  %v1284 = vcombine.high %v1258, %v1266
  %v1286 = vunpack.c.l.s4 1934713408
  %v1287 = vunpack.c.0.s8 %v1286
  %v1288 = vlaneseq
  %v1289 = vshrl.u32 %v1288, 7
  %v1290 = vsub.s32 %v1287, %v1289
  %v1291 = vrot.slane %v1283, %v1290
  %v1293 = vunpack.c.l.s4 1934713408
  %v1294 = vunpack.c.0.s8 %v1293
  %v1295 = vlaneseq
  %v1296 = vshrl.u32 %v1295, 7
  %v1297 = vsub.s32 %v1294, %v1296
  %v1298 = vrot.slane %v1284, %v1297
  %v1299 = vcombine.low %v1275, %v1291
  %v1300 = vcombine.high %v1275, %v1291
  %v1301 = vcombine.low %v1282, %v1298
  %v1302 = vcombine.high %v1282, %v1298
  %v1303 = vpack.c.bf16 %v1299, %v1299
  %v1304 = vpack.c.bf16 %v1300, %v1300
  %v1305 = vpack.c.bf16 %v1301, %v1301
  %v1306 = vpack.c.bf16 %v1302, %v1302
  %1307 = vrot.lane.b32.xlu0 %v106, 96
  %v1308 = vpop.permute.xlu0 %1307
  %1309 = vrot.lane.b32.xlu0 %v1159, 96
  %v1310 = vpop.permute.xlu0 %1309
  %1311 = vrot.lane.b32.xlu0 %v1162, 96
  %v1312 = vpop.permute.xlu0 %1311
  %1313 = vrot.lane.b32.xlu0 %v1165, 96
  %v1314 = vpop.permute.xlu0 %1313
  %v1319 = vcombine.low %v1308, %v1312
  %v1320 = vcombine.high %v1308, %v1312
  %v1322 = vunpack.c.l.s4 1983009808
  %v1323 = vunpack.c.0.s8 %v1322
  %v1324 = vlaneseq
  %v1325 = vshrl.u32 %v1324, 7
  %v1326 = vsub.s32 %v1323, %v1325
  %v1327 = vrot.slane %v1319, %v1326
  %v1329 = vunpack.c.l.s4 1983009808
  %v1330 = vunpack.c.0.s8 %v1329
  %v1331 = vlaneseq
  %v1332 = vshrl.u32 %v1331, 7
  %v1333 = vsub.s32 %v1330, %v1332
  %v1334 = vrot.slane %v1320, %v1333
  %v1335 = vcombine.low %v1310, %v1314
  %v1336 = vcombine.high %v1310, %v1314
  %v1338 = vunpack.c.l.s4 1983009808
  %v1339 = vunpack.c.0.s8 %v1338
  %v1340 = vlaneseq
  %v1341 = vshrl.u32 %v1340, 7
  %v1342 = vsub.s32 %v1339, %v1341
  %v1343 = vrot.slane %v1335, %v1342
  %v1345 = vunpack.c.l.s4 1983009808
  %v1346 = vunpack.c.0.s8 %v1345
  %v1347 = vlaneseq
  %v1348 = vshrl.u32 %v1347, 7
  %v1349 = vsub.s32 %v1346, %v1348
  %v1350 = vrot.slane %v1336, %v1349
  %v1351 = vcombine.low %v1327, %v1343
  %v1352 = vcombine.high %v1327, %v1343
  %v1354 = vunpack.c.l.s4 1934713408
  %v1355 = vunpack.c.0.s8 %v1354
  %v1356 = vlaneseq
  %v1357 = vshrl.u32 %v1356, 7
  %v1358 = vsub.s32 %v1355, %v1357
  %v1359 = vrot.slane %v1351, %v1358
  %v1361 = vunpack.c.l.s4 1934713408
  %v1362 = vunpack.c.0.s8 %v1361
  %v1363 = vlaneseq
  %v1364 = vshrl.u32 %v1363, 7
  %v1365 = vsub.s32 %v1362, %v1364
  %v1366 = vrot.slane %v1352, %v1365
  %v1367 = vcombine.low %v1334, %v1350
  %v1368 = vcombine.high %v1334, %v1350
  %v1370 = vunpack.c.l.s4 1934713408
  %v1371 = vunpack.c.0.s8 %v1370
  %v1372 = vlaneseq
  %v1373 = vshrl.u32 %v1372, 7
  %v1374 = vsub.s32 %v1371, %v1373
  %v1375 = vrot.slane %v1367, %v1374
  %v1377 = vunpack.c.l.s4 1934713408
  %v1378 = vunpack.c.0.s8 %v1377
  %v1379 = vlaneseq
  %v1380 = vshrl.u32 %v1379, 7
  %v1381 = vsub.s32 %v1378, %v1380
  %v1382 = vrot.slane %v1368, %v1381
  %v1383 = vcombine.high %v1359, 0.0
  %v1384 = vcombine.high %v1366, 0.0
  %v1385 = vcombine.high %v1375, 0.0
  %v1386 = vcombine.high %v1382, 0.0
  %v1387 = vcombine.low %v1359, %v1366
  %v1389 = vunpack.c.l.s4 1983009808
  %v1390 = vunpack.c.0.s8 %v1389
  %v1391 = vlaneseq
  %v1392 = vshrl.u32 %v1391, 7
  %v1393 = vsub.s32 %v1390, %v1392
  %v1394 = vrot.slane %v1387, %v1393
  %v1395 = vcombine.low %v1383, %v1384
  %v1397 = vunpack.c.l.s4 1983009808
  %v1398 = vunpack.c.0.s8 %v1397
  %v1399 = vlaneseq
  %v1400 = vshrl.u32 %v1399, 7
  %v1401 = vsub.s32 %v1398, %v1400
  %v1402 = vrot.slane %v1395, %v1401
  %v1403 = vcombine.low %v1375, %v1382
  %v1405 = vunpack.c.l.s4 1983009808
  %v1406 = vunpack.c.0.s8 %v1405
  %v1407 = vlaneseq
  %v1408 = vshrl.u32 %v1407, 7
  %v1409 = vsub.s32 %v1406, %v1408
  %v1410 = vrot.slane %v1403, %v1409
  %v1411 = vcombine.low %v1385, %v1386
  %v1413 = vunpack.c.l.s4 1983009808
  %v1414 = vunpack.c.0.s8 %v1413
  %v1415 = vlaneseq
  %v1416 = vshrl.u32 %v1415, 7
  %v1417 = vsub.s32 %v1414, %v1416
  %v1418 = vrot.slane %v1411, %v1417
  %v1419 = vcombine.low %v1394, %v1402
  %v1420 = vcombine.high %v1394, %v1402
  %v1422 = vunpack.c.l.s4 1934713408
  %v1423 = vunpack.c.0.s8 %v1422
  %v1424 = vlaneseq
  %v1425 = vshrl.u32 %v1424, 7
  %v1426 = vsub.s32 %v1423, %v1425
  %v1427 = vrot.slane %v1419, %v1426
  %v1429 = vunpack.c.l.s4 1934713408
  %v1430 = vunpack.c.0.s8 %v1429
  %v1431 = vlaneseq
  %v1432 = vshrl.u32 %v1431, 7
  %v1433 = vsub.s32 %v1430, %v1432
  %v1434 = vrot.slane %v1420, %v1433
  %v1435 = vcombine.low %v1410, %v1418
  %v1436 = vcombine.high %v1410, %v1418
  %v1438 = vunpack.c.l.s4 1934713408
  %v1439 = vunpack.c.0.s8 %v1438
  %v1440 = vlaneseq
  %v1441 = vshrl.u32 %v1440, 7
  %v1442 = vsub.s32 %v1439, %v1441
  %v1443 = vrot.slane %v1435, %v1442
  %v1445 = vunpack.c.l.s4 1934713408
  %v1446 = vunpack.c.0.s8 %v1445
  %v1447 = vlaneseq
  %v1448 = vshrl.u32 %v1447, 7
  %v1449 = vsub.s32 %v1446, %v1448
  %v1450 = vrot.slane %v1436, %v1449
  %v1451 = vcombine.low %v1427, %v1443
  %v1452 = vcombine.high %v1427, %v1443
  %v1453 = vcombine.low %v1434, %v1450
  %v1454 = vcombine.high %v1434, %v1450
  %v1455 = vpack.c.bf16 %v1451, %v1451
  %v1456 = vpack.c.bf16 %v1452, %v1452
  %v1457 = vpack.c.bf16 %v1453, %v1453
  %v1458 = vpack.c.bf16 %v1454, %v1454
  %1459 = vrot.lane.b32.xlu0 %v106, 64
  %v1460 = vpop.permute.xlu0 %1459
  %1461 = vrot.lane.b32.xlu0 %v1159, 64
  %v1462 = vpop.permute.xlu0 %1461
  %1463 = vrot.lane.b32.xlu0 %v1162, 64
  %v1464 = vpop.permute.xlu0 %1463
  %1465 = vrot.lane.b32.xlu0 %v1165, 64
  %v1466 = vpop.permute.xlu0 %1465
  %v1471 = vcombine.low %v1460, %v1464
  %v1472 = vcombine.high %v1460, %v1464
  %v1474 = vunpack.c.l.s4 1983009808
  %v1475 = vunpack.c.0.s8 %v1474
  %v1476 = vlaneseq
  %v1477 = vshrl.u32 %v1476, 7
  %v1478 = vsub.s32 %v1475, %v1477
  %v1479 = vrot.slane %v1471, %v1478
  %v1481 = vunpack.c.l.s4 1983009808
  %v1482 = vunpack.c.0.s8 %v1481
  %v1483 = vlaneseq
  %v1484 = vshrl.u32 %v1483, 7
  %v1485 = vsub.s32 %v1482, %v1484
  %v1486 = vrot.slane %v1472, %v1485
  %v1487 = vcombine.low %v1462, %v1466
  %v1488 = vcombine.high %v1462, %v1466
  %v1490 = vunpack.c.l.s4 1983009808
  %v1491 = vunpack.c.0.s8 %v1490
  %v1492 = vlaneseq
  %v1493 = vshrl.u32 %v1492, 7
  %v1494 = vsub.s32 %v1491, %v1493
  %v1495 = vrot.slane %v1487, %v1494
  %v1497 = vunpack.c.l.s4 1983009808
  %v1498 = vunpack.c.0.s8 %v1497
  %v1499 = vlaneseq
  %v1500 = vshrl.u32 %v1499, 7
  %v1501 = vsub.s32 %v1498, %v1500
  %v1502 = vrot.slane %v1488, %v1501
  %v1503 = vcombine.low %v1479, %v1495
  %v1504 = vcombine.high %v1479, %v1495
  %v1506 = vunpack.c.l.s4 1934713408
  %v1507 = vunpack.c.0.s8 %v1506
  %v1508 = vlaneseq
  %v1509 = vshrl.u32 %v1508, 7
  %v1510 = vsub.s32 %v1507, %v1509
  %v1511 = vrot.slane %v1503, %v1510
  %v1513 = vunpack.c.l.s4 1934713408
  %v1514 = vunpack.c.0.s8 %v1513
  %v1515 = vlaneseq
  %v1516 = vshrl.u32 %v1515, 7
  %v1517 = vsub.s32 %v1514, %v1516
  %v1518 = vrot.slane %v1504, %v1517
  %v1519 = vcombine.low %v1486, %v1502
  %v1520 = vcombine.high %v1486, %v1502
  %v1522 = vunpack.c.l.s4 1934713408
  %v1523 = vunpack.c.0.s8 %v1522
  %v1524 = vlaneseq
  %v1525 = vshrl.u32 %v1524, 7
  %v1526 = vsub.s32 %v1523, %v1525
  %v1527 = vrot.slane %v1519, %v1526
  %v1529 = vunpack.c.l.s4 1934713408
  %v1530 = vunpack.c.0.s8 %v1529
  %v1531 = vlaneseq
  %v1532 = vshrl.u32 %v1531, 7
  %v1533 = vsub.s32 %v1530, %v1532
  %v1534 = vrot.slane %v1520, %v1533
  %v1535 = vcombine.high %v1511, 0.0
  %v1536 = vcombine.high %v1518, 0.0
  %v1537 = vcombine.high %v1527, 0.0
  %v1538 = vcombine.high %v1534, 0.0
  %v1539 = vcombine.low %v1511, %v1518
  %v1541 = vunpack.c.l.s4 1983009808
  %v1542 = vunpack.c.0.s8 %v1541
  %v1543 = vlaneseq
  %v1544 = vshrl.u32 %v1543, 7
  %v1545 = vsub.s32 %v1542, %v1544
  %v1546 = vrot.slane %v1539, %v1545
  %v1547 = vcombine.low %v1535, %v1536
  %v1549 = vunpack.c.l.s4 1983009808
  %v1550 = vunpack.c.0.s8 %v1549
  %v1551 = vlaneseq
  %v1552 = vshrl.u32 %v1551, 7
  %v1553 = vsub.s32 %v1550, %v1552
  %v1554 = vrot.slane %v1547, %v1553
  %v1555 = vcombine.low %v1527, %v1534
  %v1557 = vunpack.c.l.s4 1983009808
  %v1558 = vunpack.c.0.s8 %v1557
  %v1559 = vlaneseq
  %v1560 = vshrl.u32 %v1559, 7
  %v1561 = vsub.s32 %v1558, %v1560
  %v1562 = vrot.slane %v1555, %v1561
  %v1563 = vcombine.low %v1537, %v1538
  %v1565 = vunpack.c.l.s4 1983009808
  %v1566 = vunpack.c.0.s8 %v1565
  %v1567 = vlaneseq
  %v1568 = vshrl.u32 %v1567, 7
  %v1569 = vsub.s32 %v1566, %v1568
  %v1570 = vrot.slane %v1563, %v1569
  %v1571 = vcombine.low %v1546, %v1554
  %v1572 = vcombine.high %v1546, %v1554
  %v1574 = vunpack.c.l.s4 1934713408
  %v1575 = vunpack.c.0.s8 %v1574
  %v1576 = vlaneseq
  %v1577 = vshrl.u32 %v1576, 7
  %v1578 = vsub.s32 %v1575, %v1577
  %v1579 = vrot.slane %v1571, %v1578
  %v1581 = vunpack.c.l.s4 1934713408
  %v1582 = vunpack.c.0.s8 %v1581
  %v1583 = vlaneseq
  %v1584 = vshrl.u32 %v1583, 7
  %v1585 = vsub.s32 %v1582, %v1584
  %v1586 = vrot.slane %v1572, %v1585
  %v1587 = vcombine.low %v1562, %v1570
  %v1588 = vcombine.high %v1562, %v1570
  %v1590 = vunpack.c.l.s4 1934713408
  %v1591 = vunpack.c.0.s8 %v1590
  %v1592 = vlaneseq
  %v1593 = vshrl.u32 %v1592, 7
  %v1594 = vsub.s32 %v1591, %v1593
  %v1595 = vrot.slane %v1587, %v1594
  %v1597 = vunpack.c.l.s4 1934713408
  %v1598 = vunpack.c.0.s8 %v1597
  %v1599 = vlaneseq
  %v1600 = vshrl.u32 %v1599, 7
  %v1601 = vsub.s32 %v1598, %v1600
  %v1602 = vrot.slane %v1588, %v1601
  %v1603 = vcombine.low %v1579, %v1595
  %v1604 = vcombine.high %v1579, %v1595
  %v1605 = vcombine.low %v1586, %v1602
  %v1606 = vcombine.high %v1586, %v1602
  %v1607 = vpack.c.bf16 %v1603, %v1603
  %v1608 = vpack.c.bf16 %v1604, %v1604
  %v1609 = vpack.c.bf16 %v1605, %v1605
  %v1610 = vpack.c.bf16 %v1606, %v1606
  %v1612 = vsel %vm577, %v1303, 0
  %v1615 = vsel %vm577, %v1455, 0
  %1617 = vmatprep.subr.bf16.mxu0 0
  %1618 = vmatpush1.bf16.xpose.msra.mxu0 %v1615
  %1619 = vmatprep.subr.bf16.mxu0 0
  %1620 = vmatpush1.bf16.xpose.msra.mxu0 0
  %1621 = vmatprep.subr.bf16.mxu0 0
  %1622 = vmatpush1.bf16.xpose.msra.mxu0 0
  %1623 = vmatprep.subr.bf16.mxu0 0
  %1624 = vmatpush1.bf16.xpose.msra.mxu0 0
  %1625 = vmatprep.subr.bf16.mxu0 0
  %1626 = vmatpush1.bf16.xpose.msra.mxu0 0
  %1627 = vmatprep.subr.bf16.mxu0 0
  %1628 = vmatpush1.bf16.xpose.msra.mxu0 0
  %1629 = vmatprep.subr.bf16.mxu0 0
  %1630 = vmatpush1.bf16.xpose.msra.mxu0 0
  %1631 = vmatprep.subr.bf16.mxu0 0
  %1632 = vmatpush1.bf16.xpose.msra.mxu0 0
  %1633 = vmatprep.subr.bf16.mxu0 0
  %1634 = vmatpush1.bf16.xpose.msra.mxu0 0
  %1635 = vmatprep.subr.bf16.mxu0 0
  %1636 = vmatpush1.bf16.xpose.msra.mxu0 0
  %1637 = vmatprep.subr.bf16.mxu0 0
  %1638 = vmatpush1.bf16.xpose.msra.mxu0 0
  %1639 = vmatprep.subr.bf16.mxu0 0
  %1640 = vmatpush1.bf16.xpose.msra.mxu0 0
  %1641 = vmatprep.subr.bf16.mxu0 0
  %1642 = vmatpush1.bf16.xpose.msra.mxu0 0
  %1643 = vmatprep.subr.bf16.mxu0 0
  %1644 = vmatpush1.bf16.xpose.msra.mxu0 0
  %1645 = vmatprep.subr.bf16.mxu0 0
  %1646 = vmatpush1.bf16.xpose.msra.mxu0 0
  %1647 = vmatprep.subr.bf16.mxu0 0
  %1648 = vmatpush1.bf16.xpose.msra.mxu0 0
  %1649 = vmatprep.mubr.bf16.mxu0 0
  %1650 = vmatmul.mubr.bf16.gmra.mrb[0].mxu0 %v1612
  %v1651 = vpop.f32.mrb[0].mxu0
  %v1652 = vadd.f32 %v1156, %v1651
  %v1653 = vpop.f32.mrb[0].mxu0
  %v1654 = vpop.f32.mrb[0].mxu0
  %v1655 = vpop.f32.mrb[0].mxu0
  %1656 = vdwg.mxu0
  %v1658 = vsel %vm577, %v1304, 0
  %v1661 = vsel %vm577, %v1456, 0
  %1663 = vmatprep.subr.bf16.mxu0 0
  %1664 = vmatpush1.bf16.xpose.msra.mxu0 %v1661
  %1665 = vmatprep.subr.bf16.mxu0 0
  %1666 = vmatpush1.bf16.xpose.msra.mxu0 0
  %1667 = vmatprep.subr.bf16.mxu0 0
  %1668 = vmatpush1.bf16.xpose.msra.mxu0 0
  %1669 = vmatprep.subr.bf16.mxu0 0
  %1670 = vmatpush1.bf16.xpose.msra.mxu0 0
  %1671 = vmatprep.subr.bf16.mxu0 0
  %1672 = vmatpush1.bf16.xpose.msra.mxu0 0
  %1673 = vmatprep.subr.bf16.mxu0 0
  %1674 = vmatpush1.bf16.xpose.msra.mxu0 0
  %1675 = vmatprep.subr.bf16.mxu0 0
  %1676 = vmatpush1.bf16.xpose.msra.mxu0 0
  %1677 = vmatprep.subr.bf16.mxu0 0
  %1678 = vmatpush1.bf16.xpose.msra.mxu0 0
  %1679 = vmatprep.subr.bf16.mxu0 0
  %1680 = vmatpush1.bf16.xpose.msra.mxu0 0
  %1681 = vmatprep.subr.bf16.mxu0 0
  %1682 = vmatpush1.bf16.xpose.msra.mxu0 0
  %1683 = vmatprep.subr.bf16.mxu0 0
  %1684 = vmatpush1.bf16.xpose.msra.mxu0 0
  %1685 = vmatprep.subr.bf16.mxu0 0
  %1686 = vmatpush1.bf16.xpose.msra.mxu0 0
  %1687 = vmatprep.subr.bf16.mxu0 0
  %1688 = vmatpush1.bf16.xpose.msra.mxu0 0
  %1689 = vmatprep.subr.bf16.mxu0 0
  %1690 = vmatpush1.bf16.xpose.msra.mxu0 0
  %1691 = vmatprep.subr.bf16.mxu0 0
  %1692 = vmatpush1.bf16.xpose.msra.mxu0 0
  %1693 = vmatprep.subr.bf16.mxu0 0
  %1694 = vmatpush1.bf16.xpose.msra.mxu0 0
  %1695 = vmatprep.mubr.bf16.mxu0 0
  %1696 = vmatmul.mubr.bf16.gmra.mrb[0].mxu0 %v1658
  %v1697 = vpop.f32.mrb[0].mxu0
  %v1698 = vadd.f32 %v1156, %v1697
  %v1699 = vpop.f32.mrb[0].mxu0
  %v1700 = vpop.f32.mrb[0].mxu0
  %v1701 = vpop.f32.mrb[0].mxu0
  %1702 = vdwg.mxu0
  %v1704 = vsel %vm577, %v1305, 0
  %v1707 = vsel %vm577, %v1457, 0
  %1709 = vmatprep.subr.bf16.mxu0 0
  %1710 = vmatpush1.bf16.xpose.msra.mxu0 %v1707
  %1711 = vmatprep.subr.bf16.mxu0 0
  %1712 = vmatpush1.bf16.xpose.msra.mxu0 0
  %1713 = vmatprep.subr.bf16.mxu0 0
  %1714 = vmatpush1.bf16.xpose.msra.mxu0 0
  %1715 = vmatprep.subr.bf16.mxu0 0
  %1716 = vmatpush1.bf16.xpose.msra.mxu0 0
  %1717 = vmatprep.subr.bf16.mxu0 0
  %1718 = vmatpush1.bf16.xpose.msra.mxu0 0
  %1719 = vmatprep.subr.bf16.mxu0 0
  %1720 = vmatpush1.bf16.xpose.msra.mxu0 0
  %1721 = vmatprep.subr.bf16.mxu0 0
  %1722 = vmatpush1.bf16.xpose.msra.mxu0 0
  %1723 = vmatprep.subr.bf16.mxu0 0
  %1724 = vmatpush1.bf16.xpose.msra.mxu0 0
  %1725 = vmatprep.subr.bf16.mxu0 0
  %1726 = vmatpush1.bf16.xpose.msra.mxu0 0
  %1727 = vmatprep.subr.bf16.mxu0 0
  %1728 = vmatpush1.bf16.xpose.msra.mxu0 0
  %1729 = vmatprep.subr.bf16.mxu0 0
  %1730 = vmatpush1.bf16.xpose.msra.mxu0 0
  %1731 = vmatprep.subr.bf16.mxu0 0
  %1732 = vmatpush1.bf16.xpose.msra.mxu0 0
  %1733 = vmatprep.subr.bf16.mxu0 0
  %1734 = vmatpush1.bf16.xpose.msra.mxu0 0
  %1735 = vmatprep.subr.bf16.mxu0 0
  %1736 = vmatpush1.bf16.xpose.msra.mxu0 0
  %1737 = vmatprep.subr.bf16.mxu0 0
  %1738 = vmatpush1.bf16.xpose.msra.mxu0 0
  %1739 = vmatprep.subr.bf16.mxu0 0
  %1740 = vmatpush1.bf16.xpose.msra.mxu0 0
  %1741 = vmatprep.mubr.bf16.mxu0 0
  %1742 = vmatmul.mubr.bf16.gmra.mrb[0].mxu0 %v1704
  %v1743 = vpop.f32.mrb[0].mxu0
  %v1744 = vadd.f32 %v1156, %v1743
  %v1745 = vpop.f32.mrb[0].mxu0
  %v1746 = vpop.f32.mrb[0].mxu0
  %v1747 = vpop.f32.mrb[0].mxu0
  %1748 = vdwg.mxu0
  %v1750 = vsel %vm577, %v1306, 0
  %v1753 = vsel %vm577, %v1458, 0
  %1755 = vmatprep.subr.bf16.mxu0 0
  %1756 = vmatpush1.bf16.xpose.msra.mxu0 %v1753
  %1757 = vmatprep.subr.bf16.mxu0 0
  %1758 = vmatpush1.bf16.xpose.msra.mxu0 0
  %1759 = vmatprep.subr.bf16.mxu0 0
  %1760 = vmatpush1.bf16.xpose.msra.mxu0 0
  %1761 = vmatprep.subr.bf16.mxu0 0
  %1762 = vmatpush1.bf16.xpose.msra.mxu0 0
  %1763 = vmatprep.subr.bf16.mxu0 0
  %1764 = vmatpush1.bf16.xpose.msra.mxu0 0
  %1765 = vmatprep.subr.bf16.mxu0 0
  %1766 = vmatpush1.bf16.xpose.msra.mxu0 0
  %1767 = vmatprep.subr.bf16.mxu0 0
  %1768 = vmatpush1.bf16.xpose.msra.mxu0 0
  %1769 = vmatprep.subr.bf16.mxu0 0
  %1770 = vmatpush1.bf16.xpose.msra.mxu0 0
  %1771 = vmatprep.subr.bf16.mxu0 0
  %1772 = vmatpush1.bf16.xpose.msra.mxu0 0
  %1773 = vmatprep.subr.bf16.mxu0 0
  %1774 = vmatpush1.bf16.xpose.msra.mxu0 0
  %1775 = vmatprep.subr.bf16.mxu0 0
  %1776 = vmatpush1.bf16.xpose.msra.mxu0 0
  %1777 = vmatprep.subr.bf16.mxu0 0
  %1778 = vmatpush1.bf16.xpose.msra.mxu0 0
  %1779 = vmatprep.subr.bf16.mxu0 0
  %1780 = vmatpush1.bf16.xpose.msra.mxu0 0
  %1781 = vmatprep.subr.bf16.mxu0 0
  %1782 = vmatpush1.bf16.xpose.msra.mxu0 0
  %1783 = vmatprep.subr.bf16.mxu0 0
  %1784 = vmatpush1.bf16.xpose.msra.mxu0 0
  %1785 = vmatprep.subr.bf16.mxu0 0
  %1786 = vmatpush1.bf16.xpose.msra.mxu0 0
  %1787 = vmatprep.mubr.bf16.mxu0 0
  %1788 = vmatmul.mubr.bf16.gmra.mrb[0].mxu0 %v1750
  %v1789 = vpop.f32.mrb[0].mxu0
  %v1790 = vadd.f32 %v1156, %v1789
  %v1791 = vpop.f32.mrb[0].mxu0
  %v1792 = vpop.f32.mrb[0].mxu0
  %v1793 = vpop.f32.mrb[0].mxu0
  %1794 = vdwg.mxu0
  %v1795 = vsel %vm577, %v1652, -inf
  %1796 = vmax.xlane.f32.xlu0 %v1795
  %v1797 = vpop.xlane.xlu0 %1796
  %v1798 = vsel %vm577, %v1698, -inf
  %1799 = vmax.xlane.f32.xlu0 %v1798
  %v1800 = vpop.xlane.xlu0 %1799
  %v1801 = vsel %vm577, %v1744, -inf
  %1802 = vmax.xlane.f32.xlu0 %v1801
  %v1803 = vpop.xlane.xlu0 %1802
  %v1804 = vsel %vm577, %v1790, -inf
  %1805 = vmax.xlane.f32.xlu0 %v1804
  %v1806 = vpop.xlane.xlu0 %1805
  %v1807 = vsub.f32 %v1652, %v1797
  %v1808 = vsub.f32 %v1698, %v1800
  %v1809 = vsub.f32 %v1744, %v1803
  %v1810 = vsub.f32 %v1790, %v1806
  %v1811 = vmul.f32 %v1807, 1.442695
  %v1812 = vpow.pop %v1811
  %v1813 = vmul.f32 %v1808, 1.442695
  %v1814 = vpow.pop %v1813
  %v1815 = vmul.f32 %v1809, 1.442695
  %v1816 = vpow.pop %v1815
  %v1817 = vmul.f32 %v1810, 1.442695
  %v1818 = vpow.pop %v1817
  %v1819 = vsel %vm577, %v1812, 0.0
  %1820 = vadd.xlane.f32.xlu0 %v1819
  %v1821 = vpop.xlane.xlu0 %1820
  %v1822 = vsel %vm577, %v1814, 0.0
  %1823 = vadd.xlane.f32.xlu0 %v1822
  %v1824 = vpop.xlane.xlu0 %1823
  %v1825 = vsel %vm577, %v1816, 0.0
  %1826 = vadd.xlane.f32.xlu0 %v1825
  %v1827 = vpop.xlane.xlu0 %1826
  %v1828 = vsel %vm577, %v1818, 0.0
  %1829 = vadd.xlane.f32.xlu0 %v1828
  %v1830 = vpop.xlane.xlu0 %1829
  %v1831 = vrcp.pop %v1821
  %v1832 = vrcp.pop %v1824
  %v1833 = vrcp.pop %v1827
  %v1834 = vrcp.pop %v1830
  %v1835 = vmul.f32 %v1812, %v1831
  %v1836 = vmul.f32 %v1814, %v1832
  %v1837 = vmul.f32 %v1816, %v1833
  %v1838 = vmul.f32 %v1818, %v1834
  %v1839 = vpack.c.bf16 %v1835, %v1835
  %v1840 = vpack.c.bf16 %v1836, %v1836
  %v1841 = vpack.c.bf16 %v1837, %v1837
  %v1842 = vpack.c.bf16 %v1838, %v1838
  %v1844 = vsel %vm577, %v1839, 0
  %v1847 = vsel %vm813, %v1607, 0
  %1849 = vmatprep.subr.bf16.mxu0 0
  %1850 = vmatpush1.bf16.msra.mxu0 %v1847
  %1851 = vmatprep.subr.bf16.mxu0 0
  %1852 = vmatpush1.bf16.msra.mxu0 0
  %1853 = vmatprep.subr.bf16.mxu0 0
  %1854 = vmatpush1.bf16.msra.mxu0 0
  %1855 = vmatprep.subr.bf16.mxu0 0
  %1856 = vmatpush1.bf16.msra.mxu0 0
  %1857 = vmatprep.subr.bf16.mxu0 0
  %1858 = vmatpush1.bf16.msra.mxu0 0
  %1859 = vmatprep.subr.bf16.mxu0 0
  %1860 = vmatpush1.bf16.msra.mxu0 0
  %1861 = vmatprep.subr.bf16.mxu0 0
  %1862 = vmatpush1.bf16.msra.mxu0 0
  %1863 = vmatprep.subr.bf16.mxu0 0
  %1864 = vmatpush1.bf16.msra.mxu0 0
  %1865 = vmatprep.subr.bf16.mxu0 0
  %1866 = vmatpush1.bf16.msra.mxu0 0
  %1867 = vmatprep.subr.bf16.mxu0 0
  %1868 = vmatpush1.bf16.msra.mxu0 0
  %1869 = vmatprep.subr.bf16.mxu0 0
  %1870 = vmatpush1.bf16.msra.mxu0 0
  %1871 = vmatprep.subr.bf16.mxu0 0
  %1872 = vmatpush1.bf16.msra.mxu0 0
  %1873 = vmatprep.subr.bf16.mxu0 0
  %1874 = vmatpush1.bf16.msra.mxu0 0
  %1875 = vmatprep.subr.bf16.mxu0 0
  %1876 = vmatpush1.bf16.msra.mxu0 0
  %1877 = vmatprep.subr.bf16.mxu0 0
  %1878 = vmatpush1.bf16.msra.mxu0 0
  %1879 = vmatprep.subr.bf16.mxu0 0
  %1880 = vmatpush1.bf16.msra.mxu0 0
  %1881 = vmatprep.mubr.bf16.mxu0 0
  %1882 = vmatmul.mubr.bf16.gmra.mrb[0].mxu0 %v1844
  %v1883 = vpop.f32.mrb[0].mxu0
  %v1884 = vadd.f32 0.0, %v1883
  %v1885 = vpop.f32.mrb[0].mxu0
  %v1886 = vpop.f32.mrb[0].mxu0
  %v1887 = vpop.f32.mrb[0].mxu0
  %1888 = vdwg.mxu0
  %v1890 = vsel %vm577, %v1840, 0
  %v1893 = vsel %vm813, %v1608, 0
  %1895 = vmatprep.subr.bf16.mxu0 0
  %1896 = vmatpush1.bf16.msra.mxu0 %v1893
  %1897 = vmatprep.subr.bf16.mxu0 0
  %1898 = vmatpush1.bf16.msra.mxu0 0
  %1899 = vmatprep.subr.bf16.mxu0 0
  %1900 = vmatpush1.bf16.msra.mxu0 0
  %1901 = vmatprep.subr.bf16.mxu0 0
  %1902 = vmatpush1.bf16.msra.mxu0 0
  %1903 = vmatprep.subr.bf16.mxu0 0
  %1904 = vmatpush1.bf16.msra.mxu0 0
  %1905 = vmatprep.subr.bf16.mxu0 0
  %1906 = vmatpush1.bf16.msra.mxu0 0
  %1907 = vmatprep.subr.bf16.mxu0 0
  %1908 = vmatpush1.bf16.msra.mxu0 0
  %1909 = vmatprep.subr.bf16.mxu0 0
  %1910 = vmatpush1.bf16.msra.mxu0 0
  %1911 = vmatprep.subr.bf16.mxu0 0
  %1912 = vmatpush1.bf16.msra.mxu0 0
  %1913 = vmatprep.subr.bf16.mxu0 0
  %1914 = vmatpush1.bf16.msra.mxu0 0
  %1915 = vmatprep.subr.bf16.mxu0 0
  %1916 = vmatpush1.bf16.msra.mxu0 0
  %1917 = vmatprep.subr.bf16.mxu0 0
  %1918 = vmatpush1.bf16.msra.mxu0 0
  %1919 = vmatprep.subr.bf16.mxu0 0
  %1920 = vmatpush1.bf16.msra.mxu0 0
  %1921 = vmatprep.subr.bf16.mxu0 0
  %1922 = vmatpush1.bf16.msra.mxu0 0
  %1923 = vmatprep.subr.bf16.mxu0 0
  %1924 = vmatpush1.bf16.msra.mxu0 0
  %1925 = vmatprep.subr.bf16.mxu0 0
  %1926 = vmatpush1.bf16.msra.mxu0 0
  %1927 = vmatprep.mubr.bf16.mxu0 0
  %1928 = vmatmul.mubr.bf16.gmra.mrb[0].mxu0 %v1890
  %v1929 = vpop.f32.mrb[0].mxu0
  %v1930 = vadd.f32 0.0, %v1929
  %v1931 = vpop.f32.mrb[0].mxu0
  %v1932 = vpop.f32.mrb[0].mxu0
  %v1933 = vpop.f32.mrb[0].mxu0
  %1934 = vdwg.mxu0
  %v1936 = vsel %vm577, %v1841, 0
  %v1939 = vsel %vm813, %v1609, 0
  %1941 = vmatprep.subr.bf16.mxu0 0
  %1942 = vmatpush1.bf16.msra.mxu0 %v1939
  %1943 = vmatprep.subr.bf16.mxu0 0
  %1944 = vmatpush1.bf16.msra.mxu0 0
  %1945 = vmatprep.subr.bf16.mxu0 0
  %1946 = vmatpush1.bf16.msra.mxu0 0
  %1947 = vmatprep.subr.bf16.mxu0 0
  %1948 = vmatpush1.bf16.msra.mxu0 0
  %1949 = vmatprep.subr.bf16.mxu0 0
  %1950 = vmatpush1.bf16.msra.mxu0 0
  %1951 = vmatprep.subr.bf16.mxu0 0
  %1952 = vmatpush1.bf16.msra.mxu0 0
  %1953 = vmatprep.subr.bf16.mxu0 0
  %1954 = vmatpush1.bf16.msra.mxu0 0
  %1955 = vmatprep.subr.bf16.mxu0 0
  %1956 = vmatpush1.bf16.msra.mxu0 0
  %1957 = vmatprep.subr.bf16.mxu0 0
  %1958 = vmatpush1.bf16.msra.mxu0 0
  %1959 = vmatprep.subr.bf16.mxu0 0
  %1960 = vmatpush1.bf16.msra.mxu0 0
  %1961 = vmatprep.subr.bf16.mxu0 0
  %1962 = vmatpush1.bf16.msra.mxu0 0
  %1963 = vmatprep.subr.bf16.mxu0 0
  %1964 = vmatpush1.bf16.msra.mxu0 0
  %1965 = vmatprep.subr.bf16.mxu0 0
  %1966 = vmatpush1.bf16.msra.mxu0 0
  %1967 = vmatprep.subr.bf16.mxu0 0
  %1968 = vmatpush1.bf16.msra.mxu0 0
  %1969 = vmatprep.subr.bf16.mxu0 0
  %1970 = vmatpush1.bf16.msra.mxu0 0
  %1971 = vmatprep.subr.bf16.mxu0 0
  %1972 = vmatpush1.bf16.msra.mxu0 0
  %1973 = vmatprep.mubr.bf16.mxu0 0
  %1974 = vmatmul.mubr.bf16.gmra.mrb[0].mxu0 %v1936
  %v1975 = vpop.f32.mrb[0].mxu0
  %v1976 = vadd.f32 0.0, %v1975
  %v1977 = vpop.f32.mrb[0].mxu0
  %v1978 = vpop.f32.mrb[0].mxu0
  %v1979 = vpop.f32.mrb[0].mxu0
  %1980 = vdwg.mxu0
  %v1982 = vsel %vm577, %v1842, 0
  %v1985 = vsel %vm813, %v1610, 0
  %1987 = vmatprep.subr.bf16.mxu0 0
  %1988 = vmatpush1.bf16.msra.mxu0 %v1985
  %1989 = vmatprep.subr.bf16.mxu0 0
  %1990 = vmatpush1.bf16.msra.mxu0 0
  %1991 = vmatprep.subr.bf16.mxu0 0
  %1992 = vmatpush1.bf16.msra.mxu0 0
  %1993 = vmatprep.subr.bf16.mxu0 0
  %1994 = vmatpush1.bf16.msra.mxu0 0
  %1995 = vmatprep.subr.bf16.mxu0 0
  %1996 = vmatpush1.bf16.msra.mxu0 0
  %1997 = vmatprep.subr.bf16.mxu0 0
  %1998 = vmatpush1.bf16.msra.mxu0 0
  %1999 = vmatprep.subr.bf16.mxu0 0
  %2000 = vmatpush1.bf16.msra.mxu0 0
  %2001 = vmatprep.subr.bf16.mxu0 0
  %2002 = vmatpush1.bf16.msra.mxu0 0
  %2003 = vmatprep.subr.bf16.mxu0 0
  %2004 = vmatpush1.bf16.msra.mxu0 0
  %2005 = vmatprep.subr.bf16.mxu0 0
  %2006 = vmatpush1.bf16.msra.mxu0 0
  %2007 = vmatprep.subr.bf16.mxu0 0
  %2008 = vmatpush1.bf16.msra.mxu0 0
  %2009 = vmatprep.subr.bf16.mxu0 0
  %2010 = vmatpush1.bf16.msra.mxu0 0
  %2011 = vmatprep.subr.bf16.mxu0 0
  %2012 = vmatpush1.bf16.msra.mxu0 0
  %2013 = vmatprep.subr.bf16.mxu0 0
  %2014 = vmatpush1.bf16.msra.mxu0 0
  %2015 = vmatprep.subr.bf16.mxu0 0
  %2016 = vmatpush1.bf16.msra.mxu0 0
  %2017 = vmatprep.subr.bf16.mxu0 0
  %2018 = vmatpush1.bf16.msra.mxu0 0
  %2019 = vmatprep.mubr.bf16.mxu0 0
  %2020 = vmatmul.mubr.bf16.gmra.mrb[0].mxu0 %v1982
  %v2021 = vpop.f32.mrb[0].mxu0
  %v2022 = vadd.f32 0.0, %v2021
  %v2023 = vpop.f32.mrb[0].mxu0
  %v2024 = vpop.f32.mrb[0].mxu0
  %v2025 = vpop.f32.mrb[0].mxu0
  %2026 = vdwg.mxu0
  %v2027 = vcombine.low %v1884, %v1976
  %v2028 = vcombine.high %v1884, %v1976
  %v2030 = vunpack.c.l.s4 1983009808
  %v2031 = vunpack.c.0.s8 %v2030
  %v2032 = vlaneseq
  %v2033 = vshrl.u32 %v2032, 7
  %v2034 = vsub.s32 %v2031, %v2033
  %v2035 = vrot.slane %v2027, %v2034
  %v2037 = vunpack.c.l.s4 1983009808
  %v2038 = vunpack.c.0.s8 %v2037
  %v2039 = vlaneseq
  %v2040 = vshrl.u32 %v2039, 7
  %v2041 = vsub.s32 %v2038, %v2040
  %v2042 = vrot.slane %v2028, %v2041
  %v2043 = vcombine.low %v1930, %v2022
  %v2044 = vcombine.high %v1930, %v2022
  %v2046 = vunpack.c.l.s4 1983009808
  %v2047 = vunpack.c.0.s8 %v2046
  %v2048 = vlaneseq
  %v2049 = vshrl.u32 %v2048, 7
  %v2050 = vsub.s32 %v2047, %v2049
  %v2051 = vrot.slane %v2043, %v2050
  %v2053 = vunpack.c.l.s4 1983009808
  %v2054 = vunpack.c.0.s8 %v2053
  %v2055 = vlaneseq
  %v2056 = vshrl.u32 %v2055, 7
  %v2057 = vsub.s32 %v2054, %v2056
  %v2058 = vrot.slane %v2044, %v2057
  %v2059 = vcombine.low %v2035, %v2051
  %v2060 = vcombine.high %v2035, %v2051
  %v2062 = vunpack.c.l.s4 1934713408
  %v2063 = vunpack.c.0.s8 %v2062
  %v2064 = vlaneseq
  %v2065 = vshrl.u32 %v2064, 7
  %v2066 = vsub.s32 %v2063, %v2065
  %v2067 = vrot.slane %v2059, %v2066
  %v2069 = vunpack.c.l.s4 1934713408
  %v2070 = vunpack.c.0.s8 %v2069
  %v2071 = vlaneseq
  %v2072 = vshrl.u32 %v2071, 7
  %v2073 = vsub.s32 %v2070, %v2072
  %v2074 = vrot.slane %v2060, %v2073
  %v2075 = vcombine.low %v2042, %v2058
  %v2076 = vcombine.high %v2042, %v2058
  %v2078 = vunpack.c.l.s4 1934713408
  %v2079 = vunpack.c.0.s8 %v2078
  %v2080 = vlaneseq
  %v2081 = vshrl.u32 %v2080, 7
  %v2082 = vsub.s32 %v2079, %v2081
  %v2083 = vrot.slane %v2075, %v2082
  %v2085 = vunpack.c.l.s4 1934713408
  %v2086 = vunpack.c.0.s8 %v2085
  %v2087 = vlaneseq
  %v2088 = vshrl.u32 %v2087, 7
  %v2089 = vsub.s32 %v2086, %v2088
  %v2090 = vrot.slane %v2076, %v2089
  %v2091 = vcombine.high %v2067, 0.0
  %v2092 = vcombine.high %v2074, 0.0
  %v2093 = vcombine.high %v2083, 0.0
  %v2094 = vcombine.high %v2090, 0.0
  %v2095 = vcombine.low %v2067, %v2074
  %v2097 = vunpack.c.l.s4 1983009808
  %v2098 = vunpack.c.0.s8 %v2097
  %v2099 = vlaneseq
  %v2100 = vshrl.u32 %v2099, 7
  %v2101 = vsub.s32 %v2098, %v2100
  %v2102 = vrot.slane %v2095, %v2101
  %v2103 = vcombine.low %v2091, %v2092
  %v2105 = vunpack.c.l.s4 1983009808
  %v2106 = vunpack.c.0.s8 %v2105
  %v2107 = vlaneseq
  %v2108 = vshrl.u32 %v2107, 7
  %v2109 = vsub.s32 %v2106, %v2108
  %v2110 = vrot.slane %v2103, %v2109
  %v2111 = vcombine.low %v2083, %v2090
  %v2113 = vunpack.c.l.s4 1983009808
  %v2114 = vunpack.c.0.s8 %v2113
  %v2115 = vlaneseq
  %v2116 = vshrl.u32 %v2115, 7
  %v2117 = vsub.s32 %v2114, %v2116
  %v2118 = vrot.slane %v2111, %v2117
  %v2119 = vcombine.low %v2093, %v2094
  %v2121 = vunpack.c.l.s4 1983009808
  %v2122 = vunpack.c.0.s8 %v2121
  %v2123 = vlaneseq
  %v2124 = vshrl.u32 %v2123, 7
  %v2125 = vsub.s32 %v2122, %v2124
  %v2126 = vrot.slane %v2119, %v2125
  %v2127 = vcombine.low %v2102, %v2110
  %v2128 = vcombine.high %v2102, %v2110
  %v2130 = vunpack.c.l.s4 1934713408
  %v2131 = vunpack.c.0.s8 %v2130
  %v2132 = vlaneseq
  %v2133 = vshrl.u32 %v2132, 7
  %v2134 = vsub.s32 %v2131, %v2133
  %v2135 = vrot.slane %v2127, %v2134
  %v2137 = vunpack.c.l.s4 1934713408
  %v2138 = vunpack.c.0.s8 %v2137
  %v2139 = vlaneseq
  %v2140 = vshrl.u32 %v2139, 7
  %v2141 = vsub.s32 %v2138, %v2140
  %v2142 = vrot.slane %v2128, %v2141
  %v2143 = vcombine.low %v2118, %v2126
  %v2144 = vcombine.high %v2118, %v2126
  %v2146 = vunpack.c.l.s4 1934713408
  %v2147 = vunpack.c.0.s8 %v2146
  %v2148 = vlaneseq
  %v2149 = vshrl.u32 %v2148, 7
  %v2150 = vsub.s32 %v2147, %v2149
  %v2151 = vrot.slane %v2143, %v2150
  %v2153 = vunpack.c.l.s4 1934713408
  %v2154 = vunpack.c.0.s8 %v2153
  %v2155 = vlaneseq
  %v2156 = vshrl.u32 %v2155, 7
  %v2157 = vsub.s32 %v2154, %v2156
  %v2158 = vrot.slane %v2144, %v2157
  %v2159 = vcombine.low %v2135, %v2151
  %v2160 = vcombine.high %v2135, %v2151
  %v2161 = vcombine.low %v2142, %v2158
  %v2162 = vcombine.high %v2142, %v2158
  %2164 = vrot.lane.b32.xlu0 %v2160, 8
  %v2165 = vpop.permute.xlu0 %2164
  %2168 = vrot.lane.b32.xlu0 %v2161, 16
  %v2169 = vpop.permute.xlu0 %2168
  %2172 = vrot.lane.b32.xlu0 %v2162, 24
  %v2173 = vpop.permute.xlu0 %2172
  %v2175 = vsel %vm577, %v2159, %v2165
  %v2176 = vsel %vm1144, %v2175, %v2169
  %v2177 = vsel %vm1146, %v2176, %v2173
  %v2178 = vpack.c.bf16 %v2177, %v1147
  %v2179 = vld [vmem:[%s4] sm:$0xf]
  %v2180 = vld [vmem:[%s4 + $0x4] sm:$0xf]
  %v2181 = vld [vmem:[%s4 + $0x8] sm:$0xf]
  %v2182 = vld [vmem:[%s4 + $0xc] sm:$0xf]
  %v2183 = vld [vmem:[%s5] sm:$0x1]
  %v2185 = vlaneseq
  %v2186 = vshrl.u32 %v2185, 7
  %v2187 = vsub.s32 0, %v2186
  %v2188 = vrot.slane %v2183, %v2187
  %v2194 = vunpack.c.l.b16 %v2179
  %v2195 = vunpack.c.l.b16 %v2180
  %v2196 = vunpack.c.l.b16 %v2181
  %v2197 = vunpack.c.l.b16 %v2182
  %v2198 = vpack.c.b16 %v2195, %v2194
  %v2199 = vpack.c.b16 %v2197, %v2196
  %v2203 = vsel %vm64, %v2178, 0
  %2205 = vmatprep.subr.bf16.mxu0 0
  %2206 = vmatpush1.bf16.msra.mxu0 %v2198
  %2207 = vmatprep.subr.bf16.mxu0 0
  %2208 = vmatpush1.bf16.msra.mxu0 %v2199
  %2209 = vmatprep.subr.bf16.mxu0 0
  %2210 = vmatpush1.bf16.msra.mxu0 0
  %2211 = vmatprep.subr.bf16.mxu0 0
  %2212 = vmatpush1.bf16.msra.mxu0 0
  %2213 = vmatprep.subr.bf16.mxu0 0
  %2214 = vmatpush1.bf16.msra.mxu0 0
  %2215 = vmatprep.subr.bf16.mxu0 0
  %2216 = vmatpush1.bf16.msra.mxu0 0
  %2217 = vmatprep.subr.bf16.mxu0 0
  %2218 = vmatpush1.bf16.msra.mxu0 0
  %2219 = vmatprep.subr.bf16.mxu0 0
  %2220 = vmatpush1.bf16.msra.mxu0 0
  %2221 = vmatprep.subr.bf16.mxu0 0
  %2222 = vmatpush1.bf16.msra.mxu0 0
  %2223 = vmatprep.subr.bf16.mxu0 0
  %2224 = vmatpush1.bf16.msra.mxu0 0
  %2225 = vmatprep.subr.bf16.mxu0 0
  %2226 = vmatpush1.bf16.msra.mxu0 0
  %2227 = vmatprep.subr.bf16.mxu0 0
  %2228 = vmatpush1.bf16.msra.mxu0 0
  %2229 = vmatprep.subr.bf16.mxu0 0
  %2230 = vmatpush1.bf16.msra.mxu0 0
  %2231 = vmatprep.subr.bf16.mxu0 0
  %2232 = vmatpush1.bf16.msra.mxu0 0
  %2233 = vmatprep.subr.bf16.mxu0 0
  %2234 = vmatpush1.bf16.msra.mxu0 0
  %2235 = vmatprep.subr.bf16.mxu0 0
  %2236 = vmatpush1.bf16.msra.mxu0 0
  %2237 = vmatprep.mubr.bf16.mxu0 0
  %2238 = vmatmul.mubr.bf16.gmra.mrb[0].mxu0 %v2203
  %v2239 = vpop.f32.mrb[0].mxu0
  %v2240 = vadd.f32 %v2188, %v2239
  %v2241 = vpop.f32.mrb[0].mxu0
  %v2242 = vpop.f32.mrb[0].mxu0
  %v2243 = vadd.f32 %v2188, %v2242
  %v2244 = vpop.f32.mrb[0].mxu0
  %2245 = vdwg.mxu0
  %v2246 = vadd.f32 %v32, %v2240
  %v2247 = vadd.f32 %v33, %v2243
  %v2248 = vld [vmem:[%s6] sm:$0x1]
  %v2249 = vld [vmem:[%s7] sm:$0x1]
  %v2250 = vsel %vm64, %v2246, 0.0
  %2251 = vadd.xlane.f32.xlu0 %v2250
  %v2252 = vpop.xlane.xlu0 %2251
  %v2253 = vsel %vm64, %v2247, 0.0
  %2254 = vadd.xlane.f32.xlu0 %v2253
  %v2255 = vpop.xlane.xlu0 %2254
  %v2256 = vrcp.pop 32.0
  %v2257 = vmul.f32 %v2252, %v2256
  %v2258 = vmul.f32 %v2255, %v2256
  %v2259 = vsub.f32 %v2246, %v2257
  %v2260 = vsub.f32 %v2247, %v2258
  %v2261 = vmul.f32 %v2259, %v2259
  %v2262 = vmul.f32 %v2260, %v2260
  %v2263 = vsel %vm64, %v2261, 0.0
  %2264 = vadd.xlane.f32.xlu0 %v2263
  %v2265 = vpop.xlane.xlu0 %2264
  %v2266 = vsel %vm64, %v2262, 0.0
  %2267 = vadd.xlane.f32.xlu0 %v2266
  %v2268 = vpop.xlane.xlu0 %2267
  %v2269 = vmul.f32 %v2265, %v2256
  %v2270 = vmul.f32 %v2268, %v2256
  %v2271 = vadd.f32 %v2269, 1e-05
  %v2272 = vadd.f32 %v2270, 1e-05
  %v2273 = vrsqrt.pop %v2271
  %v2274 = vrsqrt.pop %v2272
  %v2275 = vmul.f32 %v2259, %v2273
  %v2276 = vmul.f32 %v2260, %v2274
  %v2278 = vlaneseq
  %v2279 = vshrl.u32 %v2278, 7
  %v2280 = vsub.s32 0, %v2279
  %v2281 = vrot.slane %v2248, %v2280
  %v2283 = vmul.f32 %v2275, %v2281
  %v2284 = vmul.f32 %v2276, %v2281
  %v2286 = vlaneseq
  %v2287 = vshrl.u32 %v2286, 7
  %v2288 = vsub.s32 0, %v2287
  %v2289 = vrot.slane %v2249, %v2288
  %v2291 = vadd.f32 %v2283, %v2289
  %v2292 = vadd.f32 %v2284, %v2289
  %v2293 = vpack.c.bf16 %v2291, %v2291
  %v2294 = vpack.c.bf16 %v2292, %v2292
  %vm2295 = vcmask 257024
  %2296 = vst.msk [vmem:[%s8] sm:$0xf] %vm2295, %v2293
  %2297 = vst.msk [vmem:[%s8 + $0x4] sm:$0xf] %vm2295, %v2294
  // Predicated region
  $region34: #{_lambda_.11} parent=0 // pred_check
    _
  $region35: #{_lambda_.11} parent=0 // pred_check_branch
    %2299 = sbr.rel (0) target = $region37
  $region36: #{_lambda_.11} parent=0 // pred_region
    _
  $region37: #{_lambda_.11} parent=0 // pred_fallthru
    _
  // Predicated region
  $region38: #{_lambda_.11} parent=0 // pred_check
    _
  $region39: #{_lambda_.11} parent=0 // pred_check_branch
    %2301 = sbr.rel (0) target = $region41
  $region40: #{_lambda_.11} parent=0 // pred_region
    _
  $region41: #{_lambda_.11} parent=0 // pred_fallthru
    _

// kernel: _lambda_.12
$region0: #{_lambda_.12}
  #allocation0 [shape = 'u32[]', space=smem, size = 0x4, offset = 0x4, fixed_abs, tag = 'smem constant byte address 0x4 - core index']
  #allocation1 [shape = 'u32[144,128]{1,0:T(1,128)}', space=vmem, size = 0x12000, scoped, tag = 'internal scratch']
  %s0 = inlined_call_operand.vmem [shape: bf16[2,8,32], index: 0, kind: input, shape index: {}]
  %s1 = inlined_call_operand.vmem [shape: bf16[2,4,32], index: 1, kind: input, shape index: {}]
  %s2 = inlined_call_operand.vmem [shape: bf16[32,32], index: 2, kind: input, shape index: {}]
  %s3 = inlined_call_operand.vmem [shape: f32[1,32], index: 3, kind: input, shape index: {}]
  %s4 = inlined_call_operand.vmem [shape: bf16[32,64], index: 4, kind: input, shape index: {}]
  %s5 = inlined_call_operand.vmem [shape: f32[1,64], index: 5, kind: input, shape index: {}]
  %s6 = inlined_call_operand.vmem [shape: bf16[32,32], index: 6, kind: input, shape index: {}]
  %s7 = inlined_call_operand.vmem [shape: f32[1,32], index: 7, kind: input, shape index: {}]
  %s8 = inlined_call_operand.vmem [shape: f32[1,32], index: 8, kind: input, shape index: {}]
  %s9 = inlined_call_operand.vmem [shape: f32[1,32], index: 9, kind: input, shape index: {}]
  %s10 = inlined_call_operand.vmem [shape: bf16[2,8,32], index: 10, kind: output, shape index: {}]
  %s11 = sld [smem:[#allocation0]]
  $region50: #{_lambda_.12} parent=0
    _
  %s13 = ssub.s32 1, %s11
  %s14 = scalar_select 0, %s13, %s11
  // Predicated region
  $region2: #{_lambda_.12} parent=0 // pred_check
    _
  $region3: #{_lambda_.12} parent=0 // pred_check_branch
    %16 = sbr.rel (0) target = $region5
  $region4: #{_lambda_.12} parent=0 // pred_region
    _
  $region5: #{_lambda_.12} parent=0 // pred_fallthru
    _
  // Predicated region
  $region6: #{_lambda_.12} parent=0 // pred_check
    _
  $region7: #{_lambda_.12} parent=0 // pred_check_branch
    %18 = sbr.rel (0) target = $region9
  $region8: #{_lambda_.12} parent=0 // pred_region
    _
  $region9: #{_lambda_.12} parent=0 // pred_fallthru
    _
  // Predicated region
  $region10: #{_lambda_.12} parent=0 // pred_check
    _
  $region11: #{_lambda_.12} parent=0 // pred_check_branch
    %20 = sbr.rel (0) target = $region13
  $region12: #{_lambda_.12} parent=0 // pred_region
    _
  $region13: #{_lambda_.12} parent=0 // pred_fallthru
    _
  // Predicated region
  $region14: #{_lambda_.12} parent=0 // pred_check
    _
  $region15: #{_lambda_.12} parent=0 // pred_check_branch
    %22 = sbr.rel (0) target = $region17
  $region16: #{_lambda_.12} parent=0 // pred_region
    _
  $region17: #{_lambda_.12} parent=0 // pred_fallthru
    _
  // Predicated region
  $region18: #{_lambda_.12} parent=0 // pred_check
    _
  $region19: #{_lambda_.12} parent=0 // pred_check_branch
    %24 = sbr.rel (0) target = $region21
  $region20: #{_lambda_.12} parent=0 // pred_region
    _
  $region21: #{_lambda_.12} parent=0 // pred_fallthru
    _
  // Predicated region
  $region22: #{_lambda_.12} parent=0 // pred_check
    _
  $region23: #{_lambda_.12} parent=0 // pred_check_branch
    %26 = sbr.rel (0) target = $region25
  $region24: #{_lambda_.12} parent=0 // pred_region
    _
  $region25: #{_lambda_.12} parent=0 // pred_fallthru
    _
  // Predicated region
  $region26: #{_lambda_.12} parent=0 // pred_check
    _
  $region27: #{_lambda_.12} parent=0 // pred_check_branch
    %28 = sbr.rel (0) target = $region29
  $region28: #{_lambda_.12} parent=0 // pred_region
    _
  $region29: #{_lambda_.12} parent=0 // pred_fallthru
    _
  // Predicated region
  $region30: #{_lambda_.12} parent=0 // pred_check
    _
  $region31: #{_lambda_.12} parent=0 // pred_check_branch
    %30 = sbr.rel (0) target = $region33
  $region32: #{_lambda_.12} parent=0 // pred_region
    _
  $region33: #{_lambda_.12} parent=0 // pred_fallthru
    _
  // Predicated region
  $region34: #{_lambda_.12} parent=0 // pred_check
    _
  $region35: #{_lambda_.12} parent=0 // pred_check_branch
    %32 = sbr.rel (0) target = $region37
  $region36: #{_lambda_.12} parent=0 // pred_region
    _
  $region37: #{_lambda_.12} parent=0 // pred_fallthru
    _
  // Predicated region
  $region38: #{_lambda_.12} parent=0 // pred_check
    _
  $region39: #{_lambda_.12} parent=0 // pred_check_branch
    %34 = sbr.rel (0) target = $region41
  $region40: #{_lambda_.12} parent=0 // pred_region
    _
  $region41: #{_lambda_.12} parent=0 // pred_fallthru
    _
  %v36 = vld [vmem:[%s0] sm:$0xf]
  %v37 = vld [vmem:[%s0 + $0x4] sm:$0xf]
  %v38 = vunpack.c.l.bf16 %v36
  %v39 = vunpack.c.l.bf16 %v37
  %v40 = vld [vmem:[%s1] sm:$0x3]
  %v41 = vld [vmem:[%s1 + $0x2] sm:$0x3]
  %v42 = vld [vmem:[%s2] sm:$0xf]
  %v43 = vld [vmem:[%s2 + $0x4] sm:$0xf]
  %v44 = vld [vmem:[%s2 + $0x8] sm:$0xf]
  %v45 = vld [vmem:[%s2 + $0xc] sm:$0xf]
  %v46 = vld [vmem:[%s3] sm:$0x1]
  %v48 = vlaneseq
  %v49 = vshrl.u32 %v48, 7
  %v50 = vsub.s32 0, %v49
  %v51 = vrot.slane %v46, %v50
  %v55 = vunpack.c.l.b16 %v36
  %v56 = vunpack.c.l.b16 %v37
  %v57 = vpack.c.b16 %v56, %v55
  %v62 = vunpack.c.l.b16 %v42
  %v63 = vunpack.c.l.b16 %v43
  %v64 = vunpack.c.l.b16 %v44
  %v65 = vunpack.c.l.b16 %v45
  %v66 = vpack.c.b16 %v63, %v62
  %v67 = vpack.c.b16 %v65, %v64
  %vm70 = vcmask 261120
  %v72 = vsel %vm70, %v57, 0
  %74 = vmatprep.subr.bf16.mxu0 0
  %75 = vmatpush1.bf16.msra.mxu0 %v66
  %76 = vmatprep.subr.bf16.mxu0 0
  %77 = vmatpush1.bf16.msra.mxu0 %v67
  %78 = vmatprep.subr.bf16.mxu0 0
  %79 = vmatpush1.bf16.msra.mxu0 0
  %80 = vmatprep.subr.bf16.mxu0 0
  %81 = vmatpush1.bf16.msra.mxu0 0
  %82 = vmatprep.subr.bf16.mxu0 0
  %83 = vmatpush1.bf16.msra.mxu0 0
  %84 = vmatprep.subr.bf16.mxu0 0
  %85 = vmatpush1.bf16.msra.mxu0 0
  %86 = vmatprep.subr.bf16.mxu0 0
  %87 = vmatpush1.bf16.msra.mxu0 0
  %88 = vmatprep.subr.bf16.mxu0 0
  %89 = vmatpush1.bf16.msra.mxu0 0
  %90 = vmatprep.subr.bf16.mxu0 0
  %91 = vmatpush1.bf16.msra.mxu0 0
  %92 = vmatprep.subr.bf16.mxu0 0
  %93 = vmatpush1.bf16.msra.mxu0 0
  %94 = vmatprep.subr.bf16.mxu0 0
  %95 = vmatpush1.bf16.msra.mxu0 0
  %96 = vmatprep.subr.bf16.mxu0 0
  %97 = vmatpush1.bf16.msra.mxu0 0
  %98 = vmatprep.subr.bf16.mxu0 0
  %99 = vmatpush1.bf16.msra.mxu0 0
  %100 = vmatprep.subr.bf16.mxu0 0
  %101 = vmatpush1.bf16.msra.mxu0 0
  %102 = vmatprep.subr.bf16.mxu0 0
  %103 = vmatpush1.bf16.msra.mxu0 0
  %104 = vmatprep.subr.bf16.mxu0 0
  %105 = vmatpush1.bf16.msra.mxu0 0
  %106 = vmatprep.mubr.bf16.mxu0 0
  %107 = vmatmul.mubr.bf16.gmra.mrb[0].mxu0 %v72
  %v108 = vpop.f32.mrb[0].mxu0
  %v109 = vadd.f32 %v51, %v108
  %v110 = vpop.f32.mrb[0].mxu0
  %v111 = vpop.f32.mrb[0].mxu0
  %v112 = vadd.f32 %v51, %v111
  %v113 = vpop.f32.mrb[0].mxu0
  %114 = vdwg.mxu0
  %v115 = vld [vmem:[%s4] sm:$0xf]
  %v116 = vld [vmem:[%s4 + $0x4] sm:$0xf]
  %v117 = vld [vmem:[%s4 + $0x8] sm:$0xf]
  %v118 = vld [vmem:[%s4 + $0xc] sm:$0xf]
  %v119 = vld [vmem:[%s5] sm:$0x1]
  %v121 = vlaneseq
  %v122 = vshrl.u32 %v121, 7
  %v123 = vsub.s32 0, %v122
  %v124 = vrot.slane %v119, %v123
  %v128 = vcombine.low %v40, %v41
  %v130 = vunpack.c.l.s4 1983009808
  %v131 = vunpack.c.0.s8 %v130
  %v132 = vlaneseq
  %v133 = vshrl.u32 %v132, 7
  %v134 = vsub.s32 %v131, %v133
  %v135 = vrot.slane %v128, %v134
  %v140 = vunpack.c.l.b16 %v115
  %v141 = vunpack.c.l.b16 %v116
  %v142 = vunpack.c.l.b16 %v117
  %v143 = vunpack.c.l.b16 %v118
  %v144 = vpack.c.b16 %v141, %v140
  %v145 = vpack.c.b16 %v143, %v142
  %v149 = vsel %vm70, %v135, 0
  %151 = vmatprep.subr.bf16.mxu0 0
  %152 = vmatpush1.bf16.msra.mxu0 %v144
  %153 = vmatprep.subr.bf16.mxu0 0
  %154 = vmatpush1.bf16.msra.mxu0 %v145
  %155 = vmatprep.subr.bf16.mxu0 0
  %156 = vmatpush1.bf16.msra.mxu0 0
  %157 = vmatprep.subr.bf16.mxu0 0
  %158 = vmatpush1.bf16.msra.mxu0 0
  %159 = vmatprep.subr.bf16.mxu0 0
  %160 = vmatpush1.bf16.msra.mxu0 0
  %161 = vmatprep.subr.bf16.mxu0 0
  %162 = vmatpush1.bf16.msra.mxu0 0
  %163 = vmatprep.subr.bf16.mxu0 0
  %164 = vmatpush1.bf16.msra.mxu0 0
  %165 = vmatprep.subr.bf16.mxu0 0
  %166 = vmatpush1.bf16.msra.mxu0 0
  %167 = vmatprep.subr.bf16.mxu0 0
  %168 = vmatpush1.bf16.msra.mxu0 0
  %169 = vmatprep.subr.bf16.mxu0 0
  %170 = vmatpush1.bf16.msra.mxu0 0
  %171 = vmatprep.subr.bf16.mxu0 0
  %172 = vmatpush1.bf16.msra.mxu0 0
  %173 = vmatprep.subr.bf16.mxu0 0
  %174 = vmatpush1.bf16.msra.mxu0 0
  %175 = vmatprep.subr.bf16.mxu0 0
  %176 = vmatpush1.bf16.msra.mxu0 0
  %177 = vmatprep.subr.bf16.mxu0 0
  %178 = vmatpush1.bf16.msra.mxu0 0
  %179 = vmatprep.subr.bf16.mxu0 0
  %180 = vmatpush1.bf16.msra.mxu0 0
  %181 = vmatprep.subr.bf16.mxu0 0
  %182 = vmatpush1.bf16.msra.mxu0 0
  %183 = vmatprep.mubr.bf16.mxu0 0
  %184 = vmatmul.mubr.bf16.gmra.mrb[0].mxu0 %v149
  %v185 = vpop.f32.mrb[0].mxu0
  %v186 = vadd.f32 %v124, %v185
  %v187 = vpop.f32.mrb[0].mxu0
  %v188 = vpop.f32.mrb[0].mxu0
  %v189 = vpop.f32.mrb[0].mxu0
  %190 = vdwg.mxu0
  %192 = vrot.lane.b32.xlu0 %v109, 120
  %v193 = vpop.permute.xlu0 %192
  %195 = vrot.lane.b32.xlu0 %v109, 112
  %v196 = vpop.permute.xlu0 %195
  %198 = vrot.lane.b32.xlu0 %v109, 104
  %v199 = vpop.permute.xlu0 %198
  %v201 = vcombine.low %v109, %v196
  %v202 = vcombine.high %v109, %v196
  %v204 = vunpack.c.l.s4 1983009808
  %v205 = vunpack.c.0.s8 %v204
  %v206 = vlaneseq
  %v207 = vshrl.u32 %v206, 7
  %v208 = vsub.s32 %v205, %v207
  %v209 = vrot.slane %v201, %v208
  %v211 = vunpack.c.l.s4 1983009808
  %v212 = vunpack.c.0.s8 %v211
  %v213 = vlaneseq
  %v214 = vshrl.u32 %v213, 7
  %v215 = vsub.s32 %v212, %v214
  %v216 = vrot.slane %v202, %v215
  %v217 = vcombine.low %v193, %v199
  %v218 = vcombine.high %v193, %v199
  %v220 = vunpack.c.l.s4 1983009808
  %v221 = vunpack.c.0.s8 %v220
  %v222 = vlaneseq
  %v223 = vshrl.u32 %v222, 7
  %v224 = vsub.s32 %v221, %v223
  %v225 = vrot.slane %v217, %v224
  %v227 = vunpack.c.l.s4 1983009808
  %v228 = vunpack.c.0.s8 %v227
  %v229 = vlaneseq
  %v230 = vshrl.u32 %v229, 7
  %v231 = vsub.s32 %v228, %v230
  %v232 = vrot.slane %v218, %v231
  %v233 = vcombine.low %v209, %v225
  %v234 = vcombine.high %v209, %v225
  %v236 = vunpack.c.l.s4 1934713408
  %v237 = vunpack.c.0.s8 %v236
  %v238 = vlaneseq
  %v239 = vshrl.u32 %v238, 7
  %v240 = vsub.s32 %v237, %v239
  %v241 = vrot.slane %v233, %v240
  %v243 = vunpack.c.l.s4 1934713408
  %v244 = vunpack.c.0.s8 %v243
  %v245 = vlaneseq
  %v246 = vshrl.u32 %v245, 7
  %v247 = vsub.s32 %v244, %v246
  %v248 = vrot.slane %v234, %v247
  %v249 = vcombine.low %v216, %v232
  %v250 = vcombine.high %v216, %v232
  %v252 = vunpack.c.l.s4 1934713408
  %v253 = vunpack.c.0.s8 %v252
  %v254 = vlaneseq
  %v255 = vshrl.u32 %v254, 7
  %v256 = vsub.s32 %v253, %v255
  %v257 = vrot.slane %v249, %v256
  %v259 = vunpack.c.l.s4 1934713408
  %v260 = vunpack.c.0.s8 %v259
  %v261 = vlaneseq
  %v262 = vshrl.u32 %v261, 7
  %v263 = vsub.s32 %v260, %v262
  %v264 = vrot.slane %v250, %v263
  %v265 = vcombine.high %v241, 0.0
  %v266 = vcombine.high %v248, 0.0
  %v267 = vcombine.high %v257, 0.0
  %v268 = vcombine.high %v264, 0.0
  %v269 = vcombine.low %v241, %v248
  %v271 = vunpack.c.l.s4 1983009808
  %v272 = vunpack.c.0.s8 %v271
  %v273 = vlaneseq
  %v274 = vshrl.u32 %v273, 7
  %v275 = vsub.s32 %v272, %v274
  %v276 = vrot.slane %v269, %v275
  %v277 = vcombine.low %v265, %v266
  %v279 = vunpack.c.l.s4 1983009808
  %v280 = vunpack.c.0.s8 %v279
  %v281 = vlaneseq
  %v282 = vshrl.u32 %v281, 7
  %v283 = vsub.s32 %v280, %v282
  %v284 = vrot.slane %v277, %v283
  %v285 = vcombine.low %v257, %v264
  %v287 = vunpack.c.l.s4 1983009808
  %v288 = vunpack.c.0.s8 %v287
  %v289 = vlaneseq
  %v290 = vshrl.u32 %v289, 7
  %v291 = vsub.s32 %v288, %v290
  %v292 = vrot.slane %v285, %v291
  %v293 = vcombine.low %v267, %v268
  %v295 = vunpack.c.l.s4 1983009808
  %v296 = vunpack.c.0.s8 %v295
  %v297 = vlaneseq
  %v298 = vshrl.u32 %v297, 7
  %v299 = vsub.s32 %v296, %v298
  %v300 = vrot.slane %v293, %v299
  %v301 = vcombine.low %v276, %v284
  %v302 = vcombine.high %v276, %v284
  %v304 = vunpack.c.l.s4 1934713408
  %v305 = vunpack.c.0.s8 %v304
  %v306 = vlaneseq
  %v307 = vshrl.u32 %v306, 7
  %v308 = vsub.s32 %v305, %v307
  %v309 = vrot.slane %v301, %v308
  %v311 = vunpack.c.l.s4 1934713408
  %v312 = vunpack.c.0.s8 %v311
  %v313 = vlaneseq
  %v314 = vshrl.u32 %v313, 7
  %v315 = vsub.s32 %v312, %v314
  %v316 = vrot.slane %v302, %v315
  %v317 = vcombine.low %v292, %v300
  %v318 = vcombine.high %v292, %v300
  %v320 = vunpack.c.l.s4 1934713408
  %v321 = vunpack.c.0.s8 %v320
  %v322 = vlaneseq
  %v323 = vshrl.u32 %v322, 7
  %v324 = vsub.s32 %v321, %v323
  %v325 = vrot.slane %v317, %v324
  %v327 = vunpack.c.l.s4 1934713408
  %v328 = vunpack.c.0.s8 %v327
  %v329 = vlaneseq
  %v330 = vshrl.u32 %v329, 7
  %v331 = vsub.s32 %v328, %v330
  %v332 = vrot.slane %v318, %v331
  %v333 = vcombine.low %v309, %v325
  %v334 = vcombine.high %v309, %v325
  %v335 = vcombine.low %v316, %v332
  %v336 = vcombine.high %v316, %v332
  %v337 = vpack.c.bf16 %v333, %v333
  %v338 = vpack.c.bf16 %v334, %v334
  %v339 = vpack.c.bf16 %v335, %v335
  %v340 = vpack.c.bf16 %v336, %v336
  %342 = vrot.lane.b32.xlu0 %v186, 120
  %v343 = vpop.permute.xlu0 %342
  %345 = vrot.lane.b32.xlu0 %v186, 112
  %v346 = vpop.permute.xlu0 %345
  %348 = vrot.lane.b32.xlu0 %v186, 104
  %v349 = vpop.permute.xlu0 %348
  %v351 = vcombine.low %v186, %v346
  %v353 = vunpack.c.l.s4 1983009808
  %v354 = vunpack.c.0.s8 %v353
  %v355 = vlaneseq
  %v356 = vshrl.u32 %v355, 7
  %v357 = vsub.s32 %v354, %v356
  %v358 = vrot.slane %v351, %v357
  %v359 = vcombine.low %v343, %v349
  %v361 = vunpack.c.l.s4 1983009808
  %v362 = vunpack.c.0.s8 %v361
  %v363 = vlaneseq
  %v364 = vshrl.u32 %v363, 7
  %v365 = vsub.s32 %v362, %v364
  %v366 = vrot.slane %v359, %v365
  %v367 = vcombine.low %v358, %v366
  %v368 = vcombine.high %v358, %v366
  %v370 = vunpack.c.l.s4 1934713408
  %v371 = vunpack.c.0.s8 %v370
  %v372 = vlaneseq
  %v373 = vshrl.u32 %v372, 7
  %v374 = vsub.s32 %v371, %v373
  %v375 = vrot.slane %v367, %v374
  %v377 = vunpack.c.l.s4 1934713408
  %v378 = vunpack.c.0.s8 %v377
  %v379 = vlaneseq
  %v380 = vshrl.u32 %v379, 7
  %v381 = vsub.s32 %v378, %v380
  %v382 = vrot.slane %v368, %v381
  %v383 = vcombine.high %v375, 0.0
  %v384 = vcombine.high %v382, 0.0
  %v385 = vcombine.low %v375, %v382
  %v387 = vunpack.c.l.s4 1983009808
  %v388 = vunpack.c.0.s8 %v387
  %v389 = vlaneseq
  %v390 = vshrl.u32 %v389, 7
  %v391 = vsub.s32 %v388, %v390
  %v392 = vrot.slane %v385, %v391
  %v393 = vcombine.low %v383, %v384
  %v395 = vunpack.c.l.s4 1983009808
  %v396 = vunpack.c.0.s8 %v395
  %v397 = vlaneseq
  %v398 = vshrl.u32 %v397, 7
  %v399 = vsub.s32 %v396, %v398
  %v400 = vrot.slane %v393, %v399
  %v401 = vcombine.low %v392, %v400
  %v402 = vcombine.high %v392, %v400
  %v404 = vunpack.c.l.s4 1934713408
  %v405 = vunpack.c.0.s8 %v404
  %v406 = vlaneseq
  %v407 = vshrl.u32 %v406, 7
  %v408 = vsub.s32 %v405, %v407
  %v409 = vrot.slane %v401, %v408
  %v411 = vunpack.c.l.s4 1934713408
  %v412 = vunpack.c.0.s8 %v411
  %v413 = vlaneseq
  %v414 = vshrl.u32 %v413, 7
  %v415 = vsub.s32 %v412, %v414
  %v416 = vrot.slane %v402, %v415
  %v417 = vcombine.high %v409, 0.0
  %v418 = vcombine.high %v416, 0.0
  %v419 = vpack.c.bf16 %v409, %v409
  %v420 = vpack.c.bf16 %v417, %v417
  %v421 = vpack.c.bf16 %v416, %v416
  %v422 = vpack.c.bf16 %v418, %v418
  %423 = vrot.lane.b32.xlu0 %v186, 96
  %v424 = vpop.permute.xlu0 %423
  %425 = vrot.lane.b32.xlu0 %v343, 96
  %v426 = vpop.permute.xlu0 %425
  %427 = vrot.lane.b32.xlu0 %v346, 96
  %v428 = vpop.permute.xlu0 %427
  %429 = vrot.lane.b32.xlu0 %v349, 96
  %v430 = vpop.permute.xlu0 %429
  %v435 = vcombine.low %v424, %v428
  %v437 = vunpack.c.l.s4 1983009808
  %v438 = vunpack.c.0.s8 %v437
  %v439 = vlaneseq
  %v440 = vshrl.u32 %v439, 7
  %v441 = vsub.s32 %v438, %v440
  %v442 = vrot.slane %v435, %v441
  %v443 = vcombine.low %v426, %v430
  %v445 = vunpack.c.l.s4 1983009808
  %v446 = vunpack.c.0.s8 %v445
  %v447 = vlaneseq
  %v448 = vshrl.u32 %v447, 7
  %v449 = vsub.s32 %v446, %v448
  %v450 = vrot.slane %v443, %v449
  %v451 = vcombine.low %v442, %v450
  %v452 = vcombine.high %v442, %v450
  %v454 = vunpack.c.l.s4 1934713408
  %v455 = vunpack.c.0.s8 %v454
  %v456 = vlaneseq
  %v457 = vshrl.u32 %v456, 7
  %v458 = vsub.s32 %v455, %v457
  %v459 = vrot.slane %v451, %v458
  %v461 = vunpack.c.l.s4 1934713408
  %v462 = vunpack.c.0.s8 %v461
  %v463 = vlaneseq
  %v464 = vshrl.u32 %v463, 7
  %v465 = vsub.s32 %v462, %v464
  %v466 = vrot.slane %v452, %v465
  %v467 = vcombine.high %v459, 0.0
  %v468 = vcombine.high %v466, 0.0
  %v469 = vcombine.low %v459, %v466
  %v471 = vunpack.c.l.s4 1983009808
  %v472 = vunpack.c.0.s8 %v471
  %v473 = vlaneseq
  %v474 = vshrl.u32 %v473, 7
  %v475 = vsub.s32 %v472, %v474
  %v476 = vrot.slane %v469, %v475
  %v477 = vcombine.low %v467, %v468
  %v479 = vunpack.c.l.s4 1983009808
  %v480 = vunpack.c.0.s8 %v479
  %v481 = vlaneseq
  %v482 = vshrl.u32 %v481, 7
  %v483 = vsub.s32 %v480, %v482
  %v484 = vrot.slane %v477, %v483
  %v485 = vcombine.low %v476, %v484
  %v486 = vcombine.high %v476, %v484
  %v488 = vunpack.c.l.s4 1934713408
  %v489 = vunpack.c.0.s8 %v488
  %v490 = vlaneseq
  %v491 = vshrl.u32 %v490, 7
  %v492 = vsub.s32 %v489, %v491
  %v493 = vrot.slane %v485, %v492
  %v495 = vunpack.c.l.s4 1934713408
  %v496 = vunpack.c.0.s8 %v495
  %v497 = vlaneseq
  %v498 = vshrl.u32 %v497, 7
  %v499 = vsub.s32 %v496, %v498
  %v500 = vrot.slane %v486, %v499
  %v501 = vcombine.high %v493, 0.0
  %v502 = vcombine.high %v500, 0.0
  %v503 = vpack.c.bf16 %v493, %v493
  %v504 = vpack.c.bf16 %v501, %v501
  %v505 = vpack.c.bf16 %v500, %v500
  %v506 = vpack.c.bf16 %v502, %v502
  %vm507 = vcmask 64512
  %v509 = vsel %vm507, %v337, 0
  %v512 = vsel %vm507, %v419, 0
  %514 = vmatprep.subr.bf16.mxu0 0
  %515 = vmatpush1.bf16.xpose.msra.mxu0 %v512
  %516 = vmatprep.subr.bf16.mxu0 0
  %517 = vmatpush1.bf16.xpose.msra.mxu0 0
  %518 = vmatprep.subr.bf16.mxu0 0
  %519 = vmatpush1.bf16.xpose.msra.mxu0 0
  %520 = vmatprep.subr.bf16.mxu0 0
  %521 = vmatpush1.bf16.xpose.msra.mxu0 0
  %522 = vmatprep.subr.bf16.mxu0 0
  %523 = vmatpush1.bf16.xpose.msra.mxu0 0
  %524 = vmatprep.subr.bf16.mxu0 0
  %525 = vmatpush1.bf16.xpose.msra.mxu0 0
  %526 = vmatprep.subr.bf16.mxu0 0
  %527 = vmatpush1.bf16.xpose.msra.mxu0 0
  %528 = vmatprep.subr.bf16.mxu0 0
  %529 = vmatpush1.bf16.xpose.msra.mxu0 0
  %530 = vmatprep.subr.bf16.mxu0 0
  %531 = vmatpush1.bf16.xpose.msra.mxu0 0
  %532 = vmatprep.subr.bf16.mxu0 0
  %533 = vmatpush1.bf16.xpose.msra.mxu0 0
  %534 = vmatprep.subr.bf16.mxu0 0
  %535 = vmatpush1.bf16.xpose.msra.mxu0 0
  %536 = vmatprep.subr.bf16.mxu0 0
  %537 = vmatpush1.bf16.xpose.msra.mxu0 0
  %538 = vmatprep.subr.bf16.mxu0 0
  %539 = vmatpush1.bf16.xpose.msra.mxu0 0
  %540 = vmatprep.subr.bf16.mxu0 0
  %541 = vmatpush1.bf16.xpose.msra.mxu0 0
  %542 = vmatprep.subr.bf16.mxu0 0
  %543 = vmatpush1.bf16.xpose.msra.mxu0 0
  %544 = vmatprep.subr.bf16.mxu0 0
  %545 = vmatpush1.bf16.xpose.msra.mxu0 0
  %546 = vmatprep.mubr.bf16.mxu0 0
  %547 = vmatmul.mubr.bf16.gmra.mrb[0].mxu0 %v509
  %v548 = vpop.f32.mrb[0].mxu0
  %v549 = vadd.f32 0.0, %v548
  %v550 = vpop.f32.mrb[0].mxu0
  %v551 = vpop.f32.mrb[0].mxu0
  %v552 = vpop.f32.mrb[0].mxu0
  %553 = vdwg.mxu0
  %v555 = vsel %vm507, %v338, 0
  %v558 = vsel %vm507, %v420, 0
  %560 = vmatprep.subr.bf16.mxu0 0
  %561 = vmatpush1.bf16.xpose.msra.mxu0 %v558
  %562 = vmatprep.subr.bf16.mxu0 0
  %563 = vmatpush1.bf16.xpose.msra.mxu0 0
  %564 = vmatprep.subr.bf16.mxu0 0
  %565 = vmatpush1.bf16.xpose.msra.mxu0 0
  %566 = vmatprep.subr.bf16.mxu0 0
  %567 = vmatpush1.bf16.xpose.msra.mxu0 0
  %568 = vmatprep.subr.bf16.mxu0 0
  %569 = vmatpush1.bf16.xpose.msra.mxu0 0
  %570 = vmatprep.subr.bf16.mxu0 0
  %571 = vmatpush1.bf16.xpose.msra.mxu0 0
  %572 = vmatprep.subr.bf16.mxu0 0
  %573 = vmatpush1.bf16.xpose.msra.mxu0 0
  %574 = vmatprep.subr.bf16.mxu0 0
  %575 = vmatpush1.bf16.xpose.msra.mxu0 0
  %576 = vmatprep.subr.bf16.mxu0 0
  %577 = vmatpush1.bf16.xpose.msra.mxu0 0
  %578 = vmatprep.subr.bf16.mxu0 0
  %579 = vmatpush1.bf16.xpose.msra.mxu0 0
  %580 = vmatprep.subr.bf16.mxu0 0
  %581 = vmatpush1.bf16.xpose.msra.mxu0 0
  %582 = vmatprep.subr.bf16.mxu0 0
  %583 = vmatpush1.bf16.xpose.msra.mxu0 0
  %584 = vmatprep.subr.bf16.mxu0 0
  %585 = vmatpush1.bf16.xpose.msra.mxu0 0
  %586 = vmatprep.subr.bf16.mxu0 0
  %587 = vmatpush1.bf16.xpose.msra.mxu0 0
  %588 = vmatprep.subr.bf16.mxu0 0
  %589 = vmatpush1.bf16.xpose.msra.mxu0 0
  %590 = vmatprep.subr.bf16.mxu0 0
  %591 = vmatpush1.bf16.xpose.msra.mxu0 0
  %592 = vmatprep.mubr.bf16.mxu0 0
  %593 = vmatmul.mubr.bf16.gmra.mrb[0].mxu0 %v555
  %v594 = vpop.f32.mrb[0].mxu0
  %v595 = vadd.f32 0.0, %v594
  %v596 = vpop.f32.mrb[0].mxu0
  %v597 = vpop.f32.mrb[0].mxu0
  %v598 = vpop.f32.mrb[0].mxu0
  %599 = vdwg.mxu0
  %v601 = vsel %vm507, %v339, 0
  %v604 = vsel %vm507, %v421, 0
  %606 = vmatprep.subr.bf16.mxu0 0
  %607 = vmatpush1.bf16.xpose.msra.mxu0 %v604
  %608 = vmatprep.subr.bf16.mxu0 0
  %609 = vmatpush1.bf16.xpose.msra.mxu0 0
  %610 = vmatprep.subr.bf16.mxu0 0
  %611 = vmatpush1.bf16.xpose.msra.mxu0 0
  %612 = vmatprep.subr.bf16.mxu0 0
  %613 = vmatpush1.bf16.xpose.msra.mxu0 0
  %614 = vmatprep.subr.bf16.mxu0 0
  %615 = vmatpush1.bf16.xpose.msra.mxu0 0
  %616 = vmatprep.subr.bf16.mxu0 0
  %617 = vmatpush1.bf16.xpose.msra.mxu0 0
  %618 = vmatprep.subr.bf16.mxu0 0
  %619 = vmatpush1.bf16.xpose.msra.mxu0 0
  %620 = vmatprep.subr.bf16.mxu0 0
  %621 = vmatpush1.bf16.xpose.msra.mxu0 0
  %622 = vmatprep.subr.bf16.mxu0 0
  %623 = vmatpush1.bf16.xpose.msra.mxu0 0
  %624 = vmatprep.subr.bf16.mxu0 0
  %625 = vmatpush1.bf16.xpose.msra.mxu0 0
  %626 = vmatprep.subr.bf16.mxu0 0
  %627 = vmatpush1.bf16.xpose.msra.mxu0 0
  %628 = vmatprep.subr.bf16.mxu0 0
  %629 = vmatpush1.bf16.xpose.msra.mxu0 0
  %630 = vmatprep.subr.bf16.mxu0 0
  %631 = vmatpush1.bf16.xpose.msra.mxu0 0
  %632 = vmatprep.subr.bf16.mxu0 0
  %633 = vmatpush1.bf16.xpose.msra.mxu0 0
  %634 = vmatprep.subr.bf16.mxu0 0
  %635 = vmatpush1.bf16.xpose.msra.mxu0 0
  %636 = vmatprep.subr.bf16.mxu0 0
  %637 = vmatpush1.bf16.xpose.msra.mxu0 0
  %638 = vmatprep.mubr.bf16.mxu0 0
  %639 = vmatmul.mubr.bf16.gmra.mrb[0].mxu0 %v601
  %v640 = vpop.f32.mrb[0].mxu0
  %v641 = vadd.f32 0.0, %v640
  %v642 = vpop.f32.mrb[0].mxu0
  %v643 = vpop.f32.mrb[0].mxu0
  %v644 = vpop.f32.mrb[0].mxu0
  %645 = vdwg.mxu0
  %v647 = vsel %vm507, %v340, 0
  %v650 = vsel %vm507, %v422, 0
  %652 = vmatprep.subr.bf16.mxu0 0
  %653 = vmatpush1.bf16.xpose.msra.mxu0 %v650
  %654 = vmatprep.subr.bf16.mxu0 0
  %655 = vmatpush1.bf16.xpose.msra.mxu0 0
  %656 = vmatprep.subr.bf16.mxu0 0
  %657 = vmatpush1.bf16.xpose.msra.mxu0 0
  %658 = vmatprep.subr.bf16.mxu0 0
  %659 = vmatpush1.bf16.xpose.msra.mxu0 0
  %660 = vmatprep.subr.bf16.mxu0 0
  %661 = vmatpush1.bf16.xpose.msra.mxu0 0
  %662 = vmatprep.subr.bf16.mxu0 0
  %663 = vmatpush1.bf16.xpose.msra.mxu0 0
  %664 = vmatprep.subr.bf16.mxu0 0
  %665 = vmatpush1.bf16.xpose.msra.mxu0 0
  %666 = vmatprep.subr.bf16.mxu0 0
  %667 = vmatpush1.bf16.xpose.msra.mxu0 0
  %668 = vmatprep.subr.bf16.mxu0 0
  %669 = vmatpush1.bf16.xpose.msra.mxu0 0
  %670 = vmatprep.subr.bf16.mxu0 0
  %671 = vmatpush1.bf16.xpose.msra.mxu0 0
  %672 = vmatprep.subr.bf16.mxu0 0
  %673 = vmatpush1.bf16.xpose.msra.mxu0 0
  %674 = vmatprep.subr.bf16.mxu0 0
  %675 = vmatpush1.bf16.xpose.msra.mxu0 0
  %676 = vmatprep.subr.bf16.mxu0 0
  %677 = vmatpush1.bf16.xpose.msra.mxu0 0
  %678 = vmatprep.subr.bf16.mxu0 0
  %679 = vmatpush1.bf16.xpose.msra.mxu0 0
  %680 = vmatprep.subr.bf16.mxu0 0
  %681 = vmatpush1.bf16.xpose.msra.mxu0 0
  %682 = vmatprep.subr.bf16.mxu0 0
  %683 = vmatpush1.bf16.xpose.msra.mxu0 0
  %684 = vmatprep.mubr.bf16.mxu0 0
  %685 = vmatmul.mubr.bf16.gmra.mrb[0].mxu0 %v647
  %v686 = vpop.f32.mrb[0].mxu0
  %v687 = vadd.f32 0.0, %v686
  %v688 = vpop.f32.mrb[0].mxu0
  %v689 = vpop.f32.mrb[0].mxu0
  %v690 = vpop.f32.mrb[0].mxu0
  %691 = vdwg.mxu0
  %vm692 = vcmask 31744
  %v693 = vsel %vm692, %v549, -inf
  %694 = vmax.xlane.f32.xlu0 %v693
  %v695 = vpop.xlane.xlu0 %694
  %v696 = vsel %vm692, %v595, -inf
  %697 = vmax.xlane.f32.xlu0 %v696
  %v698 = vpop.xlane.xlu0 %697
  %v699 = vsel %vm692, %v641, -inf
  %700 = vmax.xlane.f32.xlu0 %v699
  %v701 = vpop.xlane.xlu0 %700
  %v702 = vsel %vm692, %v687, -inf
  %703 = vmax.xlane.f32.xlu0 %v702
  %v704 = vpop.xlane.xlu0 %703
  %v705 = vsub.f32 %v549, %v695
  %v706 = vsub.f32 %v595, %v698
  %v707 = vsub.f32 %v641, %v701
  %v708 = vsub.f32 %v687, %v704
  %v709 = vmul.f32 %v705, 1.442695
  %v710 = vpow.pop %v709
  %v711 = vmul.f32 %v706, 1.442695
  %v712 = vpow.pop %v711
  %v713 = vmul.f32 %v707, 1.442695
  %v714 = vpow.pop %v713
  %v715 = vmul.f32 %v708, 1.442695
  %v716 = vpow.pop %v715
  %v717 = vsel %vm692, %v710, 0.0
  %718 = vadd.xlane.f32.xlu0 %v717
  %v719 = vpop.xlane.xlu0 %718
  %v720 = vsel %vm692, %v712, 0.0
  %721 = vadd.xlane.f32.xlu0 %v720
  %v722 = vpop.xlane.xlu0 %721
  %v723 = vsel %vm692, %v714, 0.0
  %724 = vadd.xlane.f32.xlu0 %v723
  %v725 = vpop.xlane.xlu0 %724
  %v726 = vsel %vm692, %v716, 0.0
  %727 = vadd.xlane.f32.xlu0 %v726
  %v728 = vpop.xlane.xlu0 %727
  %v729 = vrcp.pop %v719
  %v730 = vrcp.pop %v722
  %v731 = vrcp.pop %v725
  %v732 = vrcp.pop %v728
  %v733 = vmul.f32 %v710, %v729
  %v734 = vmul.f32 %v712, %v730
  %v735 = vmul.f32 %v714, %v731
  %v736 = vmul.f32 %v716, %v732
  %v737 = vpack.c.bf16 %v733, %v733
  %v738 = vpack.c.bf16 %v734, %v734
  %v739 = vpack.c.bf16 %v735, %v735
  %v740 = vpack.c.bf16 %v736, %v736
  %v742 = vsel %vm692, %v737, 0
  %vm744 = vcmask 1041408
  %v746 = vsel %vm744, %v503, 0
  %748 = vmatprep.subr.bf16.mxu0 0
  %749 = vmatpush1.bf16.msra.mxu0 %v746
  %750 = vmatprep.subr.bf16.mxu0 0
  %751 = vmatpush1.bf16.msra.mxu0 0
  %752 = vmatprep.subr.bf16.mxu0 0
  %753 = vmatpush1.bf16.msra.mxu0 0
  %754 = vmatprep.subr.bf16.mxu0 0
  %755 = vmatpush1.bf16.msra.mxu0 0
  %756 = vmatprep.subr.bf16.mxu0 0
  %757 = vmatpush1.bf16.msra.mxu0 0
  %758 = vmatprep.subr.bf16.mxu0 0
  %759 = vmatpush1.bf16.msra.mxu0 0
  %760 = vmatprep.subr.bf16.mxu0 0
  %761 = vmatpush1.bf16.msra.mxu0 0
  %762 = vmatprep.subr.bf16.mxu0 0
  %763 = vmatpush1.bf16.msra.mxu0 0
  %764 = vmatprep.subr.bf16.mxu0 0
  %765 = vmatpush1.bf16.msra.mxu0 0
  %766 = vmatprep.subr.bf16.mxu0 0
  %767 = vmatpush1.bf16.msra.mxu0 0
  %768 = vmatprep.subr.bf16.mxu0 0
  %769 = vmatpush1.bf16.msra.mxu0 0
  %770 = vmatprep.subr.bf16.mxu0 0
  %771 = vmatpush1.bf16.msra.mxu0 0
  %772 = vmatprep.subr.bf16.mxu0 0
  %773 = vmatpush1.bf16.msra.mxu0 0
  %774 = vmatprep.subr.bf16.mxu0 0
  %775 = vmatpush1.bf16.msra.mxu0 0
  %776 = vmatprep.subr.bf16.mxu0 0
  %777 = vmatpush1.bf16.msra.mxu0 0
  %778 = vmatprep.subr.bf16.mxu0 0
  %779 = vmatpush1.bf16.msra.mxu0 0
  %780 = vmatprep.mubr.bf16.mxu0 0
  %781 = vmatmul.mubr.bf16.gmra.mrb[0].mxu0 %v742
  %v782 = vpop.f32.mrb[0].mxu0
  %v783 = vadd.f32 0.0, %v782
  %v784 = vpop.f32.mrb[0].mxu0
  %v785 = vpop.f32.mrb[0].mxu0
  %v786 = vpop.f32.mrb[0].mxu0
  %787 = vdwg.mxu0
  %v789 = vsel %vm692, %v738, 0
  %v792 = vsel %vm744, %v504, 0
  %794 = vmatprep.subr.bf16.mxu0 0
  %795 = vmatpush1.bf16.msra.mxu0 %v792
  %796 = vmatprep.subr.bf16.mxu0 0
  %797 = vmatpush1.bf16.msra.mxu0 0
  %798 = vmatprep.subr.bf16.mxu0 0
  %799 = vmatpush1.bf16.msra.mxu0 0
  %800 = vmatprep.subr.bf16.mxu0 0
  %801 = vmatpush1.bf16.msra.mxu0 0
  %802 = vmatprep.subr.bf16.mxu0 0
  %803 = vmatpush1.bf16.msra.mxu0 0
  %804 = vmatprep.subr.bf16.mxu0 0
  %805 = vmatpush1.bf16.msra.mxu0 0
  %806 = vmatprep.subr.bf16.mxu0 0
  %807 = vmatpush1.bf16.msra.mxu0 0
  %808 = vmatprep.subr.bf16.mxu0 0
  %809 = vmatpush1.bf16.msra.mxu0 0
  %810 = vmatprep.subr.bf16.mxu0 0
  %811 = vmatpush1.bf16.msra.mxu0 0
  %812 = vmatprep.subr.bf16.mxu0 0
  %813 = vmatpush1.bf16.msra.mxu0 0
  %814 = vmatprep.subr.bf16.mxu0 0
  %815 = vmatpush1.bf16.msra.mxu0 0
  %816 = vmatprep.subr.bf16.mxu0 0
  %817 = vmatpush1.bf16.msra.mxu0 0
  %818 = vmatprep.subr.bf16.mxu0 0
  %819 = vmatpush1.bf16.msra.mxu0 0
  %820 = vmatprep.subr.bf16.mxu0 0
  %821 = vmatpush1.bf16.msra.mxu0 0
  %822 = vmatprep.subr.bf16.mxu0 0
  %823 = vmatpush1.bf16.msra.mxu0 0
  %824 = vmatprep.subr.bf16.mxu0 0
  %825 = vmatpush1.bf16.msra.mxu0 0
  %826 = vmatprep.mubr.bf16.mxu0 0
  %827 = vmatmul.mubr.bf16.gmra.mrb[0].mxu0 %v789
  %v828 = vpop.f32.mrb[0].mxu0
  %v829 = vadd.f32 0.0, %v828
  %v830 = vpop.f32.mrb[0].mxu0
  %v831 = vpop.f32.mrb[0].mxu0
  %v832 = vpop.f32.mrb[0].mxu0
  %833 = vdwg.mxu0
  %v835 = vsel %vm692, %v739, 0
  %v838 = vsel %vm744, %v505, 0
  %840 = vmatprep.subr.bf16.mxu0 0
  %841 = vmatpush1.bf16.msra.mxu0 %v838
  %842 = vmatprep.subr.bf16.mxu0 0
  %843 = vmatpush1.bf16.msra.mxu0 0
  %844 = vmatprep.subr.bf16.mxu0 0
  %845 = vmatpush1.bf16.msra.mxu0 0
  %846 = vmatprep.subr.bf16.mxu0 0
  %847 = vmatpush1.bf16.msra.mxu0 0
  %848 = vmatprep.subr.bf16.mxu0 0
  %849 = vmatpush1.bf16.msra.mxu0 0
  %850 = vmatprep.subr.bf16.mxu0 0
  %851 = vmatpush1.bf16.msra.mxu0 0
  %852 = vmatprep.subr.bf16.mxu0 0
  %853 = vmatpush1.bf16.msra.mxu0 0
  %854 = vmatprep.subr.bf16.mxu0 0
  %855 = vmatpush1.bf16.msra.mxu0 0
  %856 = vmatprep.subr.bf16.mxu0 0
  %857 = vmatpush1.bf16.msra.mxu0 0
  %858 = vmatprep.subr.bf16.mxu0 0
  %859 = vmatpush1.bf16.msra.mxu0 0
  %860 = vmatprep.subr.bf16.mxu0 0
  %861 = vmatpush1.bf16.msra.mxu0 0
  %862 = vmatprep.subr.bf16.mxu0 0
  %863 = vmatpush1.bf16.msra.mxu0 0
  %864 = vmatprep.subr.bf16.mxu0 0
  %865 = vmatpush1.bf16.msra.mxu0 0
  %866 = vmatprep.subr.bf16.mxu0 0
  %867 = vmatpush1.bf16.msra.mxu0 0
  %868 = vmatprep.subr.bf16.mxu0 0
  %869 = vmatpush1.bf16.msra.mxu0 0
  %870 = vmatprep.subr.bf16.mxu0 0
  %871 = vmatpush1.bf16.msra.mxu0 0
  %872 = vmatprep.mubr.bf16.mxu0 0
  %873 = vmatmul.mubr.bf16.gmra.mrb[0].mxu0 %v835
  %v874 = vpop.f32.mrb[0].mxu0
  %v875 = vadd.f32 0.0, %v874
  %v876 = vpop.f32.mrb[0].mxu0
  %v877 = vpop.f32.mrb[0].mxu0
  %v878 = vpop.f32.mrb[0].mxu0
  %879 = vdwg.mxu0
  %v881 = vsel %vm692, %v740, 0
  %v884 = vsel %vm744, %v506, 0
  %886 = vmatprep.subr.bf16.mxu0 0
  %887 = vmatpush1.bf16.msra.mxu0 %v884
  %888 = vmatprep.subr.bf16.mxu0 0
  %889 = vmatpush1.bf16.msra.mxu0 0
  %890 = vmatprep.subr.bf16.mxu0 0
  %891 = vmatpush1.bf16.msra.mxu0 0
  %892 = vmatprep.subr.bf16.mxu0 0
  %893 = vmatpush1.bf16.msra.mxu0 0
  %894 = vmatprep.subr.bf16.mxu0 0
  %895 = vmatpush1.bf16.msra.mxu0 0
  %896 = vmatprep.subr.bf16.mxu0 0
  %897 = vmatpush1.bf16.msra.mxu0 0
  %898 = vmatprep.subr.bf16.mxu0 0
  %899 = vmatpush1.bf16.msra.mxu0 0
  %900 = vmatprep.subr.bf16.mxu0 0
  %901 = vmatpush1.bf16.msra.mxu0 0
  %902 = vmatprep.subr.bf16.mxu0 0
  %903 = vmatpush1.bf16.msra.mxu0 0
  %904 = vmatprep.subr.bf16.mxu0 0
  %905 = vmatpush1.bf16.msra.mxu0 0
  %906 = vmatprep.subr.bf16.mxu0 0
  %907 = vmatpush1.bf16.msra.mxu0 0
  %908 = vmatprep.subr.bf16.mxu0 0
  %909 = vmatpush1.bf16.msra.mxu0 0
  %910 = vmatprep.subr.bf16.mxu0 0
  %911 = vmatpush1.bf16.msra.mxu0 0
  %912 = vmatprep.subr.bf16.mxu0 0
  %913 = vmatpush1.bf16.msra.mxu0 0
  %914 = vmatprep.subr.bf16.mxu0 0
  %915 = vmatpush1.bf16.msra.mxu0 0
  %916 = vmatprep.subr.bf16.mxu0 0
  %917 = vmatpush1.bf16.msra.mxu0 0
  %918 = vmatprep.mubr.bf16.mxu0 0
  %919 = vmatmul.mubr.bf16.gmra.mrb[0].mxu0 %v881
  %v920 = vpop.f32.mrb[0].mxu0
  %v921 = vadd.f32 0.0, %v920
  %v922 = vpop.f32.mrb[0].mxu0
  %v923 = vpop.f32.mrb[0].mxu0
  %v924 = vpop.f32.mrb[0].mxu0
  %925 = vdwg.mxu0
  %v926 = vcombine.low %v783, %v875
  %v927 = vcombine.high %v783, %v875
  %v929 = vunpack.c.l.s4 1983009808
  %v930 = vunpack.c.0.s8 %v929
  %v931 = vlaneseq
  %v932 = vshrl.u32 %v931, 7
  %v933 = vsub.s32 %v930, %v932
  %v934 = vrot.slane %v926, %v933
  %v936 = vunpack.c.l.s4 1983009808
  %v937 = vunpack.c.0.s8 %v936
  %v938 = vlaneseq
  %v939 = vshrl.u32 %v938, 7
  %v940 = vsub.s32 %v937, %v939
  %v941 = vrot.slane %v927, %v940
  %v942 = vcombine.low %v829, %v921
  %v943 = vcombine.high %v829, %v921
  %v945 = vunpack.c.l.s4 1983009808
  %v946 = vunpack.c.0.s8 %v945
  %v947 = vlaneseq
  %v948 = vshrl.u32 %v947, 7
  %v949 = vsub.s32 %v946, %v948
  %v950 = vrot.slane %v942, %v949
  %v952 = vunpack.c.l.s4 1983009808
  %v953 = vunpack.c.0.s8 %v952
  %v954 = vlaneseq
  %v955 = vshrl.u32 %v954, 7
  %v956 = vsub.s32 %v953, %v955
  %v957 = vrot.slane %v943, %v956
  %v958 = vcombine.low %v934, %v950
  %v959 = vcombine.high %v934, %v950
  %v961 = vunpack.c.l.s4 1934713408
  %v962 = vunpack.c.0.s8 %v961
  %v963 = vlaneseq
  %v964 = vshrl.u32 %v963, 7
  %v965 = vsub.s32 %v962, %v964
  %v966 = vrot.slane %v958, %v965
  %v968 = vunpack.c.l.s4 1934713408
  %v969 = vunpack.c.0.s8 %v968
  %v970 = vlaneseq
  %v971 = vshrl.u32 %v970, 7
  %v972 = vsub.s32 %v969, %v971
  %v973 = vrot.slane %v959, %v972
  %v974 = vcombine.low %v941, %v957
  %v975 = vcombine.high %v941, %v957
  %v977 = vunpack.c.l.s4 1934713408
  %v978 = vunpack.c.0.s8 %v977
  %v979 = vlaneseq
  %v980 = vshrl.u32 %v979, 7
  %v981 = vsub.s32 %v978, %v980
  %v982 = vrot.slane %v974, %v981
  %v984 = vunpack.c.l.s4 1934713408
  %v985 = vunpack.c.0.s8 %v984
  %v986 = vlaneseq
  %v987 = vshrl.u32 %v986, 7
  %v988 = vsub.s32 %v985, %v987
  %v989 = vrot.slane %v975, %v988
  %v990 = vcombine.high %v966, 0.0
  %v991 = vcombine.high %v973, 0.0
  %v992 = vcombine.high %v982, 0.0
  %v993 = vcombine.high %v989, 0.0
  %v994 = vcombine.low %v966, %v973
  %v996 = vunpack.c.l.s4 1983009808
  %v997 = vunpack.c.0.s8 %v996
  %v998 = vlaneseq
  %v999 = vshrl.u32 %v998, 7
  %v1000 = vsub.s32 %v997, %v999
  %v1001 = vrot.slane %v994, %v1000
  %v1002 = vcombine.low %v990, %v991
  %v1004 = vunpack.c.l.s4 1983009808
  %v1005 = vunpack.c.0.s8 %v1004
  %v1006 = vlaneseq
  %v1007 = vshrl.u32 %v1006, 7
  %v1008 = vsub.s32 %v1005, %v1007
  %v1009 = vrot.slane %v1002, %v1008
  %v1010 = vcombine.low %v982, %v989
  %v1012 = vunpack.c.l.s4 1983009808
  %v1013 = vunpack.c.0.s8 %v1012
  %v1014 = vlaneseq
  %v1015 = vshrl.u32 %v1014, 7
  %v1016 = vsub.s32 %v1013, %v1015
  %v1017 = vrot.slane %v1010, %v1016
  %v1018 = vcombine.low %v992, %v993
  %v1020 = vunpack.c.l.s4 1983009808
  %v1021 = vunpack.c.0.s8 %v1020
  %v1022 = vlaneseq
  %v1023 = vshrl.u32 %v1022, 7
  %v1024 = vsub.s32 %v1021, %v1023
  %v1025 = vrot.slane %v1018, %v1024
  %v1026 = vcombine.low %v1001, %v1009
  %v1027 = vcombine.high %v1001, %v1009
  %v1029 = vunpack.c.l.s4 1934713408
  %v1030 = vunpack.c.0.s8 %v1029
  %v1031 = vlaneseq
  %v1032 = vshrl.u32 %v1031, 7
  %v1033 = vsub.s32 %v1030, %v1032
  %v1034 = vrot.slane %v1026, %v1033
  %v1036 = vunpack.c.l.s4 1934713408
  %v1037 = vunpack.c.0.s8 %v1036
  %v1038 = vlaneseq
  %v1039 = vshrl.u32 %v1038, 7
  %v1040 = vsub.s32 %v1037, %v1039
  %v1041 = vrot.slane %v1027, %v1040
  %v1042 = vcombine.low %v1017, %v1025
  %v1043 = vcombine.high %v1017, %v1025
  %v1045 = vunpack.c.l.s4 1934713408
  %v1046 = vunpack.c.0.s8 %v1045
  %v1047 = vlaneseq
  %v1048 = vshrl.u32 %v1047, 7
  %v1049 = vsub.s32 %v1046, %v1048
  %v1050 = vrot.slane %v1042, %v1049
  %v1052 = vunpack.c.l.s4 1934713408
  %v1053 = vunpack.c.0.s8 %v1052
  %v1054 = vlaneseq
  %v1055 = vshrl.u32 %v1054, 7
  %v1056 = vsub.s32 %v1053, %v1055
  %v1057 = vrot.slane %v1043, %v1056
  %v1058 = vcombine.low %v1034, %v1050
  %v1059 = vcombine.high %v1034, %v1050
  %v1060 = vcombine.low %v1041, %v1057
  %v1061 = vcombine.high %v1041, %v1057
  %1063 = vrot.lane.b32.xlu0 %v1059, 8
  %v1064 = vpop.permute.xlu0 %1063
  %1067 = vrot.lane.b32.xlu0 %v1060, 16
  %v1068 = vpop.permute.xlu0 %1067
  %1071 = vrot.lane.b32.xlu0 %v1061, 24
  %v1072 = vpop.permute.xlu0 %1071
  %v1074 = vsel %vm507, %v1058, %v1064
  %vm1075 = vcmask 130048
  %v1076 = vsel %vm1075, %v1074, %v1068
  %vm1077 = vcmask 195584
  %v1078 = vsel %vm1077, %v1076, %v1072
  %1080 = vrot.lane.b32.xlu0 %v112, 120
  %v1081 = vpop.permute.xlu0 %1080
  %1083 = vrot.lane.b32.xlu0 %v112, 112
  %v1084 = vpop.permute.xlu0 %1083
  %1086 = vrot.lane.b32.xlu0 %v112, 104
  %v1087 = vpop.permute.xlu0 %1086
  %v1089 = vcombine.low %v112, %v1084
  %v1090 = vcombine.high %v112, %v1084
  %v1092 = vunpack.c.l.s4 1983009808
  %v1093 = vunpack.c.0.s8 %v1092
  %v1094 = vlaneseq
  %v1095 = vshrl.u32 %v1094, 7
  %v1096 = vsub.s32 %v1093, %v1095
  %v1097 = vrot.slane %v1089, %v1096
  %v1099 = vunpack.c.l.s4 1983009808
  %v1100 = vunpack.c.0.s8 %v1099
  %v1101 = vlaneseq
  %v1102 = vshrl.u32 %v1101, 7
  %v1103 = vsub.s32 %v1100, %v1102
  %v1104 = vrot.slane %v1090, %v1103
  %v1105 = vcombine.low %v1081, %v1087
  %v1106 = vcombine.high %v1081, %v1087
  %v1108 = vunpack.c.l.s4 1983009808
  %v1109 = vunpack.c.0.s8 %v1108
  %v1110 = vlaneseq
  %v1111 = vshrl.u32 %v1110, 7
  %v1112 = vsub.s32 %v1109, %v1111
  %v1113 = vrot.slane %v1105, %v1112
  %v1115 = vunpack.c.l.s4 1983009808
  %v1116 = vunpack.c.0.s8 %v1115
  %v1117 = vlaneseq
  %v1118 = vshrl.u32 %v1117, 7
  %v1119 = vsub.s32 %v1116, %v1118
  %v1120 = vrot.slane %v1106, %v1119
  %v1121 = vcombine.low %v1097, %v1113
  %v1122 = vcombine.high %v1097, %v1113
  %v1124 = vunpack.c.l.s4 1934713408
  %v1125 = vunpack.c.0.s8 %v1124
  %v1126 = vlaneseq
  %v1127 = vshrl.u32 %v1126, 7
  %v1128 = vsub.s32 %v1125, %v1127
  %v1129 = vrot.slane %v1121, %v1128
  %v1131 = vunpack.c.l.s4 1934713408
  %v1132 = vunpack.c.0.s8 %v1131
  %v1133 = vlaneseq
  %v1134 = vshrl.u32 %v1133, 7
  %v1135 = vsub.s32 %v1132, %v1134
  %v1136 = vrot.slane %v1122, %v1135
  %v1137 = vcombine.low %v1104, %v1120
  %v1138 = vcombine.high %v1104, %v1120
  %v1140 = vunpack.c.l.s4 1934713408
  %v1141 = vunpack.c.0.s8 %v1140
  %v1142 = vlaneseq
  %v1143 = vshrl.u32 %v1142, 7
  %v1144 = vsub.s32 %v1141, %v1143
  %v1145 = vrot.slane %v1137, %v1144
  %v1147 = vunpack.c.l.s4 1934713408
  %v1148 = vunpack.c.0.s8 %v1147
  %v1149 = vlaneseq
  %v1150 = vshrl.u32 %v1149, 7
  %v1151 = vsub.s32 %v1148, %v1150
  %v1152 = vrot.slane %v1138, %v1151
  %v1153 = vcombine.high %v1129, 0.0
  %v1154 = vcombine.high %v1136, 0.0
  %v1155 = vcombine.high %v1145, 0.0
  %v1156 = vcombine.high %v1152, 0.0
  %v1157 = vcombine.low %v1129, %v1136
  %v1159 = vunpack.c.l.s4 1983009808
  %v1160 = vunpack.c.0.s8 %v1159
  %v1161 = vlaneseq
  %v1162 = vshrl.u32 %v1161, 7
  %v1163 = vsub.s32 %v1160, %v1162
  %v1164 = vrot.slane %v1157, %v1163
  %v1165 = vcombine.low %v1153, %v1154
  %v1167 = vunpack.c.l.s4 1983009808
  %v1168 = vunpack.c.0.s8 %v1167
  %v1169 = vlaneseq
  %v1170 = vshrl.u32 %v1169, 7
  %v1171 = vsub.s32 %v1168, %v1170
  %v1172 = vrot.slane %v1165, %v1171
  %v1173 = vcombine.low %v1145, %v1152
  %v1175 = vunpack.c.l.s4 1983009808
  %v1176 = vunpack.c.0.s8 %v1175
  %v1177 = vlaneseq
  %v1178 = vshrl.u32 %v1177, 7
  %v1179 = vsub.s32 %v1176, %v1178
  %v1180 = vrot.slane %v1173, %v1179
  %v1181 = vcombine.low %v1155, %v1156
  %v1183 = vunpack.c.l.s4 1983009808
  %v1184 = vunpack.c.0.s8 %v1183
  %v1185 = vlaneseq
  %v1186 = vshrl.u32 %v1185, 7
  %v1187 = vsub.s32 %v1184, %v1186
  %v1188 = vrot.slane %v1181, %v1187
  %v1189 = vcombine.low %v1164, %v1172
  %v1190 = vcombine.high %v1164, %v1172
  %v1192 = vunpack.c.l.s4 1934713408
  %v1193 = vunpack.c.0.s8 %v1192
  %v1194 = vlaneseq
  %v1195 = vshrl.u32 %v1194, 7
  %v1196 = vsub.s32 %v1193, %v1195
  %v1197 = vrot.slane %v1189, %v1196
  %v1199 = vunpack.c.l.s4 1934713408
  %v1200 = vunpack.c.0.s8 %v1199
  %v1201 = vlaneseq
  %v1202 = vshrl.u32 %v1201, 7
  %v1203 = vsub.s32 %v1200, %v1202
  %v1204 = vrot.slane %v1190, %v1203
  %v1205 = vcombine.low %v1180, %v1188
  %v1206 = vcombine.high %v1180, %v1188
  %v1208 = vunpack.c.l.s4 1934713408
  %v1209 = vunpack.c.0.s8 %v1208
  %v1210 = vlaneseq
  %v1211 = vshrl.u32 %v1210, 7
  %v1212 = vsub.s32 %v1209, %v1211
  %v1213 = vrot.slane %v1205, %v1212
  %v1215 = vunpack.c.l.s4 1934713408
  %v1216 = vunpack.c.0.s8 %v1215
  %v1217 = vlaneseq
  %v1218 = vshrl.u32 %v1217, 7
  %v1219 = vsub.s32 %v1216, %v1218
  %v1220 = vrot.slane %v1206, %v1219
  %v1221 = vcombine.low %v1197, %v1213
  %v1222 = vcombine.high %v1197, %v1213
  %v1223 = vcombine.low %v1204, %v1220
  %v1224 = vcombine.high %v1204, %v1220
  %v1225 = vpack.c.bf16 %v1221, %v1221
  %v1226 = vpack.c.bf16 %v1222, %v1222
  %v1227 = vpack.c.bf16 %v1223, %v1223
  %v1228 = vpack.c.bf16 %v1224, %v1224
  %v1229 = vrot.slane %v186, 4
  %v1230 = vrot.slane %v343, 4
  %v1231 = vrot.slane %v346, 4
  %v1232 = vrot.slane %v349, 4
  %v1237 = vcombine.low %v1229, %v1231
  %v1239 = vunpack.c.l.s4 1983009808
  %v1240 = vunpack.c.0.s8 %v1239
  %v1241 = vlaneseq
  %v1242 = vshrl.u32 %v1241, 7
  %v1243 = vsub.s32 %v1240, %v1242
  %v1244 = vrot.slane %v1237, %v1243
  %v1245 = vcombine.low %v1230, %v1232
  %v1247 = vunpack.c.l.s4 1983009808
  %v1248 = vunpack.c.0.s8 %v1247
  %v1249 = vlaneseq
  %v1250 = vshrl.u32 %v1249, 7
  %v1251 = vsub.s32 %v1248, %v1250
  %v1252 = vrot.slane %v1245, %v1251
  %v1253 = vcombine.low %v1244, %v1252
  %v1254 = vcombine.high %v1244, %v1252
  %v1256 = vunpack.c.l.s4 1934713408
  %v1257 = vunpack.c.0.s8 %v1256
  %v1258 = vlaneseq
  %v1259 = vshrl.u32 %v1258, 7
  %v1260 = vsub.s32 %v1257, %v1259
  %v1261 = vrot.slane %v1253, %v1260
  %v1263 = vunpack.c.l.s4 1934713408
  %v1264 = vunpack.c.0.s8 %v1263
  %v1265 = vlaneseq
  %v1266 = vshrl.u32 %v1265, 7
  %v1267 = vsub.s32 %v1264, %v1266
  %v1268 = vrot.slane %v1254, %v1267
  %v1269 = vcombine.high %v1261, 0.0
  %v1270 = vcombine.high %v1268, 0.0
  %v1271 = vcombine.low %v1261, %v1268
  %v1273 = vunpack.c.l.s4 1983009808
  %v1274 = vunpack.c.0.s8 %v1273
  %v1275 = vlaneseq
  %v1276 = vshrl.u32 %v1275, 7
  %v1277 = vsub.s32 %v1274, %v1276
  %v1278 = vrot.slane %v1271, %v1277
  %v1279 = vcombine.low %v1269, %v1270
  %v1281 = vunpack.c.l.s4 1983009808
  %v1282 = vunpack.c.0.s8 %v1281
  %v1283 = vlaneseq
  %v1284 = vshrl.u32 %v1283, 7
  %v1285 = vsub.s32 %v1282, %v1284
  %v1286 = vrot.slane %v1279, %v1285
  %v1287 = vcombine.low %v1278, %v1286
  %v1288 = vcombine.high %v1278, %v1286
  %v1290 = vunpack.c.l.s4 1934713408
  %v1291 = vunpack.c.0.s8 %v1290
  %v1292 = vlaneseq
  %v1293 = vshrl.u32 %v1292, 7
  %v1294 = vsub.s32 %v1291, %v1293
  %v1295 = vrot.slane %v1287, %v1294
  %v1297 = vunpack.c.l.s4 1934713408
  %v1298 = vunpack.c.0.s8 %v1297
  %v1299 = vlaneseq
  %v1300 = vshrl.u32 %v1299, 7
  %v1301 = vsub.s32 %v1298, %v1300
  %v1302 = vrot.slane %v1288, %v1301
  %v1303 = vcombine.high %v1295, 0.0
  %v1304 = vcombine.high %v1302, 0.0
  %v1305 = vpack.c.bf16 %v1295, %v1295
  %v1306 = vpack.c.bf16 %v1303, %v1303
  %v1307 = vpack.c.bf16 %v1302, %v1302
  %v1308 = vpack.c.bf16 %v1304, %v1304
  %1309 = vrot.lane.b32.xlu0 %v1229, 96
  %v1310 = vpop.permute.xlu0 %1309
  %1311 = vrot.lane.b32.xlu0 %v1230, 96
  %v1312 = vpop.permute.xlu0 %1311
  %1313 = vrot.lane.b32.xlu0 %v1231, 96
  %v1314 = vpop.permute.xlu0 %1313
  %1315 = vrot.lane.b32.xlu0 %v1232, 96
  %v1316 = vpop.permute.xlu0 %1315
  %v1321 = vcombine.low %v1310, %v1314
  %v1323 = vunpack.c.l.s4 1983009808
  %v1324 = vunpack.c.0.s8 %v1323
  %v1325 = vlaneseq
  %v1326 = vshrl.u32 %v1325, 7
  %v1327 = vsub.s32 %v1324, %v1326
  %v1328 = vrot.slane %v1321, %v1327
  %v1329 = vcombine.low %v1312, %v1316
  %v1331 = vunpack.c.l.s4 1983009808
  %v1332 = vunpack.c.0.s8 %v1331
  %v1333 = vlaneseq
  %v1334 = vshrl.u32 %v1333, 7
  %v1335 = vsub.s32 %v1332, %v1334
  %v1336 = vrot.slane %v1329, %v1335
  %v1337 = vcombine.low %v1328, %v1336
  %v1338 = vcombine.high %v1328, %v1336
  %v1340 = vunpack.c.l.s4 1934713408
  %v1341 = vunpack.c.0.s8 %v1340
  %v1342 = vlaneseq
  %v1343 = vshrl.u32 %v1342, 7
  %v1344 = vsub.s32 %v1341, %v1343
  %v1345 = vrot.slane %v1337, %v1344
  %v1347 = vunpack.c.l.s4 1934713408
  %v1348 = vunpack.c.0.s8 %v1347
  %v1349 = vlaneseq
  %v1350 = vshrl.u32 %v1349, 7
  %v1351 = vsub.s32 %v1348, %v1350
  %v1352 = vrot.slane %v1338, %v1351
  %v1353 = vcombine.high %v1345, 0.0
  %v1354 = vcombine.high %v1352, 0.0
  %v1355 = vcombine.low %v1345, %v1352
  %v1357 = vunpack.c.l.s4 1983009808
  %v1358 = vunpack.c.0.s8 %v1357
  %v1359 = vlaneseq
  %v1360 = vshrl.u32 %v1359, 7
  %v1361 = vsub.s32 %v1358, %v1360
  %v1362 = vrot.slane %v1355, %v1361
  %v1363 = vcombine.low %v1353, %v1354
  %v1365 = vunpack.c.l.s4 1983009808
  %v1366 = vunpack.c.0.s8 %v1365
  %v1367 = vlaneseq
  %v1368 = vshrl.u32 %v1367, 7
  %v1369 = vsub.s32 %v1366, %v1368
  %v1370 = vrot.slane %v1363, %v1369
  %v1371 = vcombine.low %v1362, %v1370
  %v1372 = vcombine.high %v1362, %v1370
  %v1374 = vunpack.c.l.s4 1934713408
  %v1375 = vunpack.c.0.s8 %v1374
  %v1376 = vlaneseq
  %v1377 = vshrl.u32 %v1376, 7
  %v1378 = vsub.s32 %v1375, %v1377
  %v1379 = vrot.slane %v1371, %v1378
  %v1381 = vunpack.c.l.s4 1934713408
  %v1382 = vunpack.c.0.s8 %v1381
  %v1383 = vlaneseq
  %v1384 = vshrl.u32 %v1383, 7
  %v1385 = vsub.s32 %v1382, %v1384
  %v1386 = vrot.slane %v1372, %v1385
  %v1387 = vcombine.high %v1379, 0.0
  %v1388 = vcombine.high %v1386, 0.0
  %v1389 = vpack.c.bf16 %v1379, %v1379
  %v1390 = vpack.c.bf16 %v1387, %v1387
  %v1391 = vpack.c.bf16 %v1386, %v1386
  %v1392 = vpack.c.bf16 %v1388, %v1388
  %v1394 = vsel %vm507, %v1225, 0
  %v1397 = vsel %vm507, %v1305, 0
  %1399 = vmatprep.subr.bf16.mxu0 0
  %1400 = vmatpush1.bf16.xpose.msra.mxu0 %v1397
  %1401 = vmatprep.subr.bf16.mxu0 0
  %1402 = vmatpush1.bf16.xpose.msra.mxu0 0
  %1403 = vmatprep.subr.bf16.mxu0 0
  %1404 = vmatpush1.bf16.xpose.msra.mxu0 0
  %1405 = vmatprep.subr.bf16.mxu0 0
  %1406 = vmatpush1.bf16.xpose.msra.mxu0 0
  %1407 = vmatprep.subr.bf16.mxu0 0
  %1408 = vmatpush1.bf16.xpose.msra.mxu0 0
  %1409 = vmatprep.subr.bf16.mxu0 0
  %1410 = vmatpush1.bf16.xpose.msra.mxu0 0
  %1411 = vmatprep.subr.bf16.mxu0 0
  %1412 = vmatpush1.bf16.xpose.msra.mxu0 0
  %1413 = vmatprep.subr.bf16.mxu0 0
  %1414 = vmatpush1.bf16.xpose.msra.mxu0 0
  %1415 = vmatprep.subr.bf16.mxu0 0
  %1416 = vmatpush1.bf16.xpose.msra.mxu0 0
  %1417 = vmatprep.subr.bf16.mxu0 0
  %1418 = vmatpush1.bf16.xpose.msra.mxu0 0
  %1419 = vmatprep.subr.bf16.mxu0 0
  %1420 = vmatpush1.bf16.xpose.msra.mxu0 0
  %1421 = vmatprep.subr.bf16.mxu0 0
  %1422 = vmatpush1.bf16.xpose.msra.mxu0 0
  %1423 = vmatprep.subr.bf16.mxu0 0
  %1424 = vmatpush1.bf16.xpose.msra.mxu0 0
  %1425 = vmatprep.subr.bf16.mxu0 0
  %1426 = vmatpush1.bf16.xpose.msra.mxu0 0
  %1427 = vmatprep.subr.bf16.mxu0 0
  %1428 = vmatpush1.bf16.xpose.msra.mxu0 0
  %1429 = vmatprep.subr.bf16.mxu0 0
  %1430 = vmatpush1.bf16.xpose.msra.mxu0 0
  %1431 = vmatprep.mubr.bf16.mxu0 0
  %1432 = vmatmul.mubr.bf16.gmra.mrb[0].mxu0 %v1394
  %v1433 = vpop.f32.mrb[0].mxu0
  %v1434 = vadd.f32 0.0, %v1433
  %v1435 = vpop.f32.mrb[0].mxu0
  %v1436 = vpop.f32.mrb[0].mxu0
  %v1437 = vpop.f32.mrb[0].mxu0
  %1438 = vdwg.mxu0
  %v1440 = vsel %vm507, %v1226, 0
  %v1443 = vsel %vm507, %v1306, 0
  %1445 = vmatprep.subr.bf16.mxu0 0
  %1446 = vmatpush1.bf16.xpose.msra.mxu0 %v1443
  %1447 = vmatprep.subr.bf16.mxu0 0
  %1448 = vmatpush1.bf16.xpose.msra.mxu0 0
  %1449 = vmatprep.subr.bf16.mxu0 0
  %1450 = vmatpush1.bf16.xpose.msra.mxu0 0
  %1451 = vmatprep.subr.bf16.mxu0 0
  %1452 = vmatpush1.bf16.xpose.msra.mxu0 0
  %1453 = vmatprep.subr.bf16.mxu0 0
  %1454 = vmatpush1.bf16.xpose.msra.mxu0 0
  %1455 = vmatprep.subr.bf16.mxu0 0
  %1456 = vmatpush1.bf16.xpose.msra.mxu0 0
  %1457 = vmatprep.subr.bf16.mxu0 0
  %1458 = vmatpush1.bf16.xpose.msra.mxu0 0
  %1459 = vmatprep.subr.bf16.mxu0 0
  %1460 = vmatpush1.bf16.xpose.msra.mxu0 0
  %1461 = vmatprep.subr.bf16.mxu0 0
  %1462 = vmatpush1.bf16.xpose.msra.mxu0 0
  %1463 = vmatprep.subr.bf16.mxu0 0
  %1464 = vmatpush1.bf16.xpose.msra.mxu0 0
  %1465 = vmatprep.subr.bf16.mxu0 0
  %1466 = vmatpush1.bf16.xpose.msra.mxu0 0
  %1467 = vmatprep.subr.bf16.mxu0 0
  %1468 = vmatpush1.bf16.xpose.msra.mxu0 0
  %1469 = vmatprep.subr.bf16.mxu0 0
  %1470 = vmatpush1.bf16.xpose.msra.mxu0 0
  %1471 = vmatprep.subr.bf16.mxu0 0
  %1472 = vmatpush1.bf16.xpose.msra.mxu0 0
  %1473 = vmatprep.subr.bf16.mxu0 0
  %1474 = vmatpush1.bf16.xpose.msra.mxu0 0
  %1475 = vmatprep.subr.bf16.mxu0 0
  %1476 = vmatpush1.bf16.xpose.msra.mxu0 0
  %1477 = vmatprep.mubr.bf16.mxu0 0
  %1478 = vmatmul.mubr.bf16.gmra.mrb[0].mxu0 %v1440
  %v1479 = vpop.f32.mrb[0].mxu0
  %v1480 = vadd.f32 0.0, %v1479
  %v1481 = vpop.f32.mrb[0].mxu0
  %v1482 = vpop.f32.mrb[0].mxu0
  %v1483 = vpop.f32.mrb[0].mxu0
  %1484 = vdwg.mxu0
  %v1486 = vsel %vm507, %v1227, 0
  %v1489 = vsel %vm507, %v1307, 0
  %1491 = vmatprep.subr.bf16.mxu0 0
  %1492 = vmatpush1.bf16.xpose.msra.mxu0 %v1489
  %1493 = vmatprep.subr.bf16.mxu0 0
  %1494 = vmatpush1.bf16.xpose.msra.mxu0 0
  %1495 = vmatprep.subr.bf16.mxu0 0
  %1496 = vmatpush1.bf16.xpose.msra.mxu0 0
  %1497 = vmatprep.subr.bf16.mxu0 0
  %1498 = vmatpush1.bf16.xpose.msra.mxu0 0
  %1499 = vmatprep.subr.bf16.mxu0 0
  %1500 = vmatpush1.bf16.xpose.msra.mxu0 0
  %1501 = vmatprep.subr.bf16.mxu0 0
  %1502 = vmatpush1.bf16.xpose.msra.mxu0 0
  %1503 = vmatprep.subr.bf16.mxu0 0
  %1504 = vmatpush1.bf16.xpose.msra.mxu0 0
  %1505 = vmatprep.subr.bf16.mxu0 0
  %1506 = vmatpush1.bf16.xpose.msra.mxu0 0
  %1507 = vmatprep.subr.bf16.mxu0 0
  %1508 = vmatpush1.bf16.xpose.msra.mxu0 0
  %1509 = vmatprep.subr.bf16.mxu0 0
  %1510 = vmatpush1.bf16.xpose.msra.mxu0 0
  %1511 = vmatprep.subr.bf16.mxu0 0
  %1512 = vmatpush1.bf16.xpose.msra.mxu0 0
  %1513 = vmatprep.subr.bf16.mxu0 0
  %1514 = vmatpush1.bf16.xpose.msra.mxu0 0
  %1515 = vmatprep.subr.bf16.mxu0 0
  %1516 = vmatpush1.bf16.xpose.msra.mxu0 0
  %1517 = vmatprep.subr.bf16.mxu0 0
  %1518 = vmatpush1.bf16.xpose.msra.mxu0 0
  %1519 = vmatprep.subr.bf16.mxu0 0
  %1520 = vmatpush1.bf16.xpose.msra.mxu0 0
  %1521 = vmatprep.subr.bf16.mxu0 0
  %1522 = vmatpush1.bf16.xpose.msra.mxu0 0
  %1523 = vmatprep.mubr.bf16.mxu0 0
  %1524 = vmatmul.mubr.bf16.gmra.mrb[0].mxu0 %v1486
  %v1525 = vpop.f32.mrb[0].mxu0
  %v1526 = vadd.f32 0.0, %v1525
  %v1527 = vpop.f32.mrb[0].mxu0
  %v1528 = vpop.f32.mrb[0].mxu0
  %v1529 = vpop.f32.mrb[0].mxu0
  %1530 = vdwg.mxu0
  %v1532 = vsel %vm507, %v1228, 0
  %v1535 = vsel %vm507, %v1308, 0
  %1537 = vmatprep.subr.bf16.mxu0 0
  %1538 = vmatpush1.bf16.xpose.msra.mxu0 %v1535
  %1539 = vmatprep.subr.bf16.mxu0 0
  %1540 = vmatpush1.bf16.xpose.msra.mxu0 0
  %1541 = vmatprep.subr.bf16.mxu0 0
  %1542 = vmatpush1.bf16.xpose.msra.mxu0 0
  %1543 = vmatprep.subr.bf16.mxu0 0
  %1544 = vmatpush1.bf16.xpose.msra.mxu0 0
  %1545 = vmatprep.subr.bf16.mxu0 0
  %1546 = vmatpush1.bf16.xpose.msra.mxu0 0
  %1547 = vmatprep.subr.bf16.mxu0 0
  %1548 = vmatpush1.bf16.xpose.msra.mxu0 0
  %1549 = vmatprep.subr.bf16.mxu0 0
  %1550 = vmatpush1.bf16.xpose.msra.mxu0 0
  %1551 = vmatprep.subr.bf16.mxu0 0
  %1552 = vmatpush1.bf16.xpose.msra.mxu0 0
  %1553 = vmatprep.subr.bf16.mxu0 0
  %1554 = vmatpush1.bf16.xpose.msra.mxu0 0
  %1555 = vmatprep.subr.bf16.mxu0 0
  %1556 = vmatpush1.bf16.xpose.msra.mxu0 0
  %1557 = vmatprep.subr.bf16.mxu0 0
  %1558 = vmatpush1.bf16.xpose.msra.mxu0 0
  %1559 = vmatprep.subr.bf16.mxu0 0
  %1560 = vmatpush1.bf16.xpose.msra.mxu0 0
  %1561 = vmatprep.subr.bf16.mxu0 0
  %1562 = vmatpush1.bf16.xpose.msra.mxu0 0
  %1563 = vmatprep.subr.bf16.mxu0 0
  %1564 = vmatpush1.bf16.xpose.msra.mxu0 0
  %1565 = vmatprep.subr.bf16.mxu0 0
  %1566 = vmatpush1.bf16.xpose.msra.mxu0 0
  %1567 = vmatprep.subr.bf16.mxu0 0
  %1568 = vmatpush1.bf16.xpose.msra.mxu0 0
  %1569 = vmatprep.mubr.bf16.mxu0 0
  %1570 = vmatmul.mubr.bf16.gmra.mrb[0].mxu0 %v1532
  %v1571 = vpop.f32.mrb[0].mxu0
  %v1572 = vadd.f32 0.0, %v1571
  %v1573 = vpop.f32.mrb[0].mxu0
  %v1574 = vpop.f32.mrb[0].mxu0
  %v1575 = vpop.f32.mrb[0].mxu0
  %1576 = vdwg.mxu0
  %v1577 = vsel %vm692, %v1434, -inf
  %1578 = vmax.xlane.f32.xlu0 %v1577
  %v1579 = vpop.xlane.xlu0 %1578
  %v1580 = vsel %vm692, %v1480, -inf
  %1581 = vmax.xlane.f32.xlu0 %v1580
  %v1582 = vpop.xlane.xlu0 %1581
  %v1583 = vsel %vm692, %v1526, -inf
  %1584 = vmax.xlane.f32.xlu0 %v1583
  %v1585 = vpop.xlane.xlu0 %1584
  %v1586 = vsel %vm692, %v1572, -inf
  %1587 = vmax.xlane.f32.xlu0 %v1586
  %v1588 = vpop.xlane.xlu0 %1587
  %v1589 = vsub.f32 %v1434, %v1579
  %v1590 = vsub.f32 %v1480, %v1582
  %v1591 = vsub.f32 %v1526, %v1585
  %v1592 = vsub.f32 %v1572, %v1588
  %v1593 = vmul.f32 %v1589, 1.442695
  %v1594 = vpow.pop %v1593
  %v1595 = vmul.f32 %v1590, 1.442695
  %v1596 = vpow.pop %v1595
  %v1597 = vmul.f32 %v1591, 1.442695
  %v1598 = vpow.pop %v1597
  %v1599 = vmul.f32 %v1592, 1.442695
  %v1600 = vpow.pop %v1599
  %v1601 = vsel %vm692, %v1594, 0.0
  %1602 = vadd.xlane.f32.xlu0 %v1601
  %v1603 = vpop.xlane.xlu0 %1602
  %v1604 = vsel %vm692, %v1596, 0.0
  %1605 = vadd.xlane.f32.xlu0 %v1604
  %v1606 = vpop.xlane.xlu0 %1605
  %v1607 = vsel %vm692, %v1598, 0.0
  %1608 = vadd.xlane.f32.xlu0 %v1607
  %v1609 = vpop.xlane.xlu0 %1608
  %v1610 = vsel %vm692, %v1600, 0.0
  %1611 = vadd.xlane.f32.xlu0 %v1610
  %v1612 = vpop.xlane.xlu0 %1611
  %v1613 = vrcp.pop %v1603
  %v1614 = vrcp.pop %v1606
  %v1615 = vrcp.pop %v1609
  %v1616 = vrcp.pop %v1612
  %v1617 = vmul.f32 %v1594, %v1613
  %v1618 = vmul.f32 %v1596, %v1614
  %v1619 = vmul.f32 %v1598, %v1615
  %v1620 = vmul.f32 %v1600, %v1616
  %v1621 = vpack.c.bf16 %v1617, %v1617
  %v1622 = vpack.c.bf16 %v1618, %v1618
  %v1623 = vpack.c.bf16 %v1619, %v1619
  %v1624 = vpack.c.bf16 %v1620, %v1620
  %v1626 = vsel %vm692, %v1621, 0
  %v1629 = vsel %vm744, %v1389, 0
  %1631 = vmatprep.subr.bf16.mxu0 0
  %1632 = vmatpush1.bf16.msra.mxu0 %v1629
  %1633 = vmatprep.subr.bf16.mxu0 0
  %1634 = vmatpush1.bf16.msra.mxu0 0
  %1635 = vmatprep.subr.bf16.mxu0 0
  %1636 = vmatpush1.bf16.msra.mxu0 0
  %1637 = vmatprep.subr.bf16.mxu0 0
  %1638 = vmatpush1.bf16.msra.mxu0 0
  %1639 = vmatprep.subr.bf16.mxu0 0
  %1640 = vmatpush1.bf16.msra.mxu0 0
  %1641 = vmatprep.subr.bf16.mxu0 0
  %1642 = vmatpush1.bf16.msra.mxu0 0
  %1643 = vmatprep.subr.bf16.mxu0 0
  %1644 = vmatpush1.bf16.msra.mxu0 0
  %1645 = vmatprep.subr.bf16.mxu0 0
  %1646 = vmatpush1.bf16.msra.mxu0 0
  %1647 = vmatprep.subr.bf16.mxu0 0
  %1648 = vmatpush1.bf16.msra.mxu0 0
  %1649 = vmatprep.subr.bf16.mxu0 0
  %1650 = vmatpush1.bf16.msra.mxu0 0
  %1651 = vmatprep.subr.bf16.mxu0 0
  %1652 = vmatpush1.bf16.msra.mxu0 0
  %1653 = vmatprep.subr.bf16.mxu0 0
  %1654 = vmatpush1.bf16.msra.mxu0 0
  %1655 = vmatprep.subr.bf16.mxu0 0
  %1656 = vmatpush1.bf16.msra.mxu0 0
  %1657 = vmatprep.subr.bf16.mxu0 0
  %1658 = vmatpush1.bf16.msra.mxu0 0
  %1659 = vmatprep.subr.bf16.mxu0 0
  %1660 = vmatpush1.bf16.msra.mxu0 0
  %1661 = vmatprep.subr.bf16.mxu0 0
  %1662 = vmatpush1.bf16.msra.mxu0 0
  %1663 = vmatprep.mubr.bf16.mxu0 0
  %1664 = vmatmul.mubr.bf16.gmra.mrb[0].mxu0 %v1626
  %v1665 = vpop.f32.mrb[0].mxu0
  %v1666 = vadd.f32 0.0, %v1665
  %v1667 = vpop.f32.mrb[0].mxu0
  %v1668 = vpop.f32.mrb[0].mxu0
  %v1669 = vpop.f32.mrb[0].mxu0
  %1670 = vdwg.mxu0
  %v1672 = vsel %vm692, %v1622, 0
  %v1675 = vsel %vm744, %v1390, 0
  %1677 = vmatprep.subr.bf16.mxu0 0
  %1678 = vmatpush1.bf16.msra.mxu0 %v1675
  %1679 = vmatprep.subr.bf16.mxu0 0
  %1680 = vmatpush1.bf16.msra.mxu0 0
  %1681 = vmatprep.subr.bf16.mxu0 0
  %1682 = vmatpush1.bf16.msra.mxu0 0
  %1683 = vmatprep.subr.bf16.mxu0 0
  %1684 = vmatpush1.bf16.msra.mxu0 0
  %1685 = vmatprep.subr.bf16.mxu0 0
  %1686 = vmatpush1.bf16.msra.mxu0 0
  %1687 = vmatprep.subr.bf16.mxu0 0
  %1688 = vmatpush1.bf16.msra.mxu0 0
  %1689 = vmatprep.subr.bf16.mxu0 0
  %1690 = vmatpush1.bf16.msra.mxu0 0
  %1691 = vmatprep.subr.bf16.mxu0 0
  %1692 = vmatpush1.bf16.msra.mxu0 0
  %1693 = vmatprep.subr.bf16.mxu0 0
  %1694 = vmatpush1.bf16.msra.mxu0 0
  %1695 = vmatprep.subr.bf16.mxu0 0
  %1696 = vmatpush1.bf16.msra.mxu0 0
  %1697 = vmatprep.subr.bf16.mxu0 0
  %1698 = vmatpush1.bf16.msra.mxu0 0
  %1699 = vmatprep.subr.bf16.mxu0 0
  %1700 = vmatpush1.bf16.msra.mxu0 0
  %1701 = vmatprep.subr.bf16.mxu0 0
  %1702 = vmatpush1.bf16.msra.mxu0 0
  %1703 = vmatprep.subr.bf16.mxu0 0
  %1704 = vmatpush1.bf16.msra.mxu0 0
  %1705 = vmatprep.subr.bf16.mxu0 0
  %1706 = vmatpush1.bf16.msra.mxu0 0
  %1707 = vmatprep.subr.bf16.mxu0 0
  %1708 = vmatpush1.bf16.msra.mxu0 0
  %1709 = vmatprep.mubr.bf16.mxu0 0
  %1710 = vmatmul.mubr.bf16.gmra.mrb[0].mxu0 %v1672
  %v1711 = vpop.f32.mrb[0].mxu0
  %v1712 = vadd.f32 0.0, %v1711
  %v1713 = vpop.f32.mrb[0].mxu0
  %v1714 = vpop.f32.mrb[0].mxu0
  %v1715 = vpop.f32.mrb[0].mxu0
  %1716 = vdwg.mxu0
  %v1718 = vsel %vm692, %v1623, 0
  %v1721 = vsel %vm744, %v1391, 0
  %1723 = vmatprep.subr.bf16.mxu0 0
  %1724 = vmatpush1.bf16.msra.mxu0 %v1721
  %1725 = vmatprep.subr.bf16.mxu0 0
  %1726 = vmatpush1.bf16.msra.mxu0 0
  %1727 = vmatprep.subr.bf16.mxu0 0
  %1728 = vmatpush1.bf16.msra.mxu0 0
  %1729 = vmatprep.subr.bf16.mxu0 0
  %1730 = vmatpush1.bf16.msra.mxu0 0
  %1731 = vmatprep.subr.bf16.mxu0 0
  %1732 = vmatpush1.bf16.msra.mxu0 0
  %1733 = vmatprep.subr.bf16.mxu0 0
  %1734 = vmatpush1.bf16.msra.mxu0 0
  %1735 = vmatprep.subr.bf16.mxu0 0
  %1736 = vmatpush1.bf16.msra.mxu0 0
  %1737 = vmatprep.subr.bf16.mxu0 0
  %1738 = vmatpush1.bf16.msra.mxu0 0
  %1739 = vmatprep.subr.bf16.mxu0 0
  %1740 = vmatpush1.bf16.msra.mxu0 0
  %1741 = vmatprep.subr.bf16.mxu0 0
  %1742 = vmatpush1.bf16.msra.mxu0 0
  %1743 = vmatprep.subr.bf16.mxu0 0
  %1744 = vmatpush1.bf16.msra.mxu0 0
  %1745 = vmatprep.subr.bf16.mxu0 0
  %1746 = vmatpush1.bf16.msra.mxu0 0
  %1747 = vmatprep.subr.bf16.mxu0 0
  %1748 = vmatpush1.bf16.msra.mxu0 0
  %1749 = vmatprep.subr.bf16.mxu0 0
  %1750 = vmatpush1.bf16.msra.mxu0 0
  %1751 = vmatprep.subr.bf16.mxu0 0
  %1752 = vmatpush1.bf16.msra.mxu0 0
  %1753 = vmatprep.subr.bf16.mxu0 0
  %1754 = vmatpush1.bf16.msra.mxu0 0
  %1755 = vmatprep.mubr.bf16.mxu0 0
  %1756 = vmatmul.mubr.bf16.gmra.mrb[0].mxu0 %v1718
  %v1757 = vpop.f32.mrb[0].mxu0
  %v1758 = vadd.f32 0.0, %v1757
  %v1759 = vpop.f32.mrb[0].mxu0
  %v1760 = vpop.f32.mrb[0].mxu0
  %v1761 = vpop.f32.mrb[0].mxu0
  %1762 = vdwg.mxu0
  %v1764 = vsel %vm692, %v1624, 0
  %v1767 = vsel %vm744, %v1392, 0
  %1769 = vmatprep.subr.bf16.mxu0 0
  %1770 = vmatpush1.bf16.msra.mxu0 %v1767
  %1771 = vmatprep.subr.bf16.mxu0 0
  %1772 = vmatpush1.bf16.msra.mxu0 0
  %1773 = vmatprep.subr.bf16.mxu0 0
  %1774 = vmatpush1.bf16.msra.mxu0 0
  %1775 = vmatprep.subr.bf16.mxu0 0
  %1776 = vmatpush1.bf16.msra.mxu0 0
  %1777 = vmatprep.subr.bf16.mxu0 0
  %1778 = vmatpush1.bf16.msra.mxu0 0
  %1779 = vmatprep.subr.bf16.mxu0 0
  %1780 = vmatpush1.bf16.msra.mxu0 0
  %1781 = vmatprep.subr.bf16.mxu0 0
  %1782 = vmatpush1.bf16.msra.mxu0 0
  %1783 = vmatprep.subr.bf16.mxu0 0
  %1784 = vmatpush1.bf16.msra.mxu0 0
  %1785 = vmatprep.subr.bf16.mxu0 0
  %1786 = vmatpush1.bf16.msra.mxu0 0
  %1787 = vmatprep.subr.bf16.mxu0 0
  %1788 = vmatpush1.bf16.msra.mxu0 0
  %1789 = vmatprep.subr.bf16.mxu0 0
  %1790 = vmatpush1.bf16.msra.mxu0 0
  %1791 = vmatprep.subr.bf16.mxu0 0
  %1792 = vmatpush1.bf16.msra.mxu0 0
  %1793 = vmatprep.subr.bf16.mxu0 0
  %1794 = vmatpush1.bf16.msra.mxu0 0
  %1795 = vmatprep.subr.bf16.mxu0 0
  %1796 = vmatpush1.bf16.msra.mxu0 0
  %1797 = vmatprep.subr.bf16.mxu0 0
  %1798 = vmatpush1.bf16.msra.mxu0 0
  %1799 = vmatprep.subr.bf16.mxu0 0
  %1800 = vmatpush1.bf16.msra.mxu0 0
  %1801 = vmatprep.mubr.bf16.mxu0 0
  %1802 = vmatmul.mubr.bf16.gmra.mrb[0].mxu0 %v1764
  %v1803 = vpop.f32.mrb[0].mxu0
  %v1804 = vadd.f32 0.0, %v1803
  %v1805 = vpop.f32.mrb[0].mxu0
  %v1806 = vpop.f32.mrb[0].mxu0
  %v1807 = vpop.f32.mrb[0].mxu0
  %1808 = vdwg.mxu0
  %v1809 = vcombine.low %v1666, %v1758
  %v1810 = vcombine.high %v1666, %v1758
  %v1812 = vunpack.c.l.s4 1983009808
  %v1813 = vunpack.c.0.s8 %v1812
  %v1814 = vlaneseq
  %v1815 = vshrl.u32 %v1814, 7
  %v1816 = vsub.s32 %v1813, %v1815
  %v1817 = vrot.slane %v1809, %v1816
  %v1819 = vunpack.c.l.s4 1983009808
  %v1820 = vunpack.c.0.s8 %v1819
  %v1821 = vlaneseq
  %v1822 = vshrl.u32 %v1821, 7
  %v1823 = vsub.s32 %v1820, %v1822
  %v1824 = vrot.slane %v1810, %v1823
  %v1825 = vcombine.low %v1712, %v1804
  %v1826 = vcombine.high %v1712, %v1804
  %v1828 = vunpack.c.l.s4 1983009808
  %v1829 = vunpack.c.0.s8 %v1828
  %v1830 = vlaneseq
  %v1831 = vshrl.u32 %v1830, 7
  %v1832 = vsub.s32 %v1829, %v1831
  %v1833 = vrot.slane %v1825, %v1832
  %v1835 = vunpack.c.l.s4 1983009808
  %v1836 = vunpack.c.0.s8 %v1835
  %v1837 = vlaneseq
  %v1838 = vshrl.u32 %v1837, 7
  %v1839 = vsub.s32 %v1836, %v1838
  %v1840 = vrot.slane %v1826, %v1839
  %v1841 = vcombine.low %v1817, %v1833
  %v1842 = vcombine.high %v1817, %v1833
  %v1844 = vunpack.c.l.s4 1934713408
  %v1845 = vunpack.c.0.s8 %v1844
  %v1846 = vlaneseq
  %v1847 = vshrl.u32 %v1846, 7
  %v1848 = vsub.s32 %v1845, %v1847
  %v1849 = vrot.slane %v1841, %v1848
  %v1851 = vunpack.c.l.s4 1934713408
  %v1852 = vunpack.c.0.s8 %v1851
  %v1853 = vlaneseq
  %v1854 = vshrl.u32 %v1853, 7
  %v1855 = vsub.s32 %v1852, %v1854
  %v1856 = vrot.slane %v1842, %v1855
  %v1857 = vcombine.low %v1824, %v1840
  %v1858 = vcombine.high %v1824, %v1840
  %v1860 = vunpack.c.l.s4 1934713408
  %v1861 = vunpack.c.0.s8 %v1860
  %v1862 = vlaneseq
  %v1863 = vshrl.u32 %v1862, 7
  %v1864 = vsub.s32 %v1861, %v1863
  %v1865 = vrot.slane %v1857, %v1864
  %v1867 = vunpack.c.l.s4 1934713408
  %v1868 = vunpack.c.0.s8 %v1867
  %v1869 = vlaneseq
  %v1870 = vshrl.u32 %v1869, 7
  %v1871 = vsub.s32 %v1868, %v1870
  %v1872 = vrot.slane %v1858, %v1871
  %v1873 = vcombine.high %v1849, 0.0
  %v1874 = vcombine.high %v1856, 0.0
  %v1875 = vcombine.high %v1865, 0.0
  %v1876 = vcombine.high %v1872, 0.0
  %v1877 = vcombine.low %v1849, %v1856
  %v1879 = vunpack.c.l.s4 1983009808
  %v1880 = vunpack.c.0.s8 %v1879
  %v1881 = vlaneseq
  %v1882 = vshrl.u32 %v1881, 7
  %v1883 = vsub.s32 %v1880, %v1882
  %v1884 = vrot.slane %v1877, %v1883
  %v1885 = vcombine.low %v1873, %v1874
  %v1887 = vunpack.c.l.s4 1983009808
  %v1888 = vunpack.c.0.s8 %v1887
  %v1889 = vlaneseq
  %v1890 = vshrl.u32 %v1889, 7
  %v1891 = vsub.s32 %v1888, %v1890
  %v1892 = vrot.slane %v1885, %v1891
  %v1893 = vcombine.low %v1865, %v1872
  %v1895 = vunpack.c.l.s4 1983009808
  %v1896 = vunpack.c.0.s8 %v1895
  %v1897 = vlaneseq
  %v1898 = vshrl.u32 %v1897, 7
  %v1899 = vsub.s32 %v1896, %v1898
  %v1900 = vrot.slane %v1893, %v1899
  %v1901 = vcombine.low %v1875, %v1876
  %v1903 = vunpack.c.l.s4 1983009808
  %v1904 = vunpack.c.0.s8 %v1903
  %v1905 = vlaneseq
  %v1906 = vshrl.u32 %v1905, 7
  %v1907 = vsub.s32 %v1904, %v1906
  %v1908 = vrot.slane %v1901, %v1907
  %v1909 = vcombine.low %v1884, %v1892
  %v1910 = vcombine.high %v1884, %v1892
  %v1912 = vunpack.c.l.s4 1934713408
  %v1913 = vunpack.c.0.s8 %v1912
  %v1914 = vlaneseq
  %v1915 = vshrl.u32 %v1914, 7
  %v1916 = vsub.s32 %v1913, %v1915
  %v1917 = vrot.slane %v1909, %v1916
  %v1919 = vunpack.c.l.s4 1934713408
  %v1920 = vunpack.c.0.s8 %v1919
  %v1921 = vlaneseq
  %v1922 = vshrl.u32 %v1921, 7
  %v1923 = vsub.s32 %v1920, %v1922
  %v1924 = vrot.slane %v1910, %v1923
  %v1925 = vcombine.low %v1900, %v1908
  %v1926 = vcombine.high %v1900, %v1908
  %v1928 = vunpack.c.l.s4 1934713408
  %v1929 = vunpack.c.0.s8 %v1928
  %v1930 = vlaneseq
  %v1931 = vshrl.u32 %v1930, 7
  %v1932 = vsub.s32 %v1929, %v1931
  %v1933 = vrot.slane %v1925, %v1932
  %v1935 = vunpack.c.l.s4 1934713408
  %v1936 = vunpack.c.0.s8 %v1935
  %v1937 = vlaneseq
  %v1938 = vshrl.u32 %v1937, 7
  %v1939 = vsub.s32 %v1936, %v1938
  %v1940 = vrot.slane %v1926, %v1939
  %v1941 = vcombine.low %v1917, %v1933
  %v1942 = vcombine.high %v1917, %v1933
  %v1943 = vcombine.low %v1924, %v1940
  %v1944 = vcombine.high %v1924, %v1940
  %1946 = vrot.lane.b32.xlu0 %v1942, 8
  %v1947 = vpop.permute.xlu0 %1946
  %1950 = vrot.lane.b32.xlu0 %v1943, 16
  %v1951 = vpop.permute.xlu0 %1950
  %1954 = vrot.lane.b32.xlu0 %v1944, 24
  %v1955 = vpop.permute.xlu0 %1954
  %v1957 = vsel %vm507, %v1941, %v1947
  %v1958 = vsel %vm1075, %v1957, %v1951
  %v1959 = vsel %vm1077, %v1958, %v1955
  %v1960 = vpack.c.bf16 %v1959, %v1078
  %v1961 = vld [vmem:[%s6] sm:$0xf]
  %v1962 = vld [vmem:[%s6 + $0x4] sm:$0xf]
  %v1963 = vld [vmem:[%s6 + $0x8] sm:$0xf]
  %v1964 = vld [vmem:[%s6 + $0xc] sm:$0xf]
  %v1965 = vld [vmem:[%s7] sm:$0x1]
  %v1967 = vlaneseq
  %v1968 = vshrl.u32 %v1967, 7
  %v1969 = vsub.s32 0, %v1968
  %v1970 = vrot.slane %v1965, %v1969
  %v1976 = vunpack.c.l.b16 %v1961
  %v1977 = vunpack.c.l.b16 %v1962
  %v1978 = vunpack.c.l.b16 %v1963
  %v1979 = vunpack.c.l.b16 %v1964
  %v1980 = vpack.c.b16 %v1977, %v1976
  %v1981 = vpack.c.b16 %v1979, %v1978
  %v1985 = vsel %vm70, %v1960, 0
  %1987 = vmatprep.subr.bf16.mxu0 0
  %1988 = vmatpush1.bf16.msra.mxu0 %v1980
  %1989 = vmatprep.subr.bf16.mxu0 0
  %1990 = vmatpush1.bf16.msra.mxu0 %v1981
  %1991 = vmatprep.subr.bf16.mxu0 0
  %1992 = vmatpush1.bf16.msra.mxu0 0
  %1993 = vmatprep.subr.bf16.mxu0 0
  %1994 = vmatpush1.bf16.msra.mxu0 0
  %1995 = vmatprep.subr.bf16.mxu0 0
  %1996 = vmatpush1.bf16.msra.mxu0 0
  %1997 = vmatprep.subr.bf16.mxu0 0
  %1998 = vmatpush1.bf16.msra.mxu0 0
  %1999 = vmatprep.subr.bf16.mxu0 0
  %2000 = vmatpush1.bf16.msra.mxu0 0
  %2001 = vmatprep.subr.bf16.mxu0 0
  %2002 = vmatpush1.bf16.msra.mxu0 0
  %2003 = vmatprep.subr.bf16.mxu0 0
  %2004 = vmatpush1.bf16.msra.mxu0 0
  %2005 = vmatprep.subr.bf16.mxu0 0
  %2006 = vmatpush1.bf16.msra.mxu0 0
  %2007 = vmatprep.subr.bf16.mxu0 0
  %2008 = vmatpush1.bf16.msra.mxu0 0
  %2009 = vmatprep.subr.bf16.mxu0 0
  %2010 = vmatpush1.bf16.msra.mxu0 0
  %2011 = vmatprep.subr.bf16.mxu0 0
  %2012 = vmatpush1.bf16.msra.mxu0 0
  %2013 = vmatprep.subr.bf16.mxu0 0
  %2014 = vmatpush1.bf16.msra.mxu0 0
  %2015 = vmatprep.subr.bf16.mxu0 0
  %2016 = vmatpush1.bf16.msra.mxu0 0
  %2017 = vmatprep.subr.bf16.mxu0 0
  %2018 = vmatpush1.bf16.msra.mxu0 0
  %2019 = vmatprep.mubr.bf16.mxu0 0
  %2020 = vmatmul.mubr.bf16.gmra.mrb[0].mxu0 %v1985
  %v2021 = vpop.f32.mrb[0].mxu0
  %v2022 = vadd.f32 %v1970, %v2021
  %v2023 = vpop.f32.mrb[0].mxu0
  %v2024 = vpop.f32.mrb[0].mxu0
  %v2025 = vadd.f32 %v1970, %v2024
  %v2026 = vpop.f32.mrb[0].mxu0
  %2027 = vdwg.mxu0
  %v2028 = vadd.f32 %v38, %v2022
  %v2029 = vadd.f32 %v39, %v2025
  %v2030 = vld [vmem:[%s8] sm:$0x1]
  %v2031 = vld [vmem:[%s9] sm:$0x1]
  %v2032 = vsel %vm70, %v2028, 0.0
  %2033 = vadd.xlane.f32.xlu0 %v2032
  %v2034 = vpop.xlane.xlu0 %2033
  %v2035 = vsel %vm70, %v2029, 0.0
  %2036 = vadd.xlane.f32.xlu0 %v2035
  %v2037 = vpop.xlane.xlu0 %2036
  %v2038 = vrcp.pop 32.0
  %v2039 = vmul.f32 %v2034, %v2038
  %v2040 = vmul.f32 %v2037, %v2038
  %v2041 = vsub.f32 %v2028, %v2039
  %v2042 = vsub.f32 %v2029, %v2040
  %v2043 = vmul.f32 %v2041, %v2041
  %v2044 = vmul.f32 %v2042, %v2042
  %v2045 = vsel %vm70, %v2043, 0.0
  %2046 = vadd.xlane.f32.xlu0 %v2045
  %v2047 = vpop.xlane.xlu0 %2046
  %v2048 = vsel %vm70, %v2044, 0.0
  %2049 = vadd.xlane.f32.xlu0 %v2048
  %v2050 = vpop.xlane.xlu0 %2049
  %v2051 = vmul.f32 %v2047, %v2038
  %v2052 = vmul.f32 %v2050, %v2038
  %v2053 = vadd.f32 %v2051, 1e-05
  %v2054 = vadd.f32 %v2052, 1e-05
  %v2055 = vrsqrt.pop %v2053
  %v2056 = vrsqrt.pop %v2054
  %v2057 = vmul.f32 %v2041, %v2055
  %v2058 = vmul.f32 %v2042, %v2056
  %v2060 = vlaneseq
  %v2061 = vshrl.u32 %v2060, 7
  %v2062 = vsub.s32 0, %v2061
  %v2063 = vrot.slane %v2030, %v2062
  %v2065 = vmul.f32 %v2057, %v2063
  %v2066 = vmul.f32 %v2058, %v2063
  %v2068 = vlaneseq
  %v2069 = vshrl.u32 %v2068, 7
  %v2070 = vsub.s32 0, %v2069
  %v2071 = vrot.slane %v2031, %v2070
  %v2073 = vadd.f32 %v2065, %v2071
  %v2074 = vadd.f32 %v2066, %v2071
  %v2075 = vpack.c.bf16 %v2073, %v2073
  %v2076 = vpack.c.bf16 %v2074, %v2074
  %vm2077 = vcmask 257024
  %2078 = vst.msk [vmem:[%s10] sm:$0xf] %vm2077, %v2075
  %2079 = vst.msk [vmem:[%s10 + $0x4] sm:$0xf] %vm2077, %v2076
  // Predicated region
  $region42: #{_lambda_.12} parent=0 // pred_check
    _
  $region43: #{_lambda_.12} parent=0 // pred_check_branch
    %2081 = sbr.rel (0) target = $region45
  $region44: #{_lambda_.12} parent=0 // pred_region
    _
  $region45: #{_lambda_.12} parent=0 // pred_fallthru
    _
  // Predicated region
  $region46: #{_lambda_.12} parent=0 // pred_check
    _
  $region47: #{_lambda_.12} parent=0 // pred_check_branch
    %2083 = sbr.rel (0) target = $region49
  $region48: #{_lambda_.12} parent=0 // pred_region
    _
  $region49: #{_lambda_.12} parent=0 // pred_fallthru
    _

// kernel: _lambda_.13
$region0: #{_lambda_.13}
  #allocation0 [shape = 'u32[]', space=smem, size = 0x4, offset = 0x4, fixed_abs, tag = 'smem constant byte address 0x4 - core index']
  #allocation1 [shape = 'u32[144,128]{1,0:T(1,128)}', space=vmem, size = 0x12000, scoped, tag = 'internal scratch']
  %s0 = inlined_call_operand.vmem [shape: bf16[2,8,32], index: 0, kind: input, shape index: {}]
  %s1 = inlined_call_operand.vmem [shape: bf16[32,64], index: 1, kind: input, shape index: {}]
  %s2 = inlined_call_operand.vmem [shape: f32[1,64], index: 2, kind: input, shape index: {}]
  %s3 = inlined_call_operand.vmem [shape: bf16[64,32], index: 3, kind: input, shape index: {}]
  %s4 = inlined_call_operand.vmem [shape: f32[1,32], index: 4, kind: input, shape index: {}]
  %s5 = inlined_call_operand.vmem [shape: f32[1,32], index: 5, kind: input, shape index: {}]
  %s6 = inlined_call_operand.vmem [shape: f32[1,32], index: 6, kind: input, shape index: {}]
  %s7 = inlined_call_operand.vmem [shape: bf16[2,8,32], index: 7, kind: output, shape index: {}]
  %s8 = sld [smem:[#allocation0]]
  $region38: #{_lambda_.13} parent=0
    _
  %s10 = ssub.s32 1, %s8
  %s11 = scalar_select 0, %s10, %s8
  // Predicated region
  $region2: #{_lambda_.13} parent=0 // pred_check
    _
  $region3: #{_lambda_.13} parent=0 // pred_check_branch
    %13 = sbr.rel (0) target = $region5
  $region4: #{_lambda_.13} parent=0 // pred_region
    _
  $region5: #{_lambda_.13} parent=0 // pred_fallthru
    _
  // Predicated region
  $region6: #{_lambda_.13} parent=0 // pred_check
    _
  $region7: #{_lambda_.13} parent=0 // pred_check_branch
    %15 = sbr.rel (0) target = $region9
  $region8: #{_lambda_.13} parent=0 // pred_region
    _
  $region9: #{_lambda_.13} parent=0 // pred_fallthru
    _
  // Predicated region
  $region10: #{_lambda_.13} parent=0 // pred_check
    _
  $region11: #{_lambda_.13} parent=0 // pred_check_branch
    %17 = sbr.rel (0) target = $region13
  $region12: #{_lambda_.13} parent=0 // pred_region
    _
  $region13: #{_lambda_.13} parent=0 // pred_fallthru
    _
  // Predicated region
  $region14: #{_lambda_.13} parent=0 // pred_check
    _
  $region15: #{_lambda_.13} parent=0 // pred_check_branch
    %19 = sbr.rel (0) target = $region17
  $region16: #{_lambda_.13} parent=0 // pred_region
    _
  $region17: #{_lambda_.13} parent=0 // pred_fallthru
    _
  // Predicated region
  $region18: #{_lambda_.13} parent=0 // pred_check
    _
  $region19: #{_lambda_.13} parent=0 // pred_check_branch
    %21 = sbr.rel (0) target = $region21
  $region20: #{_lambda_.13} parent=0 // pred_region
    _
  $region21: #{_lambda_.13} parent=0 // pred_fallthru
    _
  // Predicated region
  $region22: #{_lambda_.13} parent=0 // pred_check
    _
  $region23: #{_lambda_.13} parent=0 // pred_check_branch
    %23 = sbr.rel (0) target = $region25
  $region24: #{_lambda_.13} parent=0 // pred_region
    _
  $region25: #{_lambda_.13} parent=0 // pred_fallthru
    _
  // Predicated region
  $region26: #{_lambda_.13} parent=0 // pred_check
    _
  $region27: #{_lambda_.13} parent=0 // pred_check_branch
    %25 = sbr.rel (0) target = $region29
  $region28: #{_lambda_.13} parent=0 // pred_region
    _
  $region29: #{_lambda_.13} parent=0 // pred_fallthru
    _
  %v27 = vld [vmem:[%s0] sm:$0xf]
  %v28 = vld [vmem:[%s0 + $0x4] sm:$0xf]
  %v29 = vunpack.c.l.bf16 %v27
  %v30 = vunpack.c.l.bf16 %v28
  %v31 = vld [vmem:[%s1] sm:$0xf]
  %v32 = vld [vmem:[%s1 + $0x4] sm:$0xf]
  %v33 = vld [vmem:[%s1 + $0x8] sm:$0xf]
  %v34 = vld [vmem:[%s1 + $0xc] sm:$0xf]
  %v35 = vld [vmem:[%s2] sm:$0x1]
  %v37 = vlaneseq
  %v38 = vshrl.u32 %v37, 7
  %v39 = vsub.s32 0, %v38
  %v40 = vrot.slane %v35, %v39
  %v44 = vunpack.c.l.b16 %v27
  %v45 = vunpack.c.l.b16 %v28
  %v46 = vpack.c.b16 %v45, %v44
  %v51 = vunpack.c.l.b16 %v31
  %v52 = vunpack.c.l.b16 %v32
  %v53 = vunpack.c.l.b16 %v33
  %v54 = vunpack.c.l.b16 %v34
  %v55 = vpack.c.b16 %v52, %v51
  %v56 = vpack.c.b16 %v54, %v53
  %vm59 = vcmask 261120
  %v61 = vsel %vm59, %v46, 0
  %63 = vmatprep.subr.bf16.mxu0 0
  %64 = vmatpush1.bf16.msra.mxu0 %v55
  %65 = vmatprep.subr.bf16.mxu0 0
  %66 = vmatpush1.bf16.msra.mxu0 %v56
  %67 = vmatprep.subr.bf16.mxu0 0
  %68 = vmatpush1.bf16.msra.mxu0 0
  %69 = vmatprep.subr.bf16.mxu0 0
  %70 = vmatpush1.bf16.msra.mxu0 0
  %71 = vmatprep.subr.bf16.mxu0 0
  %72 = vmatpush1.bf16.msra.mxu0 0
  %73 = vmatprep.subr.bf16.mxu0 0
  %74 = vmatpush1.bf16.msra.mxu0 0
  %75 = vmatprep.subr.bf16.mxu0 0
  %76 = vmatpush1.bf16.msra.mxu0 0
  %77 = vmatprep.subr.bf16.mxu0 0
  %78 = vmatpush1.bf16.msra.mxu0 0
  %79 = vmatprep.subr.bf16.mxu0 0
  %80 = vmatpush1.bf16.msra.mxu0 0
  %81 = vmatprep.subr.bf16.mxu0 0
  %82 = vmatpush1.bf16.msra.mxu0 0
  %83 = vmatprep.subr.bf16.mxu0 0
  %84 = vmatpush1.bf16.msra.mxu0 0
  %85 = vmatprep.subr.bf16.mxu0 0
  %86 = vmatpush1.bf16.msra.mxu0 0
  %87 = vmatprep.subr.bf16.mxu0 0
  %88 = vmatpush1.bf16.msra.mxu0 0
  %89 = vmatprep.subr.bf16.mxu0 0
  %90 = vmatpush1.bf16.msra.mxu0 0
  %91 = vmatprep.subr.bf16.mxu0 0
  %92 = vmatpush1.bf16.msra.mxu0 0
  %93 = vmatprep.subr.bf16.mxu0 0
  %94 = vmatpush1.bf16.msra.mxu0 0
  %95 = vmatprep.mubr.bf16.mxu0 0
  %96 = vmatmul.mubr.bf16.gmra.mrb[0].mxu0 %v61
  %v97 = vpop.f32.mrb[0].mxu0
  %v98 = vadd.f32 %v40, %v97
  %v99 = vpop.f32.mrb[0].mxu0
  %v100 = vpop.f32.mrb[0].mxu0
  %v101 = vadd.f32 %v40, %v100
  %v102 = vpop.f32.mrb[0].mxu0
  %103 = vdwg.mxu0
  %v104 = vmul.f32 %v98, %v98
  %v105 = vmul.f32 %v101, %v101
  %v106 = vmul.f32 %v98, %v104
  %v107 = vmul.f32 %v101, %v105
  %v108 = vmul.f32 %v106, 0.044715
  %v109 = vmul.f32 %v107, 0.044715
  %v110 = vadd.f32 %v98, %v108
  %v111 = vadd.f32 %v101, %v109
  %v112 = vmul.f32 %v110, 0.7978846
  %v113 = vmul.f32 %v111, 0.7978846
  %v114 = vtanh.pop %v112
  %v115 = vtanh.pop %v113
  %v116 = vadd.f32 %v114, 1.0
  %v117 = vadd.f32 %v115, 1.0
  %v118 = vmul.f32 %v116, 0.5
  %v119 = vmul.f32 %v117, 0.5
  %v120 = vmul.f32 %v98, %v118
  %v121 = vmul.f32 %v101, %v119
  %v122 = vpack.c.bf16 %v121, %v120
  %v123 = vld [vmem:[%s3] sm:$0xf]
  %v124 = vld [vmem:[%s3 + $0x4] sm:$0xf]
  %v125 = vld [vmem:[%s3 + $0x8] sm:$0xf]
  %v126 = vld [vmem:[%s3 + $0xc] sm:$0xf]
  %v127 = vld [vmem:[%s3 + $0x10] sm:$0xf]
  %v128 = vld [vmem:[%s3 + $0x14] sm:$0xf]
  %v129 = vld [vmem:[%s3 + $0x18] sm:$0xf]
  %v130 = vld [vmem:[%s3 + $0x1c] sm:$0xf]
  %v131 = vld [vmem:[%s4] sm:$0x1]
  %v133 = vlaneseq
  %v134 = vshrl.u32 %v133, 7
  %v135 = vsub.s32 0, %v134
  %v136 = vrot.slane %v131, %v135
  %v146 = vunpack.c.l.b16 %v123
  %v147 = vunpack.c.l.b16 %v124
  %v148 = vunpack.c.l.b16 %v125
  %v149 = vunpack.c.l.b16 %v126
  %v150 = vunpack.c.l.b16 %v127
  %v151 = vunpack.c.l.b16 %v128
  %v152 = vunpack.c.l.b16 %v129
  %v153 = vunpack.c.l.b16 %v130
  %v154 = vpack.c.b16 %v147, %v146
  %v155 = vpack.c.b16 %v149, %v148
  %v156 = vpack.c.b16 %v151, %v150
  %v157 = vpack.c.b16 %v153, %v152
  %vm162 = vcmask 523264
  %v164 = vsel %vm162, %v122, 0
  %166 = vmatprep.subr.bf16.mxu0 0
  %167 = vmatpush1.bf16.msra.mxu0 %v154
  %168 = vmatprep.subr.bf16.mxu0 0
  %169 = vmatpush1.bf16.msra.mxu0 %v155
  %170 = vmatprep.subr.bf16.mxu0 0
  %171 = vmatpush1.bf16.msra.mxu0 %v156
  %172 = vmatprep.subr.bf16.mxu0 0
  %173 = vmatpush1.bf16.msra.mxu0 %v157
  %174 = vmatprep.subr.bf16.mxu0 0
  %175 = vmatpush1.bf16.msra.mxu0 0
  %176 = vmatprep.subr.bf16.mxu0 0
  %177 = vmatpush1.bf16.msra.mxu0 0
  %178 = vmatprep.subr.bf16.mxu0 0
  %179 = vmatpush1.bf16.msra.mxu0 0
  %180 = vmatprep.subr.bf16.mxu0 0
  %181 = vmatpush1.bf16.msra.mxu0 0
  %182 = vmatprep.subr.bf16.mxu0 0
  %183 = vmatpush1.bf16.msra.mxu0 0
  %184 = vmatprep.subr.bf16.mxu0 0
  %185 = vmatpush1.bf16.msra.mxu0 0
  %186 = vmatprep.subr.bf16.mxu0 0
  %187 = vmatpush1.bf16.msra.mxu0 0
  %188 = vmatprep.subr.bf16.mxu0 0
  %189 = vmatpush1.bf16.msra.mxu0 0
  %190 = vmatprep.subr.bf16.mxu0 0
  %191 = vmatpush1.bf16.msra.mxu0 0
  %192 = vmatprep.subr.bf16.mxu0 0
  %193 = vmatpush1.bf16.msra.mxu0 0
  %194 = vmatprep.subr.bf16.mxu0 0
  %195 = vmatpush1.bf16.msra.mxu0 0
  %196 = vmatprep.subr.bf16.mxu0 0
  %197 = vmatpush1.bf16.msra.mxu0 0
  %198 = vmatprep.mubr.bf16.mxu0 0
  %199 = vmatmul.mubr.bf16.gmra.mrb[0].mxu0 %v164
  %v200 = vpop.f32.mrb[0].mxu0
  %v201 = vadd.f32 %v136, %v200
  %v202 = vpop.f32.mrb[0].mxu0
  %v203 = vpop.f32.mrb[0].mxu0
  %v204 = vadd.f32 %v136, %v203
  %v205 = vpop.f32.mrb[0].mxu0
  %206 = vdwg.mxu0
  %v207 = vadd.f32 %v29, %v201
  %v208 = vadd.f32 %v30, %v204
  %v209 = vld [vmem:[%s5] sm:$0x1]
  %v210 = vld [vmem:[%s6] sm:$0x1]
  %v211 = vsel %vm59, %v207, 0.0
  %212 = vadd.xlane.f32.xlu0 %v211
  %v213 = vpop.xlane.xlu0 %212
  %v214 = vsel %vm59, %v208, 0.0
  %215 = vadd.xlane.f32.xlu0 %v214
  %v216 = vpop.xlane.xlu0 %215
  %v217 = vrcp.pop 32.0
  %v218 = vmul.f32 %v213, %v217
  %v219 = vmul.f32 %v216, %v217
  %v220 = vsub.f32 %v207, %v218
  %v221 = vsub.f32 %v208, %v219
  %v222 = vmul.f32 %v220, %v220
  %v223 = vmul.f32 %v221, %v221
  %v224 = vsel %vm59, %v222, 0.0
  %225 = vadd.xlane.f32.xlu0 %v224
  %v226 = vpop.xlane.xlu0 %225
  %v227 = vsel %vm59, %v223, 0.0
  %228 = vadd.xlane.f32.xlu0 %v227
  %v229 = vpop.xlane.xlu0 %228
  %v230 = vmul.f32 %v226, %v217
  %v231 = vmul.f32 %v229, %v217
  %v232 = vadd.f32 %v230, 1e-05
  %v233 = vadd.f32 %v231, 1e-05
  %v234 = vrsqrt.pop %v232
  %v235 = vrsqrt.pop %v233
  %v236 = vmul.f32 %v220, %v234
  %v237 = vmul.f32 %v221, %v235
  %v239 = vlaneseq
  %v240 = vshrl.u32 %v239, 7
  %v241 = vsub.s32 0, %v240
  %v242 = vrot.slane %v209, %v241
  %v244 = vmul.f32 %v236, %v242
  %v245 = vmul.f32 %v237, %v242
  %v247 = vlaneseq
  %v248 = vshrl.u32 %v247, 7
  %v249 = vsub.s32 0, %v248
  %v250 = vrot.slane %v210, %v249
  %v252 = vadd.f32 %v244, %v250
  %v253 = vadd.f32 %v245, %v250
  %v254 = vpack.c.bf16 %v252, %v252
  %v255 = vpack.c.bf16 %v253, %v253
  %vm256 = vcmask 257024
  %257 = vst.msk [vmem:[%s7] sm:$0xf] %vm256, %v254
  %258 = vst.msk [vmem:[%s7 + $0x4] sm:$0xf] %vm256, %v255
  // Predicated region
  $region30: #{_lambda_.13} parent=0 // pred_check
    _
  $region31: #{_lambda_.13} parent=0 // pred_check_branch
    %260 = sbr.rel (0) target = $region33
  $region32: #{_lambda_.13} parent=0 // pred_region
    _
  $region33: #{_lambda_.13} parent=0 // pred_fallthru
    _
  // Predicated region
  $region34: #{_lambda_.13} parent=0 // pred_check
    _
  $region35: #{_lambda_.13} parent=0 // pred_check_branch
    %262 = sbr.rel (0) target = $region37
  $region36: #{_lambda_.13} parent=0 // pred_region
    _
  $region37: #{_lambda_.13} parent=0 // pred_fallthru
    _

// kernel: _lambda_.17
$region0: #{_lambda_.17}
  #allocation0 [shape = 'u32[]', space=smem, size = 0x4, offset = 0x4, fixed_abs, tag = 'smem constant byte address 0x4 - core index']
  #allocation1 [shape = 'u32[144,128]{1,0:T(1,128)}', space=vmem, size = 0x12000, scoped, tag = 'internal scratch']
  %s0 = inlined_call_operand.vmem [shape: bf16[16,32], index: 0, kind: input, shape index: {}]
  %s1 = inlined_call_operand.vmem [shape: bf16[32,50], index: 1, kind: input, shape index: {}]
  %s2 = inlined_call_operand.vmem [shape: f32[1,50], index: 2, kind: input, shape index: {}]
  %s3 = inlined_call_operand.hbm [shape: f32[16,50], index: 3, kind: output, shape index: {}]
  %s4 = sld [smem:[#allocation0]]
  $region22: #{_lambda_.17} parent=0
    _
  %s6 = ssub.s32 1, %s4
  %s7 = scalar_select 0, %s6, %s4
  $region1: #{_lambda_.17} parent=0
    #allocation2 [shape = 'u8[8192]{0}', space=vmem, size = 0x2000, scoped, tag = 'output window, operand 0, single buffered']
    #allocation3 [shape = 's32[1]{0}', space=sflag, size = 0x4, scoped, tag = 'scoped memory for _lambda_.17']
    %8 = vsyncpa [#allocation3], 0
    // Predicated region
    $region2: #{_lambda_.17} parent=1 // pred_check
      _
    $region3: #{_lambda_.17} parent=1 // pred_check_branch
      %10 = sbr.rel (0) target = $region5
    $region4: #{_lambda_.17} parent=1 // pred_region
      _
    $region5: #{_lambda_.17} parent=1 // pred_fallthru
      _
    // Predicated region
    $region6: #{_lambda_.17} parent=1 // pred_check
      _
    $region7: #{_lambda_.17} parent=1 // pred_check_branch
      %12 = sbr.rel (0) target = $region9
    $region8: #{_lambda_.17} parent=1 // pred_region
      _
    $region9: #{_lambda_.17} parent=1 // pred_fallthru
      _
    // Predicated region
    $region10: #{_lambda_.17} parent=1 // pred_check
      _
    $region11: #{_lambda_.17} parent=1 // pred_check_branch
      %14 = sbr.rel (0) target = $region13
    $region12: #{_lambda_.17} parent=1 // pred_region
      _
    $region13: #{_lambda_.17} parent=1 // pred_fallthru
      _
    %v16 = vld [vmem:[%s0] sm:$0xf]
    %v17 = vld [vmem:[%s0 + $0x4] sm:$0xf]
    %v18 = vld [vmem:[%s1] sm:$0xf]
    %v19 = vld [vmem:[%s1 + $0x4] sm:$0xf]
    %v20 = vld [vmem:[%s1 + $0x8] sm:$0xf]
    %v21 = vld [vmem:[%s1 + $0xc] sm:$0xf]
    %v22 = vld [vmem:[%s2] sm:$0x1]
    %v24 = vlaneseq
    %v25 = vshrl.u32 %v24, 7
    %v26 = vsub.s32 0, %v25
    %v27 = vrot.slane %v22, %v26
    %v31 = vunpack.c.l.b16 %v16
    %v32 = vunpack.c.l.b16 %v17
    %v33 = vpack.c.b16 %v32, %v31
    %v38 = vunpack.c.l.b16 %v18
    %v39 = vunpack.c.l.b16 %v19
    %v40 = vunpack.c.l.b16 %v20
    %v41 = vunpack.c.l.b16 %v21
    %v42 = vpack.c.b16 %v39, %v38
    %v43 = vpack.c.b16 %v41, %v40
    %vm46 = vcmask 261120
    %v48 = vsel %vm46, %v33, 0
    %50 = vmatprep.subr.bf16.mxu0 0
    %51 = vmatpush1.bf16.msra.mxu0 %v42
    %52 = vmatprep.subr.bf16.mxu0 0
    %53 = vmatpush1.bf16.msra.mxu0 %v43
    %54 = vmatprep.subr.bf16.mxu0 0
    %55 = vmatpush1.bf16.msra.mxu0 0
    %56 = vmatprep.subr.bf16.mxu0 0
    %57 = vmatpush1.bf16.msra.mxu0 0
    %58 = vmatprep.subr.bf16.mxu0 0
    %59 = vmatpush1.bf16.msra.mxu0 0
    %60 = vmatprep.subr.bf16.mxu0 0
    %61 = vmatpush1.bf16.msra.mxu0 0
    %62 = vmatprep.subr.bf16.mxu0 0
    %63 = vmatpush1.bf16.msra.mxu0 0
    %64 = vmatprep.subr.bf16.mxu0 0
    %65 = vmatpush1.bf16.msra.mxu0 0
    %66 = vmatprep.subr.bf16.mxu0 0
    %67 = vmatpush1.bf16.msra.mxu0 0
    %68 = vmatprep.subr.bf16.mxu0 0
    %69 = vmatpush1.bf16.msra.mxu0 0
    %70 = vmatprep.subr.bf16.mxu0 0
    %71 = vmatpush1.bf16.msra.mxu0 0
    %72 = vmatprep.subr.bf16.mxu0 0
    %73 = vmatpush1.bf16.msra.mxu0 0
    %74 = vmatprep.subr.bf16.mxu0 0
    %75 = vmatpush1.bf16.msra.mxu0 0
    %76 = vmatprep.subr.bf16.mxu0 0
    %77 = vmatpush1.bf16.msra.mxu0 0
    %78 = vmatprep.subr.bf16.mxu0 0
    %79 = vmatpush1.bf16.msra.mxu0 0
    %80 = vmatprep.subr.bf16.mxu0 0
    %81 = vmatpush1.bf16.msra.mxu0 0
    %82 = vmatprep.mubr.bf16.mxu0 0
    %83 = vmatmul.mubr.bf16.gmra.mrb[0].mxu0 %v48
    %v84 = vpop.f32.mrb[0].mxu0
    %v85 = vadd.f32 %v27, %v84
    %v86 = vpop.f32.mrb[0].mxu0
    %v87 = vpop.f32.mrb[0].mxu0
    %v88 = vadd.f32 %v27, %v87
    %v89 = vpop.f32.mrb[0].mxu0
    %90 = vdwg.mxu0
    %vm91 = vcmask 408576
    %92 = vst.msk [vmem:[#allocation2] sm:$0xff] %vm91, %v85
    %93 = vst.msk [vmem:[#allocation2 + $0x8] sm:$0xff] %vm91, %v88
    // Predicated region
    $region14: #{_lambda_.17} parent=1 // pred_check
      _
    $region15: #{_lambda_.17} parent=1 // pred_check_branch
      %95 = sbr.rel (0) target = $region17
    $region16: #{_lambda_.17} parent=1 // pred_region
      %s97 = ssub.s32 256, 256
      %98 = vsyncadd [#allocation3], %s97
      %s99 = sshll.u32 [#allocation2], 4
      %s100 = int_to_ptr.vmem [resolvable:$true] %s99
      %105 = dma.vmem_to_hbm [thread:$0]  %s100, 256, %s3, [#allocation3], 128, 128, 8
    $region17: #{_lambda_.17} parent=1 // pred_fallthru
      _
    // Predicated region
    $region18: #{_lambda_.17} parent=1 // pred_check
      _
    $region19: #{_lambda_.17} parent=1 // pred_check_branch
      %107 = sbr.rel (0) target = $region21
    $region20: #{_lambda_.17} parent=1 // pred_region
      %108 = dma.done [#allocation3], 256
    $region21: #{_lambda_.17} parent=1 // pred_fallthru
      _
    %109 = vsyncpa [#allocation3], 1

</llo_original>
